<compile_context>
chip_gen: v7x
topology: tpu7x:2x2x1
jax: 0.10.0
libtpu: 0.0.40
codegen_flags: <defaults>
</compile_context>

<pallas_src>
import jax
import jax.numpy as jnp
from jax.experimental import pallas as pl
from jax.experimental.pallas import tpu as pltpu

# --- ConvE default hyperparameters ---
E_H = 20                    # embedding_size_h
E_W = 10                    # embedding_size_w
EMB = E_H * E_W             # 200
CONV_C = 32                 # conv_channels
KS = 3                      # conv_kernel_size
OH = 2 * E_W - KS + 1       # 18
OW = E_H - KS + 1           # 18
P = OH * OW                 # 324   flattened spatial per channel
P_PAD = 384                 # 324 padded up to a multiple of 128 lanes
FLAT = CONV_C * P           # 10368 flattened_size
GRP = 8                     # channels per grid step
NG = CONV_C // GRP          # 4 grid steps (channel groups)
KG = GRP * P_PAD            # 3072 contraction length per group (lane aligned)
BN_EPS = 1e-5


def conve_kernel(patches_ref, wc_ref, bc_ref, wl_ref, bl_ref, g1_ref, b1_ref,
                 e2_ref, out_ref, acc_ref, act_ref):
    """One channel-group step of the ConvE hot path.

    patches_ref : VMEM (9, B, P)   im2col patches, patches[k,b,i*OW+j] = img[b,i+dh,j+dw]
    wc_ref      : SMEM (C, 9)      conv weight taps (scalars)
    bc_ref      : SMEM (C,)        conv bias
    wl_ref      : VMEM (KG, EMB)   this group's linear-weight block (BN2d gamma folded,
                                   zero rows in each channel's 324..383 lane pad)
    bl/g1/b1    : VMEM (1, EMB)    folded linear bias, BN1d gamma/beta
    e2_ref      : VMEM (B, EMB)    tail-entity embeddings
    out_ref     : VMEM (B, 1)      sigmoid scores (written on the last step)
    acc_ref     : VMEM (B, EMB)    f32 linear accumulator (scratch)
    act_ref     : VMEM (B, KG)     f32 assembled group activation (scratch)
    """
    g = pl.program_id(0)

    @pl.when(g == 0)
    def _init():
        acc_ref[...] = jnp.zeros_like(acc_ref)
        act_ref[...] = jnp.zeros_like(act_ref)   # zero once: pad lanes stay zero

    # The 9 im2col taps are shared by every channel of this group.
    taps = [patches_ref[k] for k in range(KS * KS)]

    for cl in range(GRP):
        c = g * GRP + cl                                   # absolute channel id
        # Conv2d(in=1, out=C, k=3): 9 scalar-tap FMAs on the VPU (f32).
        a = wc_ref[c, 0] * taps[0]
        for k in range(1, KS * KS):
            a = a + wc_ref[c, k] * taps[k]
        a = jnp.maximum(a + bc_ref[c], 0.0)                # conv bias + ReLU
        # BatchNorm2d, training-mode stats over (N, H, W); affine folded into wl.
        m = jnp.mean(a, keepdims=True)
        ac = a - m
        v = jnp.mean(ac * ac, keepdims=True)
        # Store the normalized slab into its 384-lane-aligned slot.
        act_ref[:, cl * P_PAD:cl * P_PAD + P] = ac * jax.lax.rsqrt(v + BN_EPS)

    # Single MXU matmul for the whole group: (B, 3072) x (3072, 200), f32 accumulate.
    acc_ref[...] += jnp.dot(act_ref[...].astype(wl_ref.dtype), wl_ref[...],
                            preferred_element_type=jnp.float32)

    @pl.when(g == pl.num_programs(0) - 1)
    def _finalize():
        lin = jnp.maximum(acc_ref[...] + bl_ref[...], 0.0)     # linear bias + ReLU
        # BatchNorm1d, training mode: per-feature stats over the batch.
        m1 = jnp.mean(lin, axis=0, keepdims=True)
        lc = lin - m1
        v1 = jnp.mean(lc * lc, axis=0, keepdims=True)
        lin = lc * jax.lax.rsqrt(v1 + BN_EPS)
        lin = lin * g1_ref[...] + b1_ref[...]
        # scores[b] = sigmoid(<lin[b], embed_e2[b]>)
        s = jnp.sum(lin * e2_ref[...], axis=1, keepdims=True)  # (B, 1)
        out_ref[...] = 1.0 / (1.0 + jnp.exp(-s))


def conve_forward(params, e1, r, e2, weight_dtype=jnp.bfloat16):
    """ConvE forward.  Glue does embedding gather, im2col and weight re-layout only."""
    B = e1.shape[0]
    emb_e1 = params["embed_e"][e1].astype(jnp.float32)            # (B, 200)
    emb_r = params["embed_r"][r].astype(jnp.float32)              # (B, 200)
    emb_e2 = params["embed_e"][e2].astype(jnp.float32)            # (B, 200)

    # conv_input: cat([e1.view(-1,W,H), r.view(-1,W,H)], dim=1) -> (B, 2W, H)
    img = jnp.concatenate(
        [emb_e1.reshape(B, E_W, E_H), emb_r.reshape(B, E_W, E_H)], axis=1)  # (B,20,20)

    # im2col (pure data movement): patches[k, b, i*OW + j] = img[b, i+dh, j+dw]
    pats = []
    for dh in range(KS):
        for dw in range(KS):
            pats.append(img[:, dh:dh + OH, dw:dw + OW].reshape(B, P))
    patches = jnp.stack(pats, axis=0).astype(jnp.float32)         # (9, B, 324)

    wc = params["conv_w"].reshape(CONV_C, KS * KS).astype(jnp.float32)   # (32, 9)
    bc = params["conv_b"].astype(jnp.float32)                            # (32,)

    # PyTorch Linear weight is (F, C*P) over the NCHW flatten -> (C, P, F) blocks.
    wl_cpf = (params["lin_w"].reshape(EMB, CONV_C, P)
              .transpose(1, 2, 0).astype(jnp.float32))                   # (32, 324, 200)
    # Fold BN2d affine: y = g2*â + b2  =>  wl' = g2*wl,  bl' = bl + sum_c b2_c * sum_p wl[c,p,:]
    bl_fold = (params["lin_b"].astype(jnp.float32)
               + jnp.einsum("c,cpf->f", params["bn2_b"].astype(jnp.float32), wl_cpf))
    wl_scaled = wl_cpf * params["bn2_g"].astype(jnp.float32)[:, None, None]
    # Zero-pad each channel's 324 rows to 384 (lane aligned) and group 8 channels per block.
    wl_pad = jnp.pad(wl_scaled, ((0, 0), (0, P_PAD - P), (0, 0)))        # (32, 384, 200)
    wl_blocks = wl_pad.reshape(NG, KG, EMB).astype(weight_dtype)         # (4, 3072, 200)

    bl = bl_fold.reshape(1, EMB)
    g1 = params["bn1_g"].reshape(1, EMB).astype(jnp.float32)
    b1 = params["bn1_b"].reshape(1, EMB).astype(jnp.float32)

    smem = pl.BlockSpec(memory_space=pltpu.MemorySpace.SMEM)

    w_bytes = NG * KG * EMB * jnp.dtype(weight_dtype).itemsize
    cost = pl.CostEstimate(
        flops=2 * B * NG * KG * EMB + 2 * B * CONV_C * P * KS * KS + 8 * B * FLAT,
        transcendentals=CONV_C + EMB + B,
        bytes_accessed=int(w_bytes + patches.size * 4 + (B + 3) * EMB * 4
                           + B * 4 + CONV_C * 40),
    )

    scores = pl.pallas_call(
        conve_kernel,
        out_shape=jax.ShapeDtypeStruct((B, 1), jnp.float32),
        grid=(NG,),
        in_specs=[
            pl.BlockSpec((KS * KS, B, P), lambda g: (0, 0, 0)),   # patches (resident)
            smem,                                                  # wc
            smem,                                                  # bc
            pl.BlockSpec((None, KG, EMB), lambda g: (g, 0, 0)),    # wl group block (pipelined)
            pl.BlockSpec((1, EMB), lambda g: (0, 0)),              # bl'
            pl.BlockSpec((1, EMB), lambda g: (0, 0)),              # bn1 gamma
            pl.BlockSpec((1, EMB), lambda g: (0, 0)),              # bn1 beta
            pl.BlockSpec((B, EMB), lambda g: (0, 0)),              # e2 embeddings
        ],
        out_specs=pl.BlockSpec((B, 1), lambda g: (0, 0)),
        scratch_shapes=[pltpu.VMEM((B, EMB), jnp.float32),         # linear accumulator
                        pltpu.VMEM((B, KG), jnp.float32)],         # group activation
        compiler_params=pltpu.CompilerParams(dimension_semantics=("arbitrary",)),
        cost_estimate=cost,
    )(patches, wc, bc, wl_blocks, bl, g1, b1, emb_e2)

    # TODO(synk): for v7x, a second "parallel" grid axis (e.g. split EMB) could feed the
    # second TensorCore; omitted here since the kernel is HBM-bound and B is tiny.
    return scores[:, 0]                                            # == torch .squeeze()


def reference_forward(params, e1, r, e2):
    """Plain-JAX/XLA reference mirroring the PyTorch module exactly (training-mode BN)."""
    hi = jax.lax.Precision.HIGHEST
    B = e1.shape[0]
    emb_e1 = params["embed_e"][e1]
    emb_r = params["embed_r"][r]
    emb_e2 = params["embed_e"][e2]
    x = jnp.concatenate([emb_e1.reshape(B, E_W, E_H), emb_r.reshape(B, E_W, E_H)], axis=1)
    x = x[:, None, :, :]                                           # NCHW (B,1,20,20)
    conv = jax.lax.conv_general_dilated(
        x, params["conv_w"], window_strides=(1, 1), padding="VALID",
        dimension_numbers=("NCHW", "OIHW", "NCHW"), precision=hi)
    conv = conv + params["conv_b"][None, :, None, None]
    conv = jnp.maximum(conv, 0.0)
    m2 = jnp.mean(conv, axis=(0, 2, 3), keepdims=True)
    v2 = jnp.mean((conv - m2) ** 2, axis=(0, 2, 3), keepdims=True)
    conv = (conv - m2) / jnp.sqrt(v2 + BN_EPS)
    conv = conv * params["bn2_g"][None, :, None, None] + params["bn2_b"][None, :, None, None]
    flat = conv.reshape(B, -1)
    lin = jnp.dot(flat, params["lin_w"].T, precision=hi) + params["lin_b"]
    lin = jnp.maximum(lin, 0.0)
    m1 = jnp.mean(lin, axis=0, keepdims=True)
    v1 = jnp.mean((lin - m1) ** 2, axis=0, keepdims=True)
    lin = (lin - m1) / jnp.sqrt(v1 + BN_EPS)
    lin = lin * params["bn1_g"][None, :] + params["bn1_b"][None, :]
    s = jnp.sum(lin * emb_e2, axis=1)
    return 1.0 / (1.0 + jnp.exp(-s))


if __name__ == "__main__":
    key = jax.random.PRNGKey(0)
    NUM_E, NUM_R, B = 32, 12, 8
    ks = jax.random.split(key, 13)
    params = {
        "embed_e": jax.random.normal(ks[0], (NUM_E, EMB), jnp.float32),
        "embed_r": jax.random.normal(ks[1], (NUM_R, EMB), jnp.float32),
        "conv_w": jax.random.normal(ks[2], (CONV_C, 1, KS, KS), jnp.float32) * 0.1,
        "conv_b": jax.random.normal(ks[3], (CONV_C,), jnp.float32) * 0.1,
        "lin_w": jax.random.normal(ks[4], (EMB, FLAT), jnp.float32) * 0.02,
        "lin_b": jax.random.normal(ks[5], (EMB,), jnp.float32) * 0.1,
        # Non-trivial BN affines to exercise the glue-time gamma/beta folding.
        "bn2_g": 1.0 + 0.1 * jax.random.normal(ks[6], (CONV_C,), jnp.float32),
        "bn2_b": 0.1 * jax.random.normal(ks[7], (CONV_C,), jnp.float32),
        "bn1_g": 1.0 + 0.1 * jax.random.normal(ks[8], (EMB,), jnp.float32),
        "bn1_b": 0.1 * jax.random.normal(ks[9], (EMB,), jnp.float32),
    }
    e1 = jax.random.randint(ks[10], (B,), 0, NUM_E, dtype=jnp.int32)
    r = jax.random.randint(ks[11], (B,), 0, NUM_R, dtype=jnp.int32)
    e2 = jax.random.randint(ks[12], (B,), 0, NUM_E, dtype=jnp.int32)

    fwd = jax.jit(conve_forward, static_argnames="weight_dtype")

    # Fast path: bf16 weight streaming (halves the HBM traffic the kernel is bound on).
    scores_bf16 = jax.block_until_ready(fwd(params, e1, r, e2, weight_dtype=jnp.bfloat16))
    # f32 path for a tight numerical check of the kernel math itself.
    scores_f32 = jax.block_until_ready(fwd(params, e1, r, e2, weight_dtype=jnp.float32))

    ref = reference_forward(params, e1, r, e2)
    err_f32 = float(jnp.max(jnp.abs(scores_f32 - ref)))
    err_bf16 = float(jnp.max(jnp.abs(scores_bf16 - ref)))

    assert scores_bf16.shape == (B,), scores_bf16.shape
    assert err_f32 < 5e-3, f"f32-weight kernel vs reference: max abs err {err_f32}"
    # bf16 weight error is amplified by BN1d's 1/std normalization; 5e-2 post-sigmoid
    # is the documented tolerance for the bf16 trade-off.
    assert err_bf16 < 5e-2, f"bf16-weight kernel vs reference: max abs err {err_bf16}"
    print("KERNEL_OK")
</pallas_src>

<mosaic_0001>
module attributes {stable_mosaic.version = 11 : i64} {
  func.func @conve_kernel(%arg0: i32, %arg1: memref<9x8x324xf32, #tpu.memory_space<vmem>>, %arg2: memref<32x9xf32, #tpu.memory_space<smem>>, %arg3: memref<32xf32, #tpu.memory_space<smem>>, %arg4: memref<1x3072x200xbf16, #tpu.memory_space<vmem>>, %arg5: memref<1x200xf32, #tpu.memory_space<vmem>>, %arg6: memref<1x200xf32, #tpu.memory_space<vmem>>, %arg7: memref<1x200xf32, #tpu.memory_space<vmem>>, %arg8: memref<8x200xf32, #tpu.memory_space<vmem>>, %arg9: memref<8x1xf32, #tpu.memory_space<vmem>>, %arg10: memref<8x200xf32, #tpu.memory_space<vmem>>, %arg11: memref<8x3072xf32, #tpu.memory_space<vmem>>) attributes {dimension_semantics = [#tpu.dimension_semantics<arbitrary>], iteration_bounds = array<i64: 4>, scalar_prefetch = 0 : i64, scratch_operands = 2 : i64, tpu.core_type = #tpu.core_type<tc>, window_params = [{pipeline_mode = #tpu.pipeline_mode<synchronous>, transform_indices = @transform_0, window_bounds = array<i64: 9, 8, 324>}, {transform_indices = @transform_1, window_bounds = array<i64: 32, 9>}, {transform_indices = @transform_2, window_bounds = array<i64: 32>}, {transform_indices = @transform_3, window_bounds = array<i64: 1, 3072, 200>}, {pipeline_mode = #tpu.pipeline_mode<synchronous>, transform_indices = @transform_4, window_bounds = array<i64: 1, 200>}, {pipeline_mode = #tpu.pipeline_mode<synchronous>, transform_indices = @transform_5, window_bounds = array<i64: 1, 200>}, {pipeline_mode = #tpu.pipeline_mode<synchronous>, transform_indices = @transform_6, window_bounds = array<i64: 1, 200>}, {pipeline_mode = #tpu.pipeline_mode<synchronous>, transform_indices = @transform_7, window_bounds = array<i64: 8, 200>}, {pipeline_mode = #tpu.pipeline_mode<synchronous>, transform_indices = @transform_8, window_bounds = array<i64: 8, 1>}]} {
    %c0_i32 = arith.constant 0 : i32
    %0 = arith.cmpi eq, %arg0, %c0_i32 : i32
    %1 = arith.extui %0 : i1 to i32
    %c0_i32_0 = arith.constant 0 : i32
    %2 = arith.cmpi ne, %1, %c0_i32_0 : i32
    scf.if %2 {
      %cst_167 = arith.constant 0.000000e+00 : f32
      %632 = vector.broadcast %cst_167 : f32 to vector<8x200xf32>
      %c0_168 = arith.constant 0 : index
      %c0_169 = arith.constant 0 : index
      %633 = vector.load %arg10[%c0_168, %c0_169] : memref<8x200xf32, #tpu.memory_space<vmem>>, vector<8x200xf32>
      tpu.vector_store %arg10[%c0_168, %c0_169], %632 {strides = array<i32>} : memref<8x200xf32, #tpu.memory_space<vmem>>, vector<8x200xf32>,
      %cst_170 = arith.constant 0.000000e+00 : f32
      %634 = vector.broadcast %cst_170 : f32 to vector<8x3072xf32>
      %c0_171 = arith.constant 0 : index
      %c0_172 = arith.constant 0 : index
      %635 = vector.load %arg11[%c0_171, %c0_172] : memref<8x3072xf32, #tpu.memory_space<vmem>>, vector<8x3072xf32>
      tpu.vector_store %arg11[%c0_171, %c0_172], %634 {strides = array<i32>} : memref<8x3072xf32, #tpu.memory_space<vmem>>, vector<8x3072xf32>,
    } else {
    }
    %c0 = arith.constant 0 : index
    %c0_1 = arith.constant 0 : index
    %c0_2 = arith.constant 0 : index
    %3 = vector.load %arg1[%c0, %c0_1, %c0_2] : memref<9x8x324xf32, #tpu.memory_space<vmem>>, vector<1x8x324xf32>
    %4 = vector.shape_cast %3 : vector<1x8x324xf32> to vector<8x324xf32>
    %c1 = arith.constant 1 : index
    %c0_3 = arith.constant 0 : index
    %c0_4 = arith.constant 0 : index
    %5 = vector.load %arg1[%c1, %c0_3, %c0_4] : memref<9x8x324xf32, #tpu.memory_space<vmem>>, vector<1x8x324xf32>
    %6 = vector.shape_cast %5 : vector<1x8x324xf32> to vector<8x324xf32>
    %c2 = arith.constant 2 : index
    %c0_5 = arith.constant 0 : index
    %c0_6 = arith.constant 0 : index
    %7 = vector.load %arg1[%c2, %c0_5, %c0_6] : memref<9x8x324xf32, #tpu.memory_space<vmem>>, vector<1x8x324xf32>
    %8 = vector.shape_cast %7 : vector<1x8x324xf32> to vector<8x324xf32>
    %c3 = arith.constant 3 : index
    %c0_7 = arith.constant 0 : index
    %c0_8 = arith.constant 0 : index
    %9 = vector.load %arg1[%c3, %c0_7, %c0_8] : memref<9x8x324xf32, #tpu.memory_space<vmem>>, vector<1x8x324xf32>
    %10 = vector.shape_cast %9 : vector<1x8x324xf32> to vector<8x324xf32>
    %c4 = arith.constant 4 : index
    %c0_9 = arith.constant 0 : index
    %c0_10 = arith.constant 0 : index
    %11 = vector.load %arg1[%c4, %c0_9, %c0_10] : memref<9x8x324xf32, #tpu.memory_space<vmem>>, vector<1x8x324xf32>
    %12 = vector.shape_cast %11 : vector<1x8x324xf32> to vector<8x324xf32>
    %c5 = arith.constant 5 : index
    %c0_11 = arith.constant 0 : index
    %c0_12 = arith.constant 0 : index
    %13 = vector.load %arg1[%c5, %c0_11, %c0_12] : memref<9x8x324xf32, #tpu.memory_space<vmem>>, vector<1x8x324xf32>
    %14 = vector.shape_cast %13 : vector<1x8x324xf32> to vector<8x324xf32>
    %c6 = arith.constant 6 : index
    %c0_13 = arith.constant 0 : index
    %c0_14 = arith.constant 0 : index
    %15 = vector.load %arg1[%c6, %c0_13, %c0_14] : memref<9x8x324xf32, #tpu.memory_space<vmem>>, vector<1x8x324xf32>
    %16 = vector.shape_cast %15 : vector<1x8x324xf32> to vector<8x324xf32>
    %c7 = arith.constant 7 : index
    %c0_15 = arith.constant 0 : index
    %c0_16 = arith.constant 0 : index
    %17 = vector.load %arg1[%c7, %c0_15, %c0_16] : memref<9x8x324xf32, #tpu.memory_space<vmem>>, vector<1x8x324xf32>
    %18 = vector.shape_cast %17 : vector<1x8x324xf32> to vector<8x324xf32>
    %c8 = arith.constant 8 : index
    %c0_17 = arith.constant 0 : index
    %c0_18 = arith.constant 0 : index
    %19 = vector.load %arg1[%c8, %c0_17, %c0_18] : memref<9x8x324xf32, #tpu.memory_space<vmem>>, vector<1x8x324xf32>
    %20 = vector.shape_cast %19 : vector<1x8x324xf32> to vector<8x324xf32>
    %c8_i32 = arith.constant 8 : i32
    %21 = arith.muli %arg0, %c8_i32 : i32
    %c0_i32_19 = arith.constant 0 : i32
    %22 = arith.addi %21, %c0_i32_19 : i32
    %23 = arith.index_cast %22 : i32 to index
    %c0_20 = arith.constant 0 : index
    %24 = memref.load %arg2[%23, %c0_20] : memref<32x9xf32, #tpu.memory_space<smem>>
    %25 = vector.broadcast %24 : f32 to vector<8x324xf32>
    %26 = arith.mulf %25, %4 : vector<8x324xf32>
    %27 = arith.index_cast %22 : i32 to index
    %c1_21 = arith.constant 1 : index
    %28 = memref.load %arg2[%27, %c1_21] : memref<32x9xf32, #tpu.memory_space<smem>>
    %29 = vector.broadcast %28 : f32 to vector<8x324xf32>
    %30 = arith.mulf %29, %6 : vector<8x324xf32>
    %31 = arith.addf %26, %30 : vector<8x324xf32>
    %32 = arith.index_cast %22 : i32 to index
    %c2_22 = arith.constant 2 : index
    %33 = memref.load %arg2[%32, %c2_22] : memref<32x9xf32, #tpu.memory_space<smem>>
    %34 = vector.broadcast %33 : f32 to vector<8x324xf32>
    %35 = arith.mulf %34, %8 : vector<8x324xf32>
    %36 = arith.addf %31, %35 : vector<8x324xf32>
    %37 = arith.index_cast %22 : i32 to index
    %c3_23 = arith.constant 3 : index
    %38 = memref.load %arg2[%37, %c3_23] : memref<32x9xf32, #tpu.memory_space<smem>>
    %39 = vector.broadcast %38 : f32 to vector<8x324xf32>
    %40 = arith.mulf %39, %10 : vector<8x324xf32>
    %41 = arith.addf %36, %40 : vector<8x324xf32>
    %42 = arith.index_cast %22 : i32 to index
    %c4_24 = arith.constant 4 : index
    %43 = memref.load %arg2[%42, %c4_24] : memref<32x9xf32, #tpu.memory_space<smem>>
    %44 = vector.broadcast %43 : f32 to vector<8x324xf32>
    %45 = arith.mulf %44, %12 : vector<8x324xf32>
    %46 = arith.addf %41, %45 : vector<8x324xf32>
    %47 = arith.index_cast %22 : i32 to index
    %c5_25 = arith.constant 5 : index
    %48 = memref.load %arg2[%47, %c5_25] : memref<32x9xf32, #tpu.memory_space<smem>>
    %49 = vector.broadcast %48 : f32 to vector<8x324xf32>
    %50 = arith.mulf %49, %14 : vector<8x324xf32>
    %51 = arith.addf %46, %50 : vector<8x324xf32>
    %52 = arith.index_cast %22 : i32 to index
    %c6_26 = arith.constant 6 : index
    %53 = memref.load %arg2[%52, %c6_26] : memref<32x9xf32, #tpu.memory_space<smem>>
    %54 = vector.broadcast %53 : f32 to vector<8x324xf32>
    %55 = arith.mulf %54, %16 : vector<8x324xf32>
    %56 = arith.addf %51, %55 : vector<8x324xf32>
    %57 = arith.index_cast %22 : i32 to index
    %c7_27 = arith.constant 7 : index
    %58 = memref.load %arg2[%57, %c7_27] : memref<32x9xf32, #tpu.memory_space<smem>>
    %59 = vector.broadcast %58 : f32 to vector<8x324xf32>
    %60 = arith.mulf %59, %18 : vector<8x324xf32>
    %61 = arith.addf %56, %60 : vector<8x324xf32>
    %62 = arith.index_cast %22 : i32 to index
    %c8_28 = arith.constant 8 : index
    %63 = memref.load %arg2[%62, %c8_28] : memref<32x9xf32, #tpu.memory_space<smem>>
    %64 = vector.broadcast %63 : f32 to vector<8x324xf32>
    %65 = arith.mulf %64, %20 : vector<8x324xf32>
    %66 = arith.addf %61, %65 : vector<8x324xf32>
    %67 = arith.index_cast %22 : i32 to index
    %68 = memref.load %arg3[%67] : memref<32xf32, #tpu.memory_space<smem>>
    %69 = vector.broadcast %68 : f32 to vector<8x324xf32>
    %70 = arith.addf %66, %69 : vector<8x324xf32>
    %cst = arith.constant 0.000000e+00 : f32
    %71 = vector.broadcast %cst : f32 to vector<8x324xf32>
    %72 = arith.maximumf %70, %71 : vector<8x324xf32>
    %73 = vector.shape_cast %72 : vector<8x324xf32> to vector<1x8x324xf32>
    %cst_29 = arith.constant dense<0.000000e+00> : vector<1xf32>
    %74 = vector.multi_reduction <add>, %73, %cst_29 [1, 2] : vector<1x8x324xf32> to vector<1xf32>
    %75 = vector.shape_cast %74 : vector<1xf32> to vector<1x1x1xf32>
    %76 = vector.extract %75[0, 0, 0] : f32 from vector<1x1x1xf32>
    %77 = vector.broadcast %76 : f32 to vector<1x1xf32>
    %cst_30 = arith.constant 2.592000e+03 : f32
    %78 = vector.broadcast %cst_30 : f32 to vector<1x1xf32>
    %79 = arith.divf %77, %78 : vector<1x1xf32>
    %80 = vector.broadcast %79 : vector<1x1xf32> to vector<8x324xf32>
    %81 = arith.subf %72, %80 : vector<8x324xf32>
    %82 = arith.mulf %81, %81 : vector<8x324xf32>
    %83 = vector.shape_cast %82 : vector<8x324xf32> to vector<1x8x324xf32>
    %cst_31 = arith.constant dense<0.000000e+00> : vector<1xf32>
    %84 = vector.multi_reduction <add>, %83, %cst_31 [1, 2] : vector<1x8x324xf32> to vector<1xf32>
    %85 = vector.shape_cast %84 : vector<1xf32> to vector<1x1x1xf32>
    %86 = vector.extract %85[0, 0, 0] : f32 from vector<1x1x1xf32>
    %87 = vector.broadcast %86 : f32 to vector<1x1xf32>
    %cst_32 = arith.constant 2.592000e+03 : f32
    %88 = vector.broadcast %cst_32 : f32 to vector<1x1xf32>
    %89 = arith.divf %87, %88 : vector<1x1xf32>
    %cst_33 = arith.constant 9.99999974E-6 : f32
    %90 = vector.broadcast %cst_33 : f32 to vector<1x1xf32>
    %91 = arith.addf %89, %90 : vector<1x1xf32>
    %92 = math.rsqrt %91 : vector<1x1xf32>
    %93 = vector.broadcast %92 : vector<1x1xf32> to vector<8x324xf32>
    %94 = arith.mulf %81, %93 : vector<8x324xf32>
    %c0_34 = arith.constant 0 : index
    %c0_35 = arith.constant 0 : index
    %95 = vector.load %arg11[%c0_34, %c0_35] : memref<8x3072xf32, #tpu.memory_space<vmem>>, vector<8x324xf32>
    tpu.vector_store %arg11[%c0_34, %c0_35], %94 {strides = array<i32>} : memref<8x3072xf32, #tpu.memory_space<vmem>>, vector<8x324xf32>,
    %c8_i32_36 = arith.constant 8 : i32
    %96 = arith.muli %arg0, %c8_i32_36 : i32
    %c1_i32 = arith.constant 1 : i32
    %97 = arith.addi %96, %c1_i32 : i32
    %98 = arith.index_cast %97 : i32 to index
    %c0_37 = arith.constant 0 : index
    %99 = memref.load %arg2[%98, %c0_37] : memref<32x9xf32, #tpu.memory_space<smem>>
    %100 = vector.broadcast %99 : f32 to vector<8x324xf32>
    %101 = arith.mulf %100, %4 : vector<8x324xf32>
    %102 = arith.index_cast %97 : i32 to index
    %c1_38 = arith.constant 1 : index
    %103 = memref.load %arg2[%102, %c1_38] : memref<32x9xf32, #tpu.memory_space<smem>>
    %104 = vector.broadcast %103 : f32 to vector<8x324xf32>
    %105 = arith.mulf %104, %6 : vector<8x324xf32>
    %106 = arith.addf %101, %105 : vector<8x324xf32>
    %107 = arith.index_cast %97 : i32 to index
    %c2_39 = arith.constant 2 : index
    %108 = memref.load %arg2[%107, %c2_39] : memref<32x9xf32, #tpu.memory_space<smem>>
    %109 = vector.broadcast %108 : f32 to vector<8x324xf32>
    %110 = arith.mulf %109, %8 : vector<8x324xf32>
    %111 = arith.addf %106, %110 : vector<8x324xf32>
    %112 = arith.index_cast %97 : i32 to index
    %c3_40 = arith.constant 3 : index
    %113 = memref.load %arg2[%112, %c3_40] : memref<32x9xf32, #tpu.memory_space<smem>>
    %114 = vector.broadcast %113 : f32 to vector<8x324xf32>
    %115 = arith.mulf %114, %10 : vector<8x324xf32>
    %116 = arith.addf %111, %115 : vector<8x324xf32>
    %117 = arith.index_cast %97 : i32 to index
    %c4_41 = arith.constant 4 : index
    %118 = memref.load %arg2[%117, %c4_41] : memref<32x9xf32, #tpu.memory_space<smem>>
    %119 = vector.broadcast %118 : f32 to vector<8x324xf32>
    %120 = arith.mulf %119, %12 : vector<8x324xf32>
    %121 = arith.addf %116, %120 : vector<8x324xf32>
    %122 = arith.index_cast %97 : i32 to index
    %c5_42 = arith.constant 5 : index
    %123 = memref.load %arg2[%122, %c5_42] : memref<32x9xf32, #tpu.memory_space<smem>>
    %124 = vector.broadcast %123 : f32 to vector<8x324xf32>
    %125 = arith.mulf %124, %14 : vector<8x324xf32>
    %126 = arith.addf %121, %125 : vector<8x324xf32>
    %127 = arith.index_cast %97 : i32 to index
    %c6_43 = arith.constant 6 : index
    %128 = memref.load %arg2[%127, %c6_43] : memref<32x9xf32, #tpu.memory_space<smem>>
    %129 = vector.broadcast %128 : f32 to vector<8x324xf32>
    %130 = arith.mulf %129, %16 : vector<8x324xf32>
    %131 = arith.addf %126, %130 : vector<8x324xf32>
    %132 = arith.index_cast %97 : i32 to index
    %c7_44 = arith.constant 7 : index
    %133 = memref.load %arg2[%132, %c7_44] : memref<32x9xf32, #tpu.memory_space<smem>>
    %134 = vector.broadcast %133 : f32 to vector<8x324xf32>
    %135 = arith.mulf %134, %18 : vector<8x324xf32>
    %136 = arith.addf %131, %135 : vector<8x324xf32>
    %137 = arith.index_cast %97 : i32 to index
    %c8_45 = arith.constant 8 : index
    %138 = memref.load %arg2[%137, %c8_45] : memref<32x9xf32, #tpu.memory_space<smem>>
    %139 = vector.broadcast %138 : f32 to vector<8x324xf32>
    %140 = arith.mulf %139, %20 : vector<8x324xf32>
    %141 = arith.addf %136, %140 : vector<8x324xf32>
    %142 = arith.index_cast %97 : i32 to index
    %143 = memref.load %arg3[%142] : memref<32xf32, #tpu.memory_space<smem>>
    %144 = vector.broadcast %143 : f32 to vector<8x324xf32>
    %145 = arith.addf %141, %144 : vector<8x324xf32>
    %cst_46 = arith.constant 0.000000e+00 : f32
    %146 = vector.broadcast %cst_46 : f32 to vector<8x324xf32>
    %147 = arith.maximumf %145, %146 : vector<8x324xf32>
    %148 = vector.shape_cast %147 : vector<8x324xf32> to vector<1x8x324xf32>
    %cst_47 = arith.constant dense<0.000000e+00> : vector<1xf32>
    %149 = vector.multi_reduction <add>, %148, %cst_47 [1, 2] : vector<1x8x324xf32> to vector<1xf32>
    %150 = vector.shape_cast %149 : vector<1xf32> to vector<1x1x1xf32>
    %151 = vector.extract %150[0, 0, 0] : f32 from vector<1x1x1xf32>
    %152 = vector.broadcast %151 : f32 to vector<1x1xf32>
    %cst_48 = arith.constant 2.592000e+03 : f32
    %153 = vector.broadcast %cst_48 : f32 to vector<1x1xf32>
    %154 = arith.divf %152, %153 : vector<1x1xf32>
    %155 = vector.broadcast %154 : vector<1x1xf32> to vector<8x324xf32>
    %156 = arith.subf %147, %155 : vector<8x324xf32>
    %157 = arith.mulf %156, %156 : vector<8x324xf32>
    %158 = vector.shape_cast %157 : vector<8x324xf32> to vector<1x8x324xf32>
    %cst_49 = arith.constant dense<0.000000e+00> : vector<1xf32>
    %159 = vector.multi_reduction <add>, %158, %cst_49 [1, 2] : vector<1x8x324xf32> to vector<1xf32>
    %160 = vector.shape_cast %159 : vector<1xf32> to vector<1x1x1xf32>
    %161 = vector.extract %160[0, 0, 0] : f32 from vector<1x1x1xf32>
    %162 = vector.broadcast %161 : f32 to vector<1x1xf32>
    %cst_50 = arith.constant 2.592000e+03 : f32
    %163 = vector.broadcast %cst_50 : f32 to vector<1x1xf32>
    %164 = arith.divf %162, %163 : vector<1x1xf32>
    %cst_51 = arith.constant 9.99999974E-6 : f32
    %165 = vector.broadcast %cst_51 : f32 to vector<1x1xf32>
    %166 = arith.addf %164, %165 : vector<1x1xf32>
    %167 = math.rsqrt %166 : vector<1x1xf32>
    %168 = vector.broadcast %167 : vector<1x1xf32> to vector<8x324xf32>
    %169 = arith.mulf %156, %168 : vector<8x324xf32>
    %c0_52 = arith.constant 0 : index
    %c384 = arith.constant 384 : index
    %170 = vector.load %arg11[%c0_52, %c384] : memref<8x3072xf32, #tpu.memory_space<vmem>>, vector<8x324xf32>
    tpu.vector_store %arg11[%c0_52, %c384], %169 {strides = array<i32>} : memref<8x3072xf32, #tpu.memory_space<vmem>>, vector<8x324xf32>,
    %c8_i32_53 = arith.constant 8 : i32
    %171 = arith.muli %arg0, %c8_i32_53 : i32
    %c2_i32 = arith.constant 2 : i32
    %172 = arith.addi %171, %c2_i32 : i32
    %173 = arith.index_cast %172 : i32 to index
    %c0_54 = arith.constant 0 : index
    %174 = memref.load %arg2[%173, %c0_54] : memref<32x9xf32, #tpu.memory_space<smem>>
    %175 = vector.broadcast %174 : f32 to vector<8x324xf32>
    %176 = arith.mulf %175, %4 : vector<8x324xf32>
    %177 = arith.index_cast %172 : i32 to index
    %c1_55 = arith.constant 1 : index
    %178 = memref.load %arg2[%177, %c1_55] : memref<32x9xf32, #tpu.memory_space<smem>>
    %179 = vector.broadcast %178 : f32 to vector<8x324xf32>
    %180 = arith.mulf %179, %6 : vector<8x324xf32>
    %181 = arith.addf %176, %180 : vector<8x324xf32>
    %182 = arith.index_cast %172 : i32 to index
    %c2_56 = arith.constant 2 : index
    %183 = memref.load %arg2[%182, %c2_56] : memref<32x9xf32, #tpu.memory_space<smem>>
    %184 = vector.broadcast %183 : f32 to vector<8x324xf32>
    %185 = arith.mulf %184, %8 : vector<8x324xf32>
    %186 = arith.addf %181, %185 : vector<8x324xf32>
    %187 = arith.index_cast %172 : i32 to index
    %c3_57 = arith.constant 3 : index
    %188 = memref.load %arg2[%187, %c3_57] : memref<32x9xf32, #tpu.memory_space<smem>>
    %189 = vector.broadcast %188 : f32 to vector<8x324xf32>
    %190 = arith.mulf %189, %10 : vector<8x324xf32>
    %191 = arith.addf %186, %190 : vector<8x324xf32>
    %192 = arith.index_cast %172 : i32 to index
    %c4_58 = arith.constant 4 : index
    %193 = memref.load %arg2[%192, %c4_58] : memref<32x9xf32, #tpu.memory_space<smem>>
    %194 = vector.broadcast %193 : f32 to vector<8x324xf32>
    %195 = arith.mulf %194, %12 : vector<8x324xf32>
    %196 = arith.addf %191, %195 : vector<8x324xf32>
    %197 = arith.index_cast %172 : i32 to index
    %c5_59 = arith.constant 5 : index
    %198 = memref.load %arg2[%197, %c5_59] : memref<32x9xf32, #tpu.memory_space<smem>>
    %199 = vector.broadcast %198 : f32 to vector<8x324xf32>
    %200 = arith.mulf %199, %14 : vector<8x324xf32>
    %201 = arith.addf %196, %200 : vector<8x324xf32>
    %202 = arith.index_cast %172 : i32 to index
    %c6_60 = arith.constant 6 : index
    %203 = memref.load %arg2[%202, %c6_60] : memref<32x9xf32, #tpu.memory_space<smem>>
    %204 = vector.broadcast %203 : f32 to vector<8x324xf32>
    %205 = arith.mulf %204, %16 : vector<8x324xf32>
    %206 = arith.addf %201, %205 : vector<8x324xf32>
    %207 = arith.index_cast %172 : i32 to index
    %c7_61 = arith.constant 7 : index
    %208 = memref.load %arg2[%207, %c7_61] : memref<32x9xf32, #tpu.memory_space<smem>>
    %209 = vector.broadcast %208 : f32 to vector<8x324xf32>
    %210 = arith.mulf %209, %18 : vector<8x324xf32>
    %211 = arith.addf %206, %210 : vector<8x324xf32>
    %212 = arith.index_cast %172 : i32 to index
    %c8_62 = arith.constant 8 : index
    %213 = memref.load %arg2[%212, %c8_62] : memref<32x9xf32, #tpu.memory_space<smem>>
    %214 = vector.broadcast %213 : f32 to vector<8x324xf32>
    %215 = arith.mulf %214, %20 : vector<8x324xf32>
    %216 = arith.addf %211, %215 : vector<8x324xf32>
    %217 = arith.index_cast %172 : i32 to index
    %218 = memref.load %arg3[%217] : memref<32xf32, #tpu.memory_space<smem>>
    %219 = vector.broadcast %218 : f32 to vector<8x324xf32>
    %220 = arith.addf %216, %219 : vector<8x324xf32>
    %cst_63 = arith.constant 0.000000e+00 : f32
    %221 = vector.broadcast %cst_63 : f32 to vector<8x324xf32>
    %222 = arith.maximumf %220, %221 : vector<8x324xf32>
    %223 = vector.shape_cast %222 : vector<8x324xf32> to vector<1x8x324xf32>
    %cst_64 = arith.constant dense<0.000000e+00> : vector<1xf32>
    %224 = vector.multi_reduction <add>, %223, %cst_64 [1, 2] : vector<1x8x324xf32> to vector<1xf32>
    %225 = vector.shape_cast %224 : vector<1xf32> to vector<1x1x1xf32>
    %226 = vector.extract %225[0, 0, 0] : f32 from vector<1x1x1xf32>
    %227 = vector.broadcast %226 : f32 to vector<1x1xf32>
    %cst_65 = arith.constant 2.592000e+03 : f32
    %228 = vector.broadcast %cst_65 : f32 to vector<1x1xf32>
    %229 = arith.divf %227, %228 : vector<1x1xf32>
    %230 = vector.broadcast %229 : vector<1x1xf32> to vector<8x324xf32>
    %231 = arith.subf %222, %230 : vector<8x324xf32>
    %232 = arith.mulf %231, %231 : vector<8x324xf32>
    %233 = vector.shape_cast %232 : vector<8x324xf32> to vector<1x8x324xf32>
    %cst_66 = arith.constant dense<0.000000e+00> : vector<1xf32>
    %234 = vector.multi_reduction <add>, %233, %cst_66 [1, 2] : vector<1x8x324xf32> to vector<1xf32>
    %235 = vector.shape_cast %234 : vector<1xf32> to vector<1x1x1xf32>
    %236 = vector.extract %235[0, 0, 0] : f32 from vector<1x1x1xf32>
    %237 = vector.broadcast %236 : f32 to vector<1x1xf32>
    %cst_67 = arith.constant 2.592000e+03 : f32
    %238 = vector.broadcast %cst_67 : f32 to vector<1x1xf32>
    %239 = arith.divf %237, %238 : vector<1x1xf32>
    %cst_68 = arith.constant 9.99999974E-6 : f32
    %240 = vector.broadcast %cst_68 : f32 to vector<1x1xf32>
    %241 = arith.addf %239, %240 : vector<1x1xf32>
    %242 = math.rsqrt %241 : vector<1x1xf32>
    %243 = vector.broadcast %242 : vector<1x1xf32> to vector<8x324xf32>
    %244 = arith.mulf %231, %243 : vector<8x324xf32>
    %c0_69 = arith.constant 0 : index
    %c768 = arith.constant 768 : index
    %245 = vector.load %arg11[%c0_69, %c768] : memref<8x3072xf32, #tpu.memory_space<vmem>>, vector<8x324xf32>
    tpu.vector_store %arg11[%c0_69, %c768], %244 {strides = array<i32>} : memref<8x3072xf32, #tpu.memory_space<vmem>>, vector<8x324xf32>,
    %c8_i32_70 = arith.constant 8 : i32
    %246 = arith.muli %arg0, %c8_i32_70 : i32
    %c3_i32 = arith.constant 3 : i32
    %247 = arith.addi %246, %c3_i32 : i32
    %248 = arith.index_cast %247 : i32 to index
    %c0_71 = arith.constant 0 : index
    %249 = memref.load %arg2[%248, %c0_71] : memref<32x9xf32, #tpu.memory_space<smem>>
    %250 = vector.broadcast %249 : f32 to vector<8x324xf32>
    %251 = arith.mulf %250, %4 : vector<8x324xf32>
    %252 = arith.index_cast %247 : i32 to index
    %c1_72 = arith.constant 1 : index
    %253 = memref.load %arg2[%252, %c1_72] : memref<32x9xf32, #tpu.memory_space<smem>>
    %254 = vector.broadcast %253 : f32 to vector<8x324xf32>
    %255 = arith.mulf %254, %6 : vector<8x324xf32>
    %256 = arith.addf %251, %255 : vector<8x324xf32>
    %257 = arith.index_cast %247 : i32 to index
    %c2_73 = arith.constant 2 : index
    %258 = memref.load %arg2[%257, %c2_73] : memref<32x9xf32, #tpu.memory_space<smem>>
    %259 = vector.broadcast %258 : f32 to vector<8x324xf32>
    %260 = arith.mulf %259, %8 : vector<8x324xf32>
    %261 = arith.addf %256, %260 : vector<8x324xf32>
    %262 = arith.index_cast %247 : i32 to index
    %c3_74 = arith.constant 3 : index
    %263 = memref.load %arg2[%262, %c3_74] : memref<32x9xf32, #tpu.memory_space<smem>>
    %264 = vector.broadcast %263 : f32 to vector<8x324xf32>
    %265 = arith.mulf %264, %10 : vector<8x324xf32>
    %266 = arith.addf %261, %265 : vector<8x324xf32>
    %267 = arith.index_cast %247 : i32 to index
    %c4_75 = arith.constant 4 : index
    %268 = memref.load %arg2[%267, %c4_75] : memref<32x9xf32, #tpu.memory_space<smem>>
    %269 = vector.broadcast %268 : f32 to vector<8x324xf32>
    %270 = arith.mulf %269, %12 : vector<8x324xf32>
    %271 = arith.addf %266, %270 : vector<8x324xf32>
    %272 = arith.index_cast %247 : i32 to index
    %c5_76 = arith.constant 5 : index
    %273 = memref.load %arg2[%272, %c5_76] : memref<32x9xf32, #tpu.memory_space<smem>>
    %274 = vector.broadcast %273 : f32 to vector<8x324xf32>
    %275 = arith.mulf %274, %14 : vector<8x324xf32>
    %276 = arith.addf %271, %275 : vector<8x324xf32>
    %277 = arith.index_cast %247 : i32 to index
    %c6_77 = arith.constant 6 : index
    %278 = memref.load %arg2[%277, %c6_77] : memref<32x9xf32, #tpu.memory_space<smem>>
    %279 = vector.broadcast %278 : f32 to vector<8x324xf32>
    %280 = arith.mulf %279, %16 : vector<8x324xf32>
    %281 = arith.addf %276, %280 : vector<8x324xf32>
    %282 = arith.index_cast %247 : i32 to index
    %c7_78 = arith.constant 7 : index
    %283 = memref.load %arg2[%282, %c7_78] : memref<32x9xf32, #tpu.memory_space<smem>>
    %284 = vector.broadcast %283 : f32 to vector<8x324xf32>
    %285 = arith.mulf %284, %18 : vector<8x324xf32>
    %286 = arith.addf %281, %285 : vector<8x324xf32>
    %287 = arith.index_cast %247 : i32 to index
    %c8_79 = arith.constant 8 : index
    %288 = memref.load %arg2[%287, %c8_79] : memref<32x9xf32, #tpu.memory_space<smem>>
    %289 = vector.broadcast %288 : f32 to vector<8x324xf32>
    %290 = arith.mulf %289, %20 : vector<8x324xf32>
    %291 = arith.addf %286, %290 : vector<8x324xf32>
    %292 = arith.index_cast %247 : i32 to index
    %293 = memref.load %arg3[%292] : memref<32xf32, #tpu.memory_space<smem>>
    %294 = vector.broadcast %293 : f32 to vector<8x324xf32>
    %295 = arith.addf %291, %294 : vector<8x324xf32>
    %cst_80 = arith.constant 0.000000e+00 : f32
    %296 = vector.broadcast %cst_80 : f32 to vector<8x324xf32>
    %297 = arith.maximumf %295, %296 : vector<8x324xf32>
    %298 = vector.shape_cast %297 : vector<8x324xf32> to vector<1x8x324xf32>
    %cst_81 = arith.constant dense<0.000000e+00> : vector<1xf32>
    %299 = vector.multi_reduction <add>, %298, %cst_81 [1, 2] : vector<1x8x324xf32> to vector<1xf32>
    %300 = vector.shape_cast %299 : vector<1xf32> to vector<1x1x1xf32>
    %301 = vector.extract %300[0, 0, 0] : f32 from vector<1x1x1xf32>
    %302 = vector.broadcast %301 : f32 to vector<1x1xf32>
    %cst_82 = arith.constant 2.592000e+03 : f32
    %303 = vector.broadcast %cst_82 : f32 to vector<1x1xf32>
    %304 = arith.divf %302, %303 : vector<1x1xf32>
    %305 = vector.broadcast %304 : vector<1x1xf32> to vector<8x324xf32>
    %306 = arith.subf %297, %305 : vector<8x324xf32>
    %307 = arith.mulf %306, %306 : vector<8x324xf32>
    %308 = vector.shape_cast %307 : vector<8x324xf32> to vector<1x8x324xf32>
    %cst_83 = arith.constant dense<0.000000e+00> : vector<1xf32>
    %309 = vector.multi_reduction <add>, %308, %cst_83 [1, 2] : vector<1x8x324xf32> to vector<1xf32>
    %310 = vector.shape_cast %309 : vector<1xf32> to vector<1x1x1xf32>
    %311 = vector.extract %310[0, 0, 0] : f32 from vector<1x1x1xf32>
    %312 = vector.broadcast %311 : f32 to vector<1x1xf32>
    %cst_84 = arith.constant 2.592000e+03 : f32
    %313 = vector.broadcast %cst_84 : f32 to vector<1x1xf32>
    %314 = arith.divf %312, %313 : vector<1x1xf32>
    %cst_85 = arith.constant 9.99999974E-6 : f32
    %315 = vector.broadcast %cst_85 : f32 to vector<1x1xf32>
    %316 = arith.addf %314, %315 : vector<1x1xf32>
    %317 = math.rsqrt %316 : vector<1x1xf32>
    %318 = vector.broadcast %317 : vector<1x1xf32> to vector<8x324xf32>
    %319 = arith.mulf %306, %318 : vector<8x324xf32>
    %c0_86 = arith.constant 0 : index
    %c1152 = arith.constant 1152 : index
    %320 = vector.load %arg11[%c0_86, %c1152] : memref<8x3072xf32, #tpu.memory_space<vmem>>, vector<8x324xf32>
    tpu.vector_store %arg11[%c0_86, %c1152], %319 {strides = array<i32>} : memref<8x3072xf32, #tpu.memory_space<vmem>>, vector<8x324xf32>,
    %c8_i32_87 = arith.constant 8 : i32
    %321 = arith.muli %arg0, %c8_i32_87 : i32
    %c4_i32 = arith.constant 4 : i32
    %322 = arith.addi %321, %c4_i32 : i32
    %323 = arith.index_cast %322 : i32 to index
    %c0_88 = arith.constant 0 : index
    %324 = memref.load %arg2[%323, %c0_88] : memref<32x9xf32, #tpu.memory_space<smem>>
    %325 = vector.broadcast %324 : f32 to vector<8x324xf32>
    %326 = arith.mulf %325, %4 : vector<8x324xf32>
    %327 = arith.index_cast %322 : i32 to index
    %c1_89 = arith.constant 1 : index
    %328 = memref.load %arg2[%327, %c1_89] : memref<32x9xf32, #tpu.memory_space<smem>>
    %329 = vector.broadcast %328 : f32 to vector<8x324xf32>
    %330 = arith.mulf %329, %6 : vector<8x324xf32>
    %331 = arith.addf %326, %330 : vector<8x324xf32>
    %332 = arith.index_cast %322 : i32 to index
    %c2_90 = arith.constant 2 : index
    %333 = memref.load %arg2[%332, %c2_90] : memref<32x9xf32, #tpu.memory_space<smem>>
    %334 = vector.broadcast %333 : f32 to vector<8x324xf32>
    %335 = arith.mulf %334, %8 : vector<8x324xf32>
    %336 = arith.addf %331, %335 : vector<8x324xf32>
    %337 = arith.index_cast %322 : i32 to index
    %c3_91 = arith.constant 3 : index
    %338 = memref.load %arg2[%337, %c3_91] : memref<32x9xf32, #tpu.memory_space<smem>>
    %339 = vector.broadcast %338 : f32 to vector<8x324xf32>
    %340 = arith.mulf %339, %10 : vector<8x324xf32>
    %341 = arith.addf %336, %340 : vector<8x324xf32>
    %342 = arith.index_cast %322 : i32 to index
    %c4_92 = arith.constant 4 : index
    %343 = memref.load %arg2[%342, %c4_92] : memref<32x9xf32, #tpu.memory_space<smem>>
    %344 = vector.broadcast %343 : f32 to vector<8x324xf32>
    %345 = arith.mulf %344, %12 : vector<8x324xf32>
    %346 = arith.addf %341, %345 : vector<8x324xf32>
    %347 = arith.index_cast %322 : i32 to index
    %c5_93 = arith.constant 5 : index
    %348 = memref.load %arg2[%347, %c5_93] : memref<32x9xf32, #tpu.memory_space<smem>>
    %349 = vector.broadcast %348 : f32 to vector<8x324xf32>
    %350 = arith.mulf %349, %14 : vector<8x324xf32>
    %351 = arith.addf %346, %350 : vector<8x324xf32>
    %352 = arith.index_cast %322 : i32 to index
    %c6_94 = arith.constant 6 : index
    %353 = memref.load %arg2[%352, %c6_94] : memref<32x9xf32, #tpu.memory_space<smem>>
    %354 = vector.broadcast %353 : f32 to vector<8x324xf32>
    %355 = arith.mulf %354, %16 : vector<8x324xf32>
    %356 = arith.addf %351, %355 : vector<8x324xf32>
    %357 = arith.index_cast %322 : i32 to index
    %c7_95 = arith.constant 7 : index
    %358 = memref.load %arg2[%357, %c7_95] : memref<32x9xf32, #tpu.memory_space<smem>>
    %359 = vector.broadcast %358 : f32 to vector<8x324xf32>
    %360 = arith.mulf %359, %18 : vector<8x324xf32>
    %361 = arith.addf %356, %360 : vector<8x324xf32>
    %362 = arith.index_cast %322 : i32 to index
    %c8_96 = arith.constant 8 : index
    %363 = memref.load %arg2[%362, %c8_96] : memref<32x9xf32, #tpu.memory_space<smem>>
    %364 = vector.broadcast %363 : f32 to vector<8x324xf32>
    %365 = arith.mulf %364, %20 : vector<8x324xf32>
    %366 = arith.addf %361, %365 : vector<8x324xf32>
    %367 = arith.index_cast %322 : i32 to index
    %368 = memref.load %arg3[%367] : memref<32xf32, #tpu.memory_space<smem>>
    %369 = vector.broadcast %368 : f32 to vector<8x324xf32>
    %370 = arith.addf %366, %369 : vector<8x324xf32>
    %cst_97 = arith.constant 0.000000e+00 : f32
    %371 = vector.broadcast %cst_97 : f32 to vector<8x324xf32>
    %372 = arith.maximumf %370, %371 : vector<8x324xf32>
    %373 = vector.shape_cast %372 : vector<8x324xf32> to vector<1x8x324xf32>
    %cst_98 = arith.constant dense<0.000000e+00> : vector<1xf32>
    %374 = vector.multi_reduction <add>, %373, %cst_98 [1, 2] : vector<1x8x324xf32> to vector<1xf32>
    %375 = vector.shape_cast %374 : vector<1xf32> to vector<1x1x1xf32>
    %376 = vector.extract %375[0, 0, 0] : f32 from vector<1x1x1xf32>
    %377 = vector.broadcast %376 : f32 to vector<1x1xf32>
    %cst_99 = arith.constant 2.592000e+03 : f32
    %378 = vector.broadcast %cst_99 : f32 to vector<1x1xf32>
    %379 = arith.divf %377, %378 : vector<1x1xf32>
    %380 = vector.broadcast %379 : vector<1x1xf32> to vector<8x324xf32>
    %381 = arith.subf %372, %380 : vector<8x324xf32>
    %382 = arith.mulf %381, %381 : vector<8x324xf32>
    %383 = vector.shape_cast %382 : vector<8x324xf32> to vector<1x8x324xf32>
    %cst_100 = arith.constant dense<0.000000e+00> : vector<1xf32>
    %384 = vector.multi_reduction <add>, %383, %cst_100 [1, 2] : vector<1x8x324xf32> to vector<1xf32>
    %385 = vector.shape_cast %384 : vector<1xf32> to vector<1x1x1xf32>
    %386 = vector.extract %385[0, 0, 0] : f32 from vector<1x1x1xf32>
    %387 = vector.broadcast %386 : f32 to vector<1x1xf32>
    %cst_101 = arith.constant 2.592000e+03 : f32
    %388 = vector.broadcast %cst_101 : f32 to vector<1x1xf32>
    %389 = arith.divf %387, %388 : vector<1x1xf32>
    %cst_102 = arith.constant 9.99999974E-6 : f32
    %390 = vector.broadcast %cst_102 : f32 to vector<1x1xf32>
    %391 = arith.addf %389, %390 : vector<1x1xf32>
    %392 = math.rsqrt %391 : vector<1x1xf32>
    %393 = vector.broadcast %392 : vector<1x1xf32> to vector<8x324xf32>
    %394 = arith.mulf %381, %393 : vector<8x324xf32>
    %c0_103 = arith.constant 0 : index
    %c1536 = arith.constant 1536 : index
    %395 = vector.load %arg11[%c0_103, %c1536] : memref<8x3072xf32, #tpu.memory_space<vmem>>, vector<8x324xf32>
    tpu.vector_store %arg11[%c0_103, %c1536], %394 {strides = array<i32>} : memref<8x3072xf32, #tpu.memory_space<vmem>>, vector<8x324xf32>,
    %c8_i32_104 = arith.constant 8 : i32
    %396 = arith.muli %arg0, %c8_i32_104 : i32
    %c5_i32 = arith.constant 5 : i32
    %397 = arith.addi %396, %c5_i32 : i32
    %398 = arith.index_cast %397 : i32 to index
    %c0_105 = arith.constant 0 : index
    %399 = memref.load %arg2[%398, %c0_105] : memref<32x9xf32, #tpu.memory_space<smem>>
    %400 = vector.broadcast %399 : f32 to vector<8x324xf32>
    %401 = arith.mulf %400, %4 : vector<8x324xf32>
    %402 = arith.index_cast %397 : i32 to index
    %c1_106 = arith.constant 1 : index
    %403 = memref.load %arg2[%402, %c1_106] : memref<32x9xf32, #tpu.memory_space<smem>>
    %404 = vector.broadcast %403 : f32 to vector<8x324xf32>
    %405 = arith.mulf %404, %6 : vector<8x324xf32>
    %406 = arith.addf %401, %405 : vector<8x324xf32>
    %407 = arith.index_cast %397 : i32 to index
    %c2_107 = arith.constant 2 : index
    %408 = memref.load %arg2[%407, %c2_107] : memref<32x9xf32, #tpu.memory_space<smem>>
    %409 = vector.broadcast %408 : f32 to vector<8x324xf32>
    %410 = arith.mulf %409, %8 : vector<8x324xf32>
    %411 = arith.addf %406, %410 : vector<8x324xf32>
    %412 = arith.index_cast %397 : i32 to index
    %c3_108 = arith.constant 3 : index
    %413 = memref.load %arg2[%412, %c3_108] : memref<32x9xf32, #tpu.memory_space<smem>>
    %414 = vector.broadcast %413 : f32 to vector<8x324xf32>
    %415 = arith.mulf %414, %10 : vector<8x324xf32>
    %416 = arith.addf %411, %415 : vector<8x324xf32>
    %417 = arith.index_cast %397 : i32 to index
    %c4_109 = arith.constant 4 : index
    %418 = memref.load %arg2[%417, %c4_109] : memref<32x9xf32, #tpu.memory_space<smem>>
    %419 = vector.broadcast %418 : f32 to vector<8x324xf32>
    %420 = arith.mulf %419, %12 : vector<8x324xf32>
    %421 = arith.addf %416, %420 : vector<8x324xf32>
    %422 = arith.index_cast %397 : i32 to index
    %c5_110 = arith.constant 5 : index
    %423 = memref.load %arg2[%422, %c5_110] : memref<32x9xf32, #tpu.memory_space<smem>>
    %424 = vector.broadcast %423 : f32 to vector<8x324xf32>
    %425 = arith.mulf %424, %14 : vector<8x324xf32>
    %426 = arith.addf %421, %425 : vector<8x324xf32>
    %427 = arith.index_cast %397 : i32 to index
    %c6_111 = arith.constant 6 : index
    %428 = memref.load %arg2[%427, %c6_111] : memref<32x9xf32, #tpu.memory_space<smem>>
    %429 = vector.broadcast %428 : f32 to vector<8x324xf32>
    %430 = arith.mulf %429, %16 : vector<8x324xf32>
    %431 = arith.addf %426, %430 : vector<8x324xf32>
    %432 = arith.index_cast %397 : i32 to index
    %c7_112 = arith.constant 7 : index
    %433 = memref.load %arg2[%432, %c7_112] : memref<32x9xf32, #tpu.memory_space<smem>>
    %434 = vector.broadcast %433 : f32 to vector<8x324xf32>
    %435 = arith.mulf %434, %18 : vector<8x324xf32>
    %436 = arith.addf %431, %435 : vector<8x324xf32>
    %437 = arith.index_cast %397 : i32 to index
    %c8_113 = arith.constant 8 : index
    %438 = memref.load %arg2[%437, %c8_113] : memref<32x9xf32, #tpu.memory_space<smem>>
    %439 = vector.broadcast %438 : f32 to vector<8x324xf32>
    %440 = arith.mulf %439, %20 : vector<8x324xf32>
    %441 = arith.addf %436, %440 : vector<8x324xf32>
    %442 = arith.index_cast %397 : i32 to index
    %443 = memref.load %arg3[%442] : memref<32xf32, #tpu.memory_space<smem>>
    %444 = vector.broadcast %443 : f32 to vector<8x324xf32>
    %445 = arith.addf %441, %444 : vector<8x324xf32>
    %cst_114 = arith.constant 0.000000e+00 : f32
    %446 = vector.broadcast %cst_114 : f32 to vector<8x324xf32>
    %447 = arith.maximumf %445, %446 : vector<8x324xf32>
    %448 = vector.shape_cast %447 : vector<8x324xf32> to vector<1x8x324xf32>
    %cst_115 = arith.constant dense<0.000000e+00> : vector<1xf32>
    %449 = vector.multi_reduction <add>, %448, %cst_115 [1, 2] : vector<1x8x324xf32> to vector<1xf32>
    %450 = vector.shape_cast %449 : vector<1xf32> to vector<1x1x1xf32>
    %451 = vector.extract %450[0, 0, 0] : f32 from vector<1x1x1xf32>
    %452 = vector.broadcast %451 : f32 to vector<1x1xf32>
    %cst_116 = arith.constant 2.592000e+03 : f32
    %453 = vector.broadcast %cst_116 : f32 to vector<1x1xf32>
    %454 = arith.divf %452, %453 : vector<1x1xf32>
    %455 = vector.broadcast %454 : vector<1x1xf32> to vector<8x324xf32>
    %456 = arith.subf %447, %455 : vector<8x324xf32>
    %457 = arith.mulf %456, %456 : vector<8x324xf32>
    %458 = vector.shape_cast %457 : vector<8x324xf32> to vector<1x8x324xf32>
    %cst_117 = arith.constant dense<0.000000e+00> : vector<1xf32>
    %459 = vector.multi_reduction <add>, %458, %cst_117 [1, 2] : vector<1x8x324xf32> to vector<1xf32>
    %460 = vector.shape_cast %459 : vector<1xf32> to vector<1x1x1xf32>
    %461 = vector.extract %460[0, 0, 0] : f32 from vector<1x1x1xf32>
    %462 = vector.broadcast %461 : f32 to vector<1x1xf32>
    %cst_118 = arith.constant 2.592000e+03 : f32
    %463 = vector.broadcast %cst_118 : f32 to vector<1x1xf32>
    %464 = arith.divf %462, %463 : vector<1x1xf32>
    %cst_119 = arith.constant 9.99999974E-6 : f32
    %465 = vector.broadcast %cst_119 : f32 to vector<1x1xf32>
    %466 = arith.addf %464, %465 : vector<1x1xf32>
    %467 = math.rsqrt %466 : vector<1x1xf32>
    %468 = vector.broadcast %467 : vector<1x1xf32> to vector<8x324xf32>
    %469 = arith.mulf %456, %468 : vector<8x324xf32>
    %c0_120 = arith.constant 0 : index
    %c1920 = arith.constant 1920 : index
    %470 = vector.load %arg11[%c0_120, %c1920] : memref<8x3072xf32, #tpu.memory_space<vmem>>, vector<8x324xf32>
    tpu.vector_store %arg11[%c0_120, %c1920], %469 {strides = array<i32>} : memref<8x3072xf32, #tpu.memory_space<vmem>>, vector<8x324xf32>,
    %c8_i32_121 = arith.constant 8 : i32
    %471 = arith.muli %arg0, %c8_i32_121 : i32
    %c6_i32 = arith.constant 6 : i32
    %472 = arith.addi %471, %c6_i32 : i32
    %473 = arith.index_cast %472 : i32 to index
    %c0_122 = arith.constant 0 : index
    %474 = memref.load %arg2[%473, %c0_122] : memref<32x9xf32, #tpu.memory_space<smem>>
    %475 = vector.broadcast %474 : f32 to vector<8x324xf32>
    %476 = arith.mulf %475, %4 : vector<8x324xf32>
    %477 = arith.index_cast %472 : i32 to index
    %c1_123 = arith.constant 1 : index
    %478 = memref.load %arg2[%477, %c1_123] : memref<32x9xf32, #tpu.memory_space<smem>>
    %479 = vector.broadcast %478 : f32 to vector<8x324xf32>
    %480 = arith.mulf %479, %6 : vector<8x324xf32>
    %481 = arith.addf %476, %480 : vector<8x324xf32>
    %482 = arith.index_cast %472 : i32 to index
    %c2_124 = arith.constant 2 : index
    %483 = memref.load %arg2[%482, %c2_124] : memref<32x9xf32, #tpu.memory_space<smem>>
    %484 = vector.broadcast %483 : f32 to vector<8x324xf32>
    %485 = arith.mulf %484, %8 : vector<8x324xf32>
    %486 = arith.addf %481, %485 : vector<8x324xf32>
    %487 = arith.index_cast %472 : i32 to index
    %c3_125 = arith.constant 3 : index
    %488 = memref.load %arg2[%487, %c3_125] : memref<32x9xf32, #tpu.memory_space<smem>>
    %489 = vector.broadcast %488 : f32 to vector<8x324xf32>
    %490 = arith.mulf %489, %10 : vector<8x324xf32>
    %491 = arith.addf %486, %490 : vector<8x324xf32>
    %492 = arith.index_cast %472 : i32 to index
    %c4_126 = arith.constant 4 : index
    %493 = memref.load %arg2[%492, %c4_126] : memref<32x9xf32, #tpu.memory_space<smem>>
    %494 = vector.broadcast %493 : f32 to vector<8x324xf32>
    %495 = arith.mulf %494, %12 : vector<8x324xf32>
    %496 = arith.addf %491, %495 : vector<8x324xf32>
    %497 = arith.index_cast %472 : i32 to index
    %c5_127 = arith.constant 5 : index
    %498 = memref.load %arg2[%497, %c5_127] : memref<32x9xf32, #tpu.memory_space<smem>>
    %499 = vector.broadcast %498 : f32 to vector<8x324xf32>
    %500 = arith.mulf %499, %14 : vector<8x324xf32>
    %501 = arith.addf %496, %500 : vector<8x324xf32>
    %502 = arith.index_cast %472 : i32 to index
    %c6_128 = arith.constant 6 : index
    %503 = memref.load %arg2[%502, %c6_128] : memref<32x9xf32, #tpu.memory_space<smem>>
    %504 = vector.broadcast %503 : f32 to vector<8x324xf32>
    %505 = arith.mulf %504, %16 : vector<8x324xf32>
    %506 = arith.addf %501, %505 : vector<8x324xf32>
    %507 = arith.index_cast %472 : i32 to index
    %c7_129 = arith.constant 7 : index
    %508 = memref.load %arg2[%507, %c7_129] : memref<32x9xf32, #tpu.memory_space<smem>>
    %509 = vector.broadcast %508 : f32 to vector<8x324xf32>
    %510 = arith.mulf %509, %18 : vector<8x324xf32>
    %511 = arith.addf %506, %510 : vector<8x324xf32>
    %512 = arith.index_cast %472 : i32 to index
    %c8_130 = arith.constant 8 : index
    %513 = memref.load %arg2[%512, %c8_130] : memref<32x9xf32, #tpu.memory_space<smem>>
    %514 = vector.broadcast %513 : f32 to vector<8x324xf32>
    %515 = arith.mulf %514, %20 : vector<8x324xf32>
    %516 = arith.addf %511, %515 : vector<8x324xf32>
    %517 = arith.index_cast %472 : i32 to index
    %518 = memref.load %arg3[%517] : memref<32xf32, #tpu.memory_space<smem>>
    %519 = vector.broadcast %518 : f32 to vector<8x324xf32>
    %520 = arith.addf %516, %519 : vector<8x324xf32>
    %cst_131 = arith.constant 0.000000e+00 : f32
    %521 = vector.broadcast %cst_131 : f32 to vector<8x324xf32>
    %522 = arith.maximumf %520, %521 : vector<8x324xf32>
    %523 = vector.shape_cast %522 : vector<8x324xf32> to vector<1x8x324xf32>
    %cst_132 = arith.constant dense<0.000000e+00> : vector<1xf32>
    %524 = vector.multi_reduction <add>, %523, %cst_132 [1, 2] : vector<1x8x324xf32> to vector<1xf32>
    %525 = vector.shape_cast %524 : vector<1xf32> to vector<1x1x1xf32>
    %526 = vector.extract %525[0, 0, 0] : f32 from vector<1x1x1xf32>
    %527 = vector.broadcast %526 : f32 to vector<1x1xf32>
    %cst_133 = arith.constant 2.592000e+03 : f32
    %528 = vector.broadcast %cst_133 : f32 to vector<1x1xf32>
    %529 = arith.divf %527, %528 : vector<1x1xf32>
    %530 = vector.broadcast %529 : vector<1x1xf32> to vector<8x324xf32>
    %531 = arith.subf %522, %530 : vector<8x324xf32>
    %532 = arith.mulf %531, %531 : vector<8x324xf32>
    %533 = vector.shape_cast %532 : vector<8x324xf32> to vector<1x8x324xf32>
    %cst_134 = arith.constant dense<0.000000e+00> : vector<1xf32>
    %534 = vector.multi_reduction <add>, %533, %cst_134 [1, 2] : vector<1x8x324xf32> to vector<1xf32>
    %535 = vector.shape_cast %534 : vector<1xf32> to vector<1x1x1xf32>
    %536 = vector.extract %535[0, 0, 0] : f32 from vector<1x1x1xf32>
    %537 = vector.broadcast %536 : f32 to vector<1x1xf32>
    %cst_135 = arith.constant 2.592000e+03 : f32
    %538 = vector.broadcast %cst_135 : f32 to vector<1x1xf32>
    %539 = arith.divf %537, %538 : vector<1x1xf32>
    %cst_136 = arith.constant 9.99999974E-6 : f32
    %540 = vector.broadcast %cst_136 : f32 to vector<1x1xf32>
    %541 = arith.addf %539, %540 : vector<1x1xf32>
    %542 = math.rsqrt %541 : vector<1x1xf32>
    %543 = vector.broadcast %542 : vector<1x1xf32> to vector<8x324xf32>
    %544 = arith.mulf %531, %543 : vector<8x324xf32>
    %c0_137 = arith.constant 0 : index
    %c2304 = arith.constant 2304 : index
    %545 = vector.load %arg11[%c0_137, %c2304] : memref<8x3072xf32, #tpu.memory_space<vmem>>, vector<8x324xf32>
    tpu.vector_store %arg11[%c0_137, %c2304], %544 {strides = array<i32>} : memref<8x3072xf32, #tpu.memory_space<vmem>>, vector<8x324xf32>,
    %c8_i32_138 = arith.constant 8 : i32
    %546 = arith.muli %arg0, %c8_i32_138 : i32
    %c7_i32 = arith.constant 7 : i32
    %547 = arith.addi %546, %c7_i32 : i32
    %548 = arith.index_cast %547 : i32 to index
    %c0_139 = arith.constant 0 : index
    %549 = memref.load %arg2[%548, %c0_139] : memref<32x9xf32, #tpu.memory_space<smem>>
    %550 = vector.broadcast %549 : f32 to vector<8x324xf32>
    %551 = arith.mulf %550, %4 : vector<8x324xf32>
    %552 = arith.index_cast %547 : i32 to index
    %c1_140 = arith.constant 1 : index
    %553 = memref.load %arg2[%552, %c1_140] : memref<32x9xf32, #tpu.memory_space<smem>>
    %554 = vector.broadcast %553 : f32 to vector<8x324xf32>
    %555 = arith.mulf %554, %6 : vector<8x324xf32>
    %556 = arith.addf %551, %555 : vector<8x324xf32>
    %557 = arith.index_cast %547 : i32 to index
    %c2_141 = arith.constant 2 : index
    %558 = memref.load %arg2[%557, %c2_141] : memref<32x9xf32, #tpu.memory_space<smem>>
    %559 = vector.broadcast %558 : f32 to vector<8x324xf32>
    %560 = arith.mulf %559, %8 : vector<8x324xf32>
    %561 = arith.addf %556, %560 : vector<8x324xf32>
    %562 = arith.index_cast %547 : i32 to index
    %c3_142 = arith.constant 3 : index
    %563 = memref.load %arg2[%562, %c3_142] : memref<32x9xf32, #tpu.memory_space<smem>>
    %564 = vector.broadcast %563 : f32 to vector<8x324xf32>
    %565 = arith.mulf %564, %10 : vector<8x324xf32>
    %566 = arith.addf %561, %565 : vector<8x324xf32>
    %567 = arith.index_cast %547 : i32 to index
    %c4_143 = arith.constant 4 : index
    %568 = memref.load %arg2[%567, %c4_143] : memref<32x9xf32, #tpu.memory_space<smem>>
    %569 = vector.broadcast %568 : f32 to vector<8x324xf32>
    %570 = arith.mulf %569, %12 : vector<8x324xf32>
    %571 = arith.addf %566, %570 : vector<8x324xf32>
    %572 = arith.index_cast %547 : i32 to index
    %c5_144 = arith.constant 5 : index
    %573 = memref.load %arg2[%572, %c5_144] : memref<32x9xf32, #tpu.memory_space<smem>>
    %574 = vector.broadcast %573 : f32 to vector<8x324xf32>
    %575 = arith.mulf %574, %14 : vector<8x324xf32>
    %576 = arith.addf %571, %575 : vector<8x324xf32>
    %577 = arith.index_cast %547 : i32 to index
    %c6_145 = arith.constant 6 : index
    %578 = memref.load %arg2[%577, %c6_145] : memref<32x9xf32, #tpu.memory_space<smem>>
    %579 = vector.broadcast %578 : f32 to vector<8x324xf32>
    %580 = arith.mulf %579, %16 : vector<8x324xf32>
    %581 = arith.addf %576, %580 : vector<8x324xf32>
    %582 = arith.index_cast %547 : i32 to index
    %c7_146 = arith.constant 7 : index
    %583 = memref.load %arg2[%582, %c7_146] : memref<32x9xf32, #tpu.memory_space<smem>>
    %584 = vector.broadcast %583 : f32 to vector<8x324xf32>
    %585 = arith.mulf %584, %18 : vector<8x324xf32>
    %586 = arith.addf %581, %585 : vector<8x324xf32>
    %587 = arith.index_cast %547 : i32 to index
    %c8_147 = arith.constant 8 : index
    %588 = memref.load %arg2[%587, %c8_147] : memref<32x9xf32, #tpu.memory_space<smem>>
    %589 = vector.broadcast %588 : f32 to vector<8x324xf32>
    %590 = arith.mulf %589, %20 : vector<8x324xf32>
    %591 = arith.addf %586, %590 : vector<8x324xf32>
    %592 = arith.index_cast %547 : i32 to index
    %593 = memref.load %arg3[%592] : memref<32xf32, #tpu.memory_space<smem>>
    %594 = vector.broadcast %593 : f32 to vector<8x324xf32>
    %595 = arith.addf %591, %594 : vector<8x324xf32>
    %cst_148 = arith.constant 0.000000e+00 : f32
    %596 = vector.broadcast %cst_148 : f32 to vector<8x324xf32>
    %597 = arith.maximumf %595, %596 : vector<8x324xf32>
    %598 = vector.shape_cast %597 : vector<8x324xf32> to vector<1x8x324xf32>
    %cst_149 = arith.constant dense<0.000000e+00> : vector<1xf32>
    %599 = vector.multi_reduction <add>, %598, %cst_149 [1, 2] : vector<1x8x324xf32> to vector<1xf32>
    %600 = vector.shape_cast %599 : vector<1xf32> to vector<1x1x1xf32>
    %601 = vector.extract %600[0, 0, 0] : f32 from vector<1x1x1xf32>
    %602 = vector.broadcast %601 : f32 to vector<1x1xf32>
    %cst_150 = arith.constant 2.592000e+03 : f32
    %603 = vector.broadcast %cst_150 : f32 to vector<1x1xf32>
    %604 = arith.divf %602, %603 : vector<1x1xf32>
    %605 = vector.broadcast %604 : vector<1x1xf32> to vector<8x324xf32>
    %606 = arith.subf %597, %605 : vector<8x324xf32>
    %607 = arith.mulf %606, %606 : vector<8x324xf32>
    %608 = vector.shape_cast %607 : vector<8x324xf32> to vector<1x8x324xf32>
    %cst_151 = arith.constant dense<0.000000e+00> : vector<1xf32>
    %609 = vector.multi_reduction <add>, %608, %cst_151 [1, 2] : vector<1x8x324xf32> to vector<1xf32>
    %610 = vector.shape_cast %609 : vector<1xf32> to vector<1x1x1xf32>
    %611 = vector.extract %610[0, 0, 0] : f32 from vector<1x1x1xf32>
    %612 = vector.broadcast %611 : f32 to vector<1x1xf32>
    %cst_152 = arith.constant 2.592000e+03 : f32
    %613 = vector.broadcast %cst_152 : f32 to vector<1x1xf32>
    %614 = arith.divf %612, %613 : vector<1x1xf32>
    %cst_153 = arith.constant 9.99999974E-6 : f32
    %615 = vector.broadcast %cst_153 : f32 to vector<1x1xf32>
    %616 = arith.addf %614, %615 : vector<1x1xf32>
    %617 = math.rsqrt %616 : vector<1x1xf32>
    %618 = vector.broadcast %617 : vector<1x1xf32> to vector<8x324xf32>
    %619 = arith.mulf %606, %618 : vector<8x324xf32>
    %c0_154 = arith.constant 0 : index
    %c2688 = arith.constant 2688 : index
    %620 = vector.load %arg11[%c0_154, %c2688] : memref<8x3072xf32, #tpu.memory_space<vmem>>, vector<8x324xf32>
    tpu.vector_store %arg11[%c0_154, %c2688], %619 {strides = array<i32>} : memref<8x3072xf32, #tpu.memory_space<vmem>>, vector<8x324xf32>,
    %c0_155 = arith.constant 0 : index
    %c0_156 = arith.constant 0 : index
    %621 = vector.load %arg10[%c0_155, %c0_156] : memref<8x200xf32, #tpu.memory_space<vmem>>, vector<8x200xf32>
    %c0_157 = arith.constant 0 : index
    %c0_158 = arith.constant 0 : index
    %622 = vector.load %arg11[%c0_157, %c0_158] : memref<8x3072xf32, #tpu.memory_space<vmem>>, vector<8x3072xf32>
    %623 = arith.truncf %622 : vector<8x3072xf32> to vector<8x3072xbf16>
    %c0_159 = arith.constant 0 : index
    %c0_160 = arith.constant 0 : index
    %c0_161 = arith.constant 0 : index
    %624 = vector.load %arg4[%c0_159, %c0_160, %c0_161] : memref<1x3072x200xbf16, #tpu.memory_space<vmem>>, vector<1x3072x200xbf16>
    %625 = vector.shape_cast %624 : vector<1x3072x200xbf16> to vector<3072x200xbf16>
    %cst_162 = arith.constant dense<0.000000e+00> : vector<8x200xf32>
    %626 = tpu.matmul %623, %625, %cst_162 {dimension_numbers = #tpu.dot_dimension_numbers<[1], [0], [0], [1], [0, 0, 1, 1], [], []>} : vector<8x3072xbf16>, vector<3072x200xbf16>, vector<8x200xf32> -> vector<8x200xf32>
    %627 = arith.addf %621, %626 : vector<8x200xf32>
    %c0_163 = arith.constant 0 : index
    %c0_164 = arith.constant 0 : index
    %628 = vector.load %arg10[%c0_163, %c0_164] : memref<8x200xf32, #tpu.memory_space<vmem>>, vector<8x200xf32>
    tpu.vector_store %arg10[%c0_163, %c0_164], %627 {strides = array<i32>} : memref<8x200xf32, #tpu.memory_space<vmem>>, vector<8x200xf32>,
    %c3_i32_165 = arith.constant 3 : i32
    %629 = arith.cmpi eq, %arg0, %c3_i32_165 : i32
    %630 = arith.extui %629 : i1 to i32
    %c0_i32_166 = arith.constant 0 : i32
    %631 = arith.cmpi ne, %630, %c0_i32_166 : i32
    scf.if %631 {
      %c0_167 = arith.constant 0 : index
      %c0_168 = arith.constant 0 : index
      %632 = vector.load %arg10[%c0_167, %c0_168] : memref<8x200xf32, #tpu.memory_space<vmem>>, vector<8x200xf32>
      %c0_169 = arith.constant 0 : index
      %c0_170 = arith.constant 0 : index
      %633 = vector.load %arg5[%c0_169, %c0_170] : memref<1x200xf32, #tpu.memory_space<vmem>>, vector<1x200xf32>
      %634 = vector.broadcast %633 : vector<1x200xf32> to vector<8x200xf32>
      %635 = arith.addf %632, %634 : vector<8x200xf32>
      %cst_171 = arith.constant 0.000000e+00 : f32
      %636 = vector.broadcast %cst_171 : f32 to vector<8x200xf32>
      %637 = arith.maximumf %635, %636 : vector<8x200xf32>
      %cst_172 = arith.constant dense<0.000000e+00> : vector<200xf32>
      %638 = vector.multi_reduction <add>, %637, %cst_172 [0] : vector<8x200xf32> to vector<200xf32>
      %639 = vector.shape_cast %638 : vector<200xf32> to vector<1x200xf32>
      %cst_173 = arith.constant 8.000000e+00 : f32
      %640 = vector.broadcast %cst_173 : f32 to vector<1x200xf32>
      %641 = arith.divf %639, %640 : vector<1x200xf32>
      %642 = vector.broadcast %641 : vector<1x200xf32> to vector<8x200xf32>
      %643 = arith.subf %637, %642 : vector<8x200xf32>
      %644 = arith.mulf %643, %643 : vector<8x200xf32>
      %cst_174 = arith.constant dense<0.000000e+00> : vector<200xf32>
      %645 = vector.multi_reduction <add>, %644, %cst_174 [0] : vector<8x200xf32> to vector<200xf32>
      %646 = vector.shape_cast %645 : vector<200xf32> to vector<1x200xf32>
      %cst_175 = arith.constant 8.000000e+00 : f32
      %647 = vector.broadcast %cst_175 : f32 to vector<1x200xf32>
      %648 = arith.divf %646, %647 : vector<1x200xf32>
      %cst_176 = arith.constant 9.99999974E-6 : f32
      %649 = vector.broadcast %cst_176 : f32 to vector<1x200xf32>
      %650 = arith.addf %648, %649 : vector<1x200xf32>
      %651 = math.rsqrt %650 : vector<1x200xf32>
      %652 = vector.broadcast %651 : vector<1x200xf32> to vector<8x200xf32>
      %653 = arith.mulf %643, %652 : vector<8x200xf32>
      %c0_177 = arith.constant 0 : index
      %c0_178 = arith.constant 0 : index
      %654 = vector.load %arg6[%c0_177, %c0_178] : memref<1x200xf32, #tpu.memory_space<vmem>>, vector<1x200xf32>
      %655 = vector.broadcast %654 : vector<1x200xf32> to vector<8x200xf32>
      %656 = arith.mulf %653, %655 : vector<8x200xf32>
      %c0_179 = arith.constant 0 : index
      %c0_180 = arith.constant 0 : index
      %657 = vector.load %arg7[%c0_179, %c0_180] : memref<1x200xf32, #tpu.memory_space<vmem>>, vector<1x200xf32>
      %658 = vector.broadcast %657 : vector<1x200xf32> to vector<8x200xf32>
      %659 = arith.addf %656, %658 : vector<8x200xf32>
      %c0_181 = arith.constant 0 : index
      %c0_182 = arith.constant 0 : index
      %660 = vector.load %arg8[%c0_181, %c0_182] : memref<8x200xf32, #tpu.memory_space<vmem>>, vector<8x200xf32>
      %661 = arith.mulf %659, %660 : vector<8x200xf32>
      %cst_183 = arith.constant dense<0.000000e+00> : vector<8xf32>
      %662 = vector.multi_reduction <add>, %661, %cst_183 [1] : vector<8x200xf32> to vector<8xf32>
      %663 = vector.shape_cast %662 : vector<8xf32> to vector<8x1xf32>
      %cst_184 = arith.constant 0.000000e+00 : f32
      %664 = vector.broadcast %cst_184 : f32 to vector<8x1xf32>
      %665 = arith.subf %664, %663 : vector<8x1xf32>
      %666 = math.exp %665 : vector<8x1xf32>
      %cst_185 = arith.constant 1.000000e+00 : f32
      %667 = vector.broadcast %cst_185 : f32 to vector<8x1xf32>
      %668 = arith.addf %667, %666 : vector<8x1xf32>
      %cst_186 = arith.constant 1.000000e+00 : f32
      %669 = vector.broadcast %cst_186 : f32 to vector<8x1xf32>
      %670 = arith.divf %669, %668 : vector<8x1xf32>
      %c0_187 = arith.constant 0 : index
      %c0_188 = arith.constant 0 : index
      %671 = vector.load %arg9[%c0_187, %c0_188] : memref<8x1xf32, #tpu.memory_space<vmem>>, vector<8x1xf32>
      tpu.vector_store %arg9[%c0_187, %c0_188], %670 {strides = array<i32>} : memref<8x1xf32, #tpu.memory_space<vmem>>, vector<8x1xf32>,
    } else {
    }
    return
  }
  func.func @transform_0(%arg0: i32) -> (i32, i32, i32) {
    %c0_i32 = arith.constant 0 : i32
    %c0_i32_0 = arith.constant 0 : i32
    %c0_i32_1 = arith.constant 0 : i32
    %c0_i32_2 = arith.constant 0 : i32
    return %c0_i32, %c0_i32_0, %c0_i32_1 : i32, i32, i32
  }
  func.func @transform_1(%arg0: i32) -> (i32, i32) {
    %c0_i32 = arith.constant 0 : i32
    %c0_i32_0 = arith.constant 0 : i32
    %c0_i32_1 = arith.constant 0 : i32
    return %c0_i32, %c0_i32_0 : i32, i32
  }
  func.func @transform_2(%arg0: i32) -> i32 {
    %c0_i32 = arith.constant 0 : i32
    %c0_i32_0 = arith.constant 0 : i32
    return %c0_i32 : i32
  }
  func.func @transform_3(%arg0: i32) -> (i32, i32, i32) {
    %c0_i32 = arith.constant 0 : i32
    %c0_i32_0 = arith.constant 0 : i32
    %c0_i32_1 = arith.constant 0 : i32
    return %arg0, %c0_i32, %c0_i32_0 : i32, i32, i32
  }
  func.func @transform_4(%arg0: i32) -> (i32, i32) {
    %c0_i32 = arith.constant 0 : i32
    %c0_i32_0 = arith.constant 0 : i32
    %c0_i32_1 = arith.constant 0 : i32
    return %c0_i32, %c0_i32_0 : i32, i32
  }
  func.func @transform_5(%arg0: i32) -> (i32, i32) {
    %c0_i32 = arith.constant 0 : i32
    %c0_i32_0 = arith.constant 0 : i32
    %c0_i32_1 = arith.constant 0 : i32
    return %c0_i32, %c0_i32_0 : i32, i32
  }
  func.func @transform_6(%arg0: i32) -> (i32, i32) {
    %c0_i32 = arith.constant 0 : i32
    %c0_i32_0 = arith.constant 0 : i32
    %c0_i32_1 = arith.constant 0 : i32
    return %c0_i32, %c0_i32_0 : i32, i32
  }
  func.func @transform_7(%arg0: i32) -> (i32, i32) {
    %c0_i32 = arith.constant 0 : i32
    %c0_i32_0 = arith.constant 0 : i32
    %c0_i32_1 = arith.constant 0 : i32
    return %c0_i32, %c0_i32_0 : i32, i32
  }
  func.func @transform_8(%arg0: i32) -> (i32, i32) {
    %c0_i32 = arith.constant 0 : i32
    %c0_i32_0 = arith.constant 0 : i32
    %c0_i32_1 = arith.constant 0 : i32
    return %c0_i32, %c0_i32_0 : i32, i32
  }
}

</mosaic_0001>

<llo_original>
// kernel: conve_forward.1
$region0: #{conve_forward.1}
  #allocation0 [shape = 'u32[]', space=smem, size = 0x4, offset = 0x4, fixed_abs, tag = 'smem constant byte address 0x4 - core index']
  #allocation1 [shape = 'u32[144,128]{1,0:T(1,128)}', space=vmem, size = 0x12000, scoped, tag = 'internal scratch']
  #allocation2 [shape = 'f32[8,200]{1,0:T(8,128)}', space=vmem, size = 0x2000, scoped, tag = 'scratch operand']
  #allocation3 [shape = 'f32[8,3072]{1,0:T(8,128)}', space=vmem, size = 0x18000, scoped, tag = 'scratch operand']
  %s0 = inlined_call_operand.vmem [shape: f32[9,8,324], index: 0, kind: input, shape index: {}]
  %s1 = inlined_call_operand.vmem [shape: f32[32,9], index: 1, kind: input, shape index: {}]
  %s2 = inlined_call_operand.vmem [shape: f32[32], index: 2, kind: input, shape index: {}]
  %s3 = inlined_call_operand.vmem [shape: bf16[4,3072,200], index: 3, kind: input, shape index: {}]
  %s4 = inlined_call_operand.vmem [shape: f32[1,200], index: 4, kind: input, shape index: {}]
  %s5 = inlined_call_operand.vmem [shape: f32[1,200], index: 5, kind: input, shape index: {}]
  %s6 = inlined_call_operand.vmem [shape: f32[1,200], index: 6, kind: input, shape index: {}]
  %s7 = inlined_call_operand.vmem [shape: f32[8,200], index: 7, kind: input, shape index: {}]
  %s8 = inlined_call_operand.vmem [shape: f32[8,1], index: 8, kind: output, shape index: {}]
  %s9 = sld [smem:[#allocation0]]
  $region81: #{conve_forward.1} parent=0
    _
  %s11 = ssub.s32 1, %s9
  %s12 = scalar_select 0, %s11, %s9
  $region1: #{conve_forward.1} parent=0
    #allocation4 [shape = 'u8[16384]{0}', space=smem, size = 0x4000, scoped, tag = 'input window, operand 1, single buffered']
    #allocation5 [shape = 's32[2]{0}', space=sflag, size = 0x8, scoped, tag = 'scoped memory for conve_forward.1']
    #allocation6 [shape = 'u8[512]{0}', space=smem, size = 0x200, scoped, tag = 'input window, operand 2, single buffered']
    #allocation7 [shape = 's32[1]{0}', space=sflag, size = 0x4, scoped, tag = 'scoped memory for conve_forward.1']
    %13 = vsyncpa [#allocation5], 0
    %14 = vsyncpa [#allocation7], 0
    loop: start=0, step=1, limit=6
    $region2: #{conve_forward.1} parent=1 // loop_pre_header
      _
    $region3: #{conve_forward.1} parent=1 // loop_header
      %s16 = sphi 0, %s20
      %p17 = scmp.ge.s32.totalorder %s16, 6
      %s24 = sphi 0, %s24
      %s26 = sphi 0, %s24
      %s27 = sphi 0, %s26
      %s41 = sphi 0, %s27
      %s45 = sphi 0, %s45
      %s47 = sphi 0, %s45
      %s48 = sphi 0, %s47
      %s62 = sphi 0, %s48
      %s66 = sphi 0, %s66
      %s68 = sphi 0, %s66
      %s69 = sphi 0, %s68
      %s83 = sphi 0, %s69
      %s89 = sphi 0, %s91
      %s92 = sphi 0, %s89
      %s93 = sphi 0, %s92
      %s109 = sphi 0, %s93
      %s113 = sphi 0, %s113
      %s115 = sphi 0, %s113
      %s116 = sphi 0, %s115
      %s130 = sphi 0, %s116
      %s134 = sphi 0, %s134
      %s136 = sphi 0, %s134
      %s137 = sphi 0, %s136
      %s151 = sphi 0, %s137
      %s155 = sphi 0, %s155
      %s157 = sphi 0, %s155
      %s158 = sphi 0, %s157
      %s172 = sphi 0, %s158
      %s176 = sphi 0, %s176
      %s178 = sphi 0, %s176
      %s179 = sphi 0, %s178
      %s193 = sphi 0, %s179
      %s197 = sphi 0, %s197
      %s199 = sphi 0, %s197
      %s200 = sphi 0, %s199
      %s214 = sphi 0, %s200
    $region4: #{conve_forward.1} parent=1 // loop_header_branch
      %19 = sbr.rel (%p17) target = $region8
    $region5: #{conve_forward.1} parent=1 // loop_body
      %s21 = ssub.s32 %s16, 1
      %s22 = ssub.s32 %s16, 2
      %s23 = sadd.s32 %s16, 1
      %s25 = sadd.s32 %s24, 1
      %p28 = scmp.eq.s32.totalorder %s16, 3
      %p29 = scmp.ne.s32.totalorder %s24, %s26
      %p30 = scmp.eq.s32.totalorder %s16, 0
      %p31 = por %p29, %p30
      %p32 = scmp.ne.s32.totalorder %s24, %s26
      %p33 = scmp.eq.s32.totalorder %s21, 3
      %p34 = por %p32, %p33
      %p35 = scmp.ne.s32.totalorder %s26, %s27
      %p36 = scmp.eq.s32.totalorder %s21, 0
      %p37 = por %p35, %p36
      %p38 = scmp.ne.s32.totalorder %s26, %s27
      %p39 = scmp.eq.s32.totalorder %s22, 3
      %p40 = por %p38, %p39
      %p42 = scmp.ne.s32.totalorder %s27, %s41
      %p43 = scmp.eq.s32.totalorder %s22, 0
      %p44 = por %p42, %p43
      %s46 = sadd.s32 %s45, 1
      %p49 = scmp.eq.s32.totalorder %s16, 3
      %p50 = scmp.ne.s32.totalorder %s45, %s47
      %p51 = scmp.eq.s32.totalorder %s16, 0
      %p52 = por %p50, %p51
      %p53 = scmp.ne.s32.totalorder %s45, %s47
      %p54 = scmp.eq.s32.totalorder %s21, 3
      %p55 = por %p53, %p54
      %p56 = scmp.ne.s32.totalorder %s47, %s48
      %p57 = scmp.eq.s32.totalorder %s21, 0
      %p58 = por %p56, %p57
      %p59 = scmp.ne.s32.totalorder %s47, %s48
      %p60 = scmp.eq.s32.totalorder %s22, 3
      %p61 = por %p59, %p60
      %p63 = scmp.ne.s32.totalorder %s48, %s62
      %p64 = scmp.eq.s32.totalorder %s22, 0
      %p65 = por %p63, %p64
      %s67 = sadd.s32 %s66, 1
      %p70 = scmp.eq.s32.totalorder %s16, 3
      %p71 = scmp.ne.s32.totalorder %s66, %s68
      %p72 = scmp.eq.s32.totalorder %s16, 0
      %p73 = por %p71, %p72
      %p74 = scmp.ne.s32.totalorder %s66, %s68
      %p75 = scmp.eq.s32.totalorder %s21, 3
      %p76 = por %p74, %p75
      %p77 = scmp.ne.s32.totalorder %s68, %s69
      %p78 = scmp.eq.s32.totalorder %s21, 0
      %p79 = por %p77, %p78
      %p80 = scmp.ne.s32.totalorder %s68, %s69
      %p81 = scmp.eq.s32.totalorder %s22, 3
      %p82 = por %p80, %p81
      %p84 = scmp.ne.s32.totalorder %s69, %s83
      %p85 = scmp.eq.s32.totalorder %s22, 0
      %p86 = por %p84, %p85
      %s87 = ssub.s32 %s16, %s23
      %p88 = scmp.eq.s32.totalorder %s87, 0
      %s90 = sadd.s32 %s89, 1
      %s91 = scalar_select %p88, %s89, %s90
      %p94 = pneg %p88
      %p95 = scmp.eq.s32.totalorder %s16, 3
      %p96 = por %p94, %p95
      %p97 = scmp.ne.s32.totalorder %s89, %s92
      %p98 = scmp.eq.s32.totalorder %s16, 0
      %p99 = por %p97, %p98
      %p100 = scmp.ne.s32.totalorder %s89, %s92
      %p101 = scmp.eq.s32.totalorder %s21, 3
      %p102 = por %p100, %p101
      %p103 = scmp.ne.s32.totalorder %s92, %s93
      %p104 = scmp.eq.s32.totalorder %s21, 0
      %p105 = por %p103, %p104
      %p106 = scmp.ne.s32.totalorder %s92, %s93
      %p107 = scmp.eq.s32.totalorder %s22, 3
      %p108 = por %p106, %p107
      %p110 = scmp.ne.s32.totalorder %s93, %s109
      %p111 = scmp.eq.s32.totalorder %s22, 0
      %p112 = por %p110, %p111
      %s114 = sadd.s32 %s113, 1
      %p117 = scmp.eq.s32.totalorder %s16, 3
      %p118 = scmp.ne.s32.totalorder %s113, %s115
      %p119 = scmp.eq.s32.totalorder %s16, 0
      %p120 = por %p118, %p119
      %p121 = scmp.ne.s32.totalorder %s113, %s115
      %p122 = scmp.eq.s32.totalorder %s21, 3
      %p123 = por %p121, %p122
      %p124 = scmp.ne.s32.totalorder %s115, %s116
      %p125 = scmp.eq.s32.totalorder %s21, 0
      %p126 = por %p124, %p125
      %p127 = scmp.ne.s32.totalorder %s115, %s116
      %p128 = scmp.eq.s32.totalorder %s22, 3
      %p129 = por %p127, %p128
      %p131 = scmp.ne.s32.totalorder %s116, %s130
      %p132 = scmp.eq.s32.totalorder %s22, 0
      %p133 = por %p131, %p132
      %s135 = sadd.s32 %s134, 1
      %p138 = scmp.eq.s32.totalorder %s16, 3
      %p139 = scmp.ne.s32.totalorder %s134, %s136
      %p140 = scmp.eq.s32.totalorder %s16, 0
      %p141 = por %p139, %p140
      %p142 = scmp.ne.s32.totalorder %s134, %s136
      %p143 = scmp.eq.s32.totalorder %s21, 3
      %p144 = por %p142, %p143
      %p145 = scmp.ne.s32.totalorder %s136, %s137
      %p146 = scmp.eq.s32.totalorder %s21, 0
      %p147 = por %p145, %p146
      %p148 = scmp.ne.s32.totalorder %s136, %s137
      %p149 = scmp.eq.s32.totalorder %s22, 3
      %p150 = por %p148, %p149
      %p152 = scmp.ne.s32.totalorder %s137, %s151
      %p153 = scmp.eq.s32.totalorder %s22, 0
      %p154 = por %p152, %p153
      %s156 = sadd.s32 %s155, 1
      %p159 = scmp.eq.s32.totalorder %s16, 3
      %p160 = scmp.ne.s32.totalorder %s155, %s157
      %p161 = scmp.eq.s32.totalorder %s16, 0
      %p162 = por %p160, %p161
      %p163 = scmp.ne.s32.totalorder %s155, %s157
      %p164 = scmp.eq.s32.totalorder %s21, 3
      %p165 = por %p163, %p164
      %p166 = scmp.ne.s32.totalorder %s157, %s158
      %p167 = scmp.eq.s32.totalorder %s21, 0
      %p168 = por %p166, %p167
      %p169 = scmp.ne.s32.totalorder %s157, %s158
      %p170 = scmp.eq.s32.totalorder %s22, 3
      %p171 = por %p169, %p170
      %p173 = scmp.ne.s32.totalorder %s158, %s172
      %p174 = scmp.eq.s32.totalorder %s22, 0
      %p175 = por %p173, %p174
      %s177 = sadd.s32 %s176, 1
      %p180 = scmp.eq.s32.totalorder %s16, 3
      %p181 = scmp.ne.s32.totalorder %s176, %s178
      %p182 = scmp.eq.s32.totalorder %s16, 0
      %p183 = por %p181, %p182
      %p184 = scmp.ne.s32.totalorder %s176, %s178
      %p185 = scmp.eq.s32.totalorder %s21, 3
      %p186 = por %p184, %p185
      %p187 = scmp.ne.s32.totalorder %s178, %s179
      %p188 = scmp.eq.s32.totalorder %s21, 0
      %p189 = por %p187, %p188
      %p190 = scmp.ne.s32.totalorder %s178, %s179
      %p191 = scmp.eq.s32.totalorder %s22, 3
      %p192 = por %p190, %p191
      %p194 = scmp.ne.s32.totalorder %s179, %s193
      %p195 = scmp.eq.s32.totalorder %s22, 0
      %p196 = por %p194, %p195
      %s198 = sadd.s32 %s197, 1
      %p201 = scmp.eq.s32.totalorder %s16, 3
      %p202 = scmp.ne.s32.totalorder %s197, %s199
      %p203 = scmp.eq.s32.totalorder %s16, 0
      %p204 = por %p202, %p203
      %p205 = scmp.ne.s32.totalorder %s197, %s199
      %p206 = scmp.eq.s32.totalorder %s21, 3
      %p207 = por %p205, %p206
      %p208 = scmp.ne.s32.totalorder %s199, %s200
      %p209 = scmp.eq.s32.totalorder %s21, 0
      %p210 = por %p208, %p209
      %p211 = scmp.ne.s32.totalorder %s199, %s200
      %p212 = scmp.eq.s32.totalorder %s22, 3
      %p213 = por %p211, %p212
      %p215 = scmp.ne.s32.totalorder %s200, %s214
      %p216 = scmp.eq.s32.totalorder %s22, 0
      %p217 = por %p215, %p216
      %p218 = scmp.le.s32.totalorder 1, %s16
      %p219 = scmp.lt.s32.totalorder %s16, 5
      %p220 = pnand %p218, %p219
      %p221 = pneg %p220
      // Predicated region
      $region9: #{conve_forward.1} parent=5 // pred_check
        _
      $region10: #{conve_forward.1} parent=5 // pred_check_branch
        %223 = sbr.rel (%p220) target = $region12
      $region11: #{conve_forward.1} parent=5 // pred_region
        %s224 = ssub.s32 %s16, 1
        // Predicated region
        $region13: #{conve_forward.1} parent=11 // pred_check
          %p225 = pneg %p37
        $region14: #{conve_forward.1} parent=11 // pred_check_branch
          %227 = sbr.rel (%p225) target = $region16
        $region15: #{conve_forward.1} parent=11 // pred_region
          _
        $region16: #{conve_forward.1} parent=11 // pred_fallthru
          _
        // Predicated region
        $region17: #{conve_forward.1} parent=11 // pred_check
          %p228 = pneg %p58
        $region18: #{conve_forward.1} parent=11 // pred_check_branch
          %230 = sbr.rel (%p228) target = $region20
        $region19: #{conve_forward.1} parent=11 // pred_region
          %s232 = ssub.s32 512, 512
          %233 = vsyncadd [#allocation5], %s232
          %s234 = sshll.u32 %s1, 4
          %s235 = int_to_ptr.vmem [resolvable:$true] %s234
          %240 = dma.vmem_to_smem %s235, 512, [#allocation4], [#allocation5], 128, 128, 8
        $region20: #{conve_forward.1} parent=11 // pred_fallthru
          _
        // Predicated region
        $region21: #{conve_forward.1} parent=11 // pred_check
          %p241 = pneg %p79
        $region22: #{conve_forward.1} parent=11 // pred_check_branch
          %243 = sbr.rel (%p241) target = $region24
        $region23: #{conve_forward.1} parent=11 // pred_region
          %s245 = ssub.s32 16, 16
          %246 = vsyncadd [#allocation7], %s245
          %s248 = sshll.u32 %s2, 4
          %s249 = int_to_ptr.vmem [resolvable:$true] %s248
          %251 = dma.vmem_to_smem %s249, 16, [#allocation6], [#allocation7]
        $region24: #{conve_forward.1} parent=11 // pred_fallthru
          _
        // Predicated region
        $region25: #{conve_forward.1} parent=11 // pred_check
          %p252 = pneg %p126
        $region26: #{conve_forward.1} parent=11 // pred_check_branch
          %254 = sbr.rel (%p252) target = $region28
        $region27: #{conve_forward.1} parent=11 // pred_region
          _
        $region28: #{conve_forward.1} parent=11 // pred_fallthru
          _
        // Predicated region
        $region29: #{conve_forward.1} parent=11 // pred_check
          %p255 = pneg %p147
        $region30: #{conve_forward.1} parent=11 // pred_check_branch
          %257 = sbr.rel (%p255) target = $region32
        $region31: #{conve_forward.1} parent=11 // pred_region
          _
        $region32: #{conve_forward.1} parent=11 // pred_fallthru
          _
        // Predicated region
        $region33: #{conve_forward.1} parent=11 // pred_check
          %p258 = pneg %p168
        $region34: #{conve_forward.1} parent=11 // pred_check_branch
          %260 = sbr.rel (%p258) target = $region36
        $region35: #{conve_forward.1} parent=11 // pred_region
          _
        $region36: #{conve_forward.1} parent=11 // pred_fallthru
          _
        // Predicated region
        $region37: #{conve_forward.1} parent=11 // pred_check
          %p261 = pneg %p189
        $region38: #{conve_forward.1} parent=11 // pred_check_branch
          %263 = sbr.rel (%p261) target = $region40
        $region39: #{conve_forward.1} parent=11 // pred_region
          _
        $region40: #{conve_forward.1} parent=11 // pred_fallthru
          _
      $region12: #{conve_forward.1} parent=5 // pred_fallthru
        _
      %p264 = scmp.lt.s32.totalorder %s16, 4
      // Predicated region
      $region41: #{conve_forward.1} parent=5 // pred_check
        %p265 = pneg %p264
      $region42: #{conve_forward.1} parent=5 // pred_check_branch
        %267 = sbr.rel (%p265) target = $region44
      $region43: #{conve_forward.1} parent=5 // pred_region
        // Predicated region
        $region45: #{conve_forward.1} parent=43 // pred_check
          %p268 = pneg %p99
        $region46: #{conve_forward.1} parent=43 // pred_check_branch
          %270 = sbr.rel (%p268) target = $region48
        $region47: #{conve_forward.1} parent=43 // pred_region
          %p271 = scmp.lt.s32.totalorder %s16, 3
          %s272 = scalar_select %p271, %s16, 3
          %s273 = smul.addr %s272, 768
          %s274 = smul.addr %s273, 4
          %s275 = scalar_lea.vmem %s3, %s274
        $region48: #{conve_forward.1} parent=43 // pred_fallthru
          _
      $region44: #{conve_forward.1} parent=5 // pred_fallthru
        _
      %p276 = scmp.le.s32.totalorder 1, %s16
      %p277 = scmp.lt.s32.totalorder %s16, 5
      %p278 = pnand %p276, %p277
      %p279 = pneg %p278
      // Predicated region
      $region49: #{conve_forward.1} parent=5 // pred_check
        _
      $region50: #{conve_forward.1} parent=5 // pred_check_branch
        %281 = sbr.rel (%p278) target = $region52
      $region51: #{conve_forward.1} parent=5 // pred_region
        %s282 = ssub.s32 %s16, 1
        // Predicated region
        $region53: #{conve_forward.1} parent=51 // pred_check
          %p283 = pneg %p58
        $region54: #{conve_forward.1} parent=51 // pred_check_branch
          %285 = sbr.rel (%p283) target = $region56
        $region55: #{conve_forward.1} parent=51 // pred_region
          %286 = dma.done [#allocation5], 512
        $region56: #{conve_forward.1} parent=51 // pred_fallthru
          _
        // Predicated region
        $region57: #{conve_forward.1} parent=51 // pred_check
          %p287 = pneg %p79
        $region58: #{conve_forward.1} parent=51 // pred_check_branch
          %289 = sbr.rel (%p287) target = $region60
        $region59: #{conve_forward.1} parent=51 // pred_region
          %290 = dma.done [#allocation7], 16
        $region60: #{conve_forward.1} parent=51 // pred_fallthru
          _
        %291 = sfence
        %p292 = pneg %p37
        %p293 = pneg %p34
        %p294 = pneg %p58
        %p295 = pneg %p55
        %p296 = pneg %p79
        %p297 = pneg %p76
        %p298 = scmp.lt.s32.totalorder %s21, 3
        %s299 = scalar_select %p298, %s21, 3
        %s300 = smul.addr %s299, 768
        %s301 = smul.addr %s300, 4
        %s302 = scalar_lea.vmem %s3, %s301
        %p303 = pneg %p105
        %p304 = pneg %p102
        %p305 = pneg %p126
        %p306 = pneg %p123
        %p307 = pneg %p147
        %p308 = pneg %p144
        %p309 = pneg %p168
        %p310 = pneg %p165
        %p311 = pneg %p189
        %p312 = pneg %p186
        %p313 = pneg %p210
        %p314 = pneg %p207
        %p315 = scmp.lt.s32.totalorder %s21, 3
        %s316 = scalar_select %p315, %s21, 3
        %s317 = smul.addr %s316, 768
        %s318 = smul.addr %s317, 4
        %s319 = scalar_lea.vmem %s3, %s318
        %p320 = scmp.eq.s32.totalorder %s21, 0
        // Predicated region
        $region61: #{conve_forward.1} parent=51 // pred_check
          %p321 = pneg %p320
        $region62: #{conve_forward.1} parent=51 // pred_check_branch
          %323 = sbr.rel (%p321) target = $region64
        $region63: #{conve_forward.1} parent=51 // pred_region
          %324 = vst [vmem:[#allocation2] sm:$0xff] 0.0
          %vm325 = vcmask 588800
          %326 = vst.msk [vmem:[#allocation2 + $0x8] sm:$0xff] %vm325, 0.0
          %327 = vst [vmem:[#allocation3] sm:$0xff] 0.0
          %328 = vst [vmem:[#allocation3 + $0x8] sm:$0xff] 0.0
          %329 = vst [vmem:[#allocation3 + $0x10] sm:$0xff] 0.0
          %330 = vst [vmem:[#allocation3 + $0x18] sm:$0xff] 0.0
          %331 = vst [vmem:[#allocation3 + $0x20] sm:$0xff] 0.0
          %332 = vst [vmem:[#allocation3 + $0x28] sm:$0xff] 0.0
          %333 = vst [vmem:[#allocation3 + $0x30] sm:$0xff] 0.0
          %334 = vst [vmem:[#allocation3 + $0x38] sm:$0xff] 0.0
          %335 = vst [vmem:[#allocation3 + $0x40] sm:$0xff] 0.0
          %336 = vst [vmem:[#allocation3 + $0x48] sm:$0xff] 0.0
          %337 = vst [vmem:[#allocation3 + $0x50] sm:$0xff] 0.0
          %338 = vst [vmem:[#allocation3 + $0x58] sm:$0xff] 0.0
          %339 = vst [vmem:[#allocation3 + $0x60] sm:$0xff] 0.0
          %340 = vst [vmem:[#allocation3 + $0x68] sm:$0xff] 0.0
          %341 = vst [vmem:[#allocation3 + $0x70] sm:$0xff] 0.0
          %342 = vst [vmem:[#allocation3 + $0x78] sm:$0xff] 0.0
          %343 = vst [vmem:[#allocation3 + $0x80] sm:$0xff] 0.0
          %344 = vst [vmem:[#allocation3 + $0x88] sm:$0xff] 0.0
          %345 = vst [vmem:[#allocation3 + $0x90] sm:$0xff] 0.0
          %346 = vst [vmem:[#allocation3 + $0x98] sm:$0xff] 0.0
          %347 = vst [vmem:[#allocation3 + $0xa0] sm:$0xff] 0.0
          %348 = vst [vmem:[#allocation3 + $0xa8] sm:$0xff] 0.0
          %349 = vst [vmem:[#allocation3 + $0xb0] sm:$0xff] 0.0
          %350 = vst [vmem:[#allocation3 + $0xb8] sm:$0xff] 0.0
        $region64: #{conve_forward.1} parent=51 // pred_fallthru
          _
        %v351 = vld [vmem:[%s0] sm:$0xff]
        %v352 = vld [vmem:[%s0 + $0x8] sm:$0xff]
        %v353 = vld [vmem:[%s0 + $0x10] sm:$0xff]
        %s354 = scalar_lea.vmem %s0, 24
        %v355 = vld [vmem:[%s354] sm:$0xff]
        %v356 = vld [vmem:[%s354 + $0x8] sm:$0xff]
        %v357 = vld [vmem:[%s354 + $0x10] sm:$0xff]
        %s358 = scalar_lea.vmem %s0, 48
        %v359 = vld [vmem:[%s358] sm:$0xff]
        %v360 = vld [vmem:[%s358 + $0x8] sm:$0xff]
        %v361 = vld [vmem:[%s358 + $0x10] sm:$0xff]
        %s362 = scalar_lea.vmem %s0, 72
        %v363 = vld [vmem:[%s362] sm:$0xff]
        %v364 = vld [vmem:[%s362 + $0x8] sm:$0xff]
        %v365 = vld [vmem:[%s362 + $0x10] sm:$0xff]
        %s366 = scalar_lea.vmem %s0, 96
        %v367 = vld [vmem:[%s366] sm:$0xff]
        %v368 = vld [vmem:[%s366 + $0x8] sm:$0xff]
        %v369 = vld [vmem:[%s366 + $0x10] sm:$0xff]
        %s370 = scalar_lea.vmem %s0, 120
        %v371 = vld [vmem:[%s370] sm:$0xff]
        %v372 = vld [vmem:[%s370 + $0x8] sm:$0xff]
        %v373 = vld [vmem:[%s370 + $0x10] sm:$0xff]
        %s374 = scalar_lea.vmem %s0, 144
        %v375 = vld [vmem:[%s374] sm:$0xff]
        %v376 = vld [vmem:[%s374 + $0x8] sm:$0xff]
        %v377 = vld [vmem:[%s374 + $0x10] sm:$0xff]
        %s378 = scalar_lea.vmem %s0, 168
        %v379 = vld [vmem:[%s378] sm:$0xff]
        %v380 = vld [vmem:[%s378 + $0x8] sm:$0xff]
        %v381 = vld [vmem:[%s378 + $0x10] sm:$0xff]
        %s382 = scalar_lea.vmem %s0, 192
        %v383 = vld [vmem:[%s382] sm:$0xff]
        %v384 = vld [vmem:[%s382 + $0x8] sm:$0xff]
        %v385 = vld [vmem:[%s382 + $0x10] sm:$0xff]
        %s386 = smul.u32 %s21, 8
        %s387 = smul.u32 %s386, 128
        %s388 = sld [smem:[#allocation4 + %s387]]
        %v389 = vstv %s388
        %v390 = vmul.f32 %v389, %v351
        %v391 = vmul.f32 %v389, %v352
        %v392 = vmul.f32 %v389, %v353
        %s393 = sadd.s32 %s387, 1
        %s394 = sld [smem:[#allocation4 + %s393]]
        %v395 = vstv %s394
        %v396 = vmul.f32 %v395, %v355
        %v397 = vmul.f32 %v395, %v356
        %v398 = vmul.f32 %v395, %v357
        %v399 = vadd.f32 %v390, %v396
        %v400 = vadd.f32 %v391, %v397
        %v401 = vadd.f32 %v392, %v398
        %s402 = sadd.s32 %s387, 2
        %s403 = sld [smem:[#allocation4 + %s402]]
        %v404 = vstv %s403
        %v405 = vmul.f32 %v404, %v359
        %v406 = vmul.f32 %v404, %v360
        %v407 = vmul.f32 %v404, %v361
        %v408 = vadd.f32 %v399, %v405
        %v409 = vadd.f32 %v400, %v406
        %v410 = vadd.f32 %v401, %v407
        %s411 = sadd.s32 %s387, 3
        %s412 = sld [smem:[#allocation4 + %s411]]
        %v413 = vstv %s412
        %v414 = vmul.f32 %v413, %v363
        %v415 = vmul.f32 %v413, %v364
        %v416 = vmul.f32 %v413, %v365
        %v417 = vadd.f32 %v408, %v414
        %v418 = vadd.f32 %v409, %v415
        %v419 = vadd.f32 %v410, %v416
        %s420 = sadd.s32 %s387, 4
        %s421 = sld [smem:[#allocation4 + %s420]]
        %v422 = vstv %s421
        %v423 = vmul.f32 %v422, %v367
        %v424 = vmul.f32 %v422, %v368
        %v425 = vmul.f32 %v422, %v369
        %v426 = vadd.f32 %v417, %v423
        %v427 = vadd.f32 %v418, %v424
        %v428 = vadd.f32 %v419, %v425
        %s429 = sadd.s32 %s387, 5
        %s430 = sld [smem:[#allocation4 + %s429]]
        %v431 = vstv %s430
        %v432 = vmul.f32 %v431, %v371
        %v433 = vmul.f32 %v431, %v372
        %v434 = vmul.f32 %v431, %v373
        %v435 = vadd.f32 %v426, %v432
        %v436 = vadd.f32 %v427, %v433
        %v437 = vadd.f32 %v428, %v434
        %s438 = sadd.s32 %s387, 6
        %s439 = sld [smem:[#allocation4 + %s438]]
        %v440 = vstv %s439
        %v441 = vmul.f32 %v440, %v375
        %v442 = vmul.f32 %v440, %v376
        %v443 = vmul.f32 %v440, %v377
        %v444 = vadd.f32 %v435, %v441
        %v445 = vadd.f32 %v436, %v442
        %v446 = vadd.f32 %v437, %v443
        %s447 = sadd.s32 %s387, 7
        %s448 = sld [smem:[#allocation4 + %s447]]
        %v449 = vstv %s448
        %v450 = vmul.f32 %v449, %v379
        %v451 = vmul.f32 %v449, %v380
        %v452 = vmul.f32 %v449, %v381
        %v453 = vadd.f32 %v444, %v450
        %v454 = vadd.f32 %v445, %v451
        %v455 = vadd.f32 %v446, %v452
        %s456 = sadd.s32 %s387, 8
        %s457 = sld [smem:[#allocation4 + %s456]]
        %v458 = vstv %s457
        %v459 = vmul.f32 %v458, %v383
        %v460 = vmul.f32 %v458, %v384
        %v461 = vmul.f32 %v458, %v385
        %v462 = vadd.f32 %v453, %v459
        %v463 = vadd.f32 %v454, %v460
        %v464 = vadd.f32 %v455, %v461
        %s465 = sld [smem:[#allocation6 + %s386]]
        %v466 = vstv %s465
        %v467 = vadd.f32 %v462, %v466
        %v468 = vadd.f32 %v463, %v466
        %v469 = vadd.f32 %v464, %v466
        %v470 = vmax.f32 %v467, 0.0
        %v471 = vmax.f32 %v468, 0.0
        %v472 = vmax.f32 %v469, 0.0
        %v473 = vadd.f32 %v470, %v471
        %vm474 = vcmask 556032
        %v475 = vsel %vm474, %v472, 0.0
        %v476 = vadd.f32 %v473, %v475
        %477 = vadd.xlane.f32.xlu0 %v476
        %v478 = vpop.xlane.xlu0 %477
        %v479 = vrot.slane %v478, 4
        %v480 = vadd.f32 %v478, %v479
        %v481 = vrot.slane %v480, 2
        %v482 = vadd.f32 %v480, %v481
        %v483 = vrot.slane %v482, 1
        %v484 = vadd.f32 %v482, %v483
        %s485 = vtos %v484
        %v486 = vstv %s485
        %v487 = vrcp.pop 2592.0
        %v488 = vmul.f32 %v486, %v487
        %v489 = vsub.f32 %v470, %v488
        %v490 = vsub.f32 %v471, %v488
        %v491 = vsub.f32 %v472, %v488
        %v492 = vmul.f32 %v489, %v489
        %v493 = vmul.f32 %v490, %v490
        %v494 = vmul.f32 %v491, %v491
        %v495 = vadd.f32 %v492, %v493
        %v496 = vsel %vm474, %v494, 0.0
        %v497 = vadd.f32 %v495, %v496
        %498 = vadd.xlane.f32.xlu0 %v497
        %v499 = vpop.xlane.xlu0 %498
        %v500 = vrot.slane %v499, 4
        %v501 = vadd.f32 %v499, %v500
        %v502 = vrot.slane %v501, 2
        %v503 = vadd.f32 %v501, %v502
        %v504 = vrot.slane %v503, 1
        %v505 = vadd.f32 %v503, %v504
        %s506 = vtos %v505
        %v507 = vstv %s506
        %v508 = vmul.f32 %v507, %v487
        %v509 = vadd.f32 %v508, 1e-05
        %v510 = vrsqrt.pop %v509
        %v511 = vmul.f32 %v489, %v510
        %v512 = vmul.f32 %v490, %v510
        %v513 = vmul.f32 %v491, %v510
        %514 = vst [vmem:[#allocation3] sm:$0xff] %v511
        %515 = vst [vmem:[#allocation3 + $0x8] sm:$0xff] %v512
        %516 = vst.msk [vmem:[#allocation3 + $0x10] sm:$0xff] %vm474, %v513
        %s517 = sadd.s32 %s386, 1
        %s518 = smul.u32 %s517, 128
        %s519 = sld [smem:[#allocation4 + %s518]]
        %v520 = vstv %s519
        %v521 = vmul.f32 %v520, %v351
        %v522 = vmul.f32 %v520, %v352
        %v523 = vmul.f32 %v520, %v353
        %s524 = sadd.s32 %s518, 1
        %s525 = sld [smem:[#allocation4 + %s524]]
        %v526 = vstv %s525
        %v527 = vmul.f32 %v526, %v355
        %v528 = vmul.f32 %v526, %v356
        %v529 = vmul.f32 %v526, %v357
        %v530 = vadd.f32 %v521, %v527
        %v531 = vadd.f32 %v522, %v528
        %v532 = vadd.f32 %v523, %v529
        %s533 = sadd.s32 %s518, 2
        %s534 = sld [smem:[#allocation4 + %s533]]
        %v535 = vstv %s534
        %v536 = vmul.f32 %v535, %v359
        %v537 = vmul.f32 %v535, %v360
        %v538 = vmul.f32 %v535, %v361
        %v539 = vadd.f32 %v530, %v536
        %v540 = vadd.f32 %v531, %v537
        %v541 = vadd.f32 %v532, %v538
        %s542 = sadd.s32 %s518, 3
        %s543 = sld [smem:[#allocation4 + %s542]]
        %v544 = vstv %s543
        %v545 = vmul.f32 %v544, %v363
        %v546 = vmul.f32 %v544, %v364
        %v547 = vmul.f32 %v544, %v365
        %v548 = vadd.f32 %v539, %v545
        %v549 = vadd.f32 %v540, %v546
        %v550 = vadd.f32 %v541, %v547
        %s551 = sadd.s32 %s518, 4
        %s552 = sld [smem:[#allocation4 + %s551]]
        %v553 = vstv %s552
        %v554 = vmul.f32 %v553, %v367
        %v555 = vmul.f32 %v553, %v368
        %v556 = vmul.f32 %v553, %v369
        %v557 = vadd.f32 %v548, %v554
        %v558 = vadd.f32 %v549, %v555
        %v559 = vadd.f32 %v550, %v556
        %s560 = sadd.s32 %s518, 5
        %s561 = sld [smem:[#allocation4 + %s560]]
        %v562 = vstv %s561
        %v563 = vmul.f32 %v562, %v371
        %v564 = vmul.f32 %v562, %v372
        %v565 = vmul.f32 %v562, %v373
        %v566 = vadd.f32 %v557, %v563
        %v567 = vadd.f32 %v558, %v564
        %v568 = vadd.f32 %v559, %v565
        %s569 = sadd.s32 %s518, 6
        %s570 = sld [smem:[#allocation4 + %s569]]
        %v571 = vstv %s570
        %v572 = vmul.f32 %v571, %v375
        %v573 = vmul.f32 %v571, %v376
        %v574 = vmul.f32 %v571, %v377
        %v575 = vadd.f32 %v566, %v572
        %v576 = vadd.f32 %v567, %v573
        %v577 = vadd.f32 %v568, %v574
        %s578 = sadd.s32 %s518, 7
        %s579 = sld [smem:[#allocation4 + %s578]]
        %v580 = vstv %s579
        %v581 = vmul.f32 %v580, %v379
        %v582 = vmul.f32 %v580, %v380
        %v583 = vmul.f32 %v580, %v381
        %v584 = vadd.f32 %v575, %v581
        %v585 = vadd.f32 %v576, %v582
        %v586 = vadd.f32 %v577, %v583
        %s587 = sadd.s32 %s518, 8
        %s588 = sld [smem:[#allocation4 + %s587]]
        %v589 = vstv %s588
        %v590 = vmul.f32 %v589, %v383
        %v591 = vmul.f32 %v589, %v384
        %v592 = vmul.f32 %v589, %v385
        %v593 = vadd.f32 %v584, %v590
        %v594 = vadd.f32 %v585, %v591
        %v595 = vadd.f32 %v586, %v592
        %s596 = sld [smem:[#allocation6 + %s517]]
        %v597 = vstv %s596
        %v598 = vadd.f32 %v593, %v597
        %v599 = vadd.f32 %v594, %v597
        %v600 = vadd.f32 %v595, %v597
        %v601 = vmax.f32 %v598, 0.0
        %v602 = vmax.f32 %v599, 0.0
        %v603 = vmax.f32 %v600, 0.0
        %v604 = vadd.f32 %v601, %v602
        %v605 = vsel %vm474, %v603, 0.0
        %v606 = vadd.f32 %v604, %v605
        %607 = vadd.xlane.f32.xlu0 %v606
        %v608 = vpop.xlane.xlu0 %607
        %v609 = vrot.slane %v608, 4
        %v610 = vadd.f32 %v608, %v609
        %v611 = vrot.slane %v610, 2
        %v612 = vadd.f32 %v610, %v611
        %v613 = vrot.slane %v612, 1
        %v614 = vadd.f32 %v612, %v613
        %s615 = vtos %v614
        %v616 = vstv %s615
        %v617 = vmul.f32 %v616, %v487
        %v618 = vsub.f32 %v601, %v617
        %v619 = vsub.f32 %v602, %v617
        %v620 = vsub.f32 %v603, %v617
        %v621 = vmul.f32 %v618, %v618
        %v622 = vmul.f32 %v619, %v619
        %v623 = vmul.f32 %v620, %v620
        %v624 = vadd.f32 %v621, %v622
        %v625 = vsel %vm474, %v623, 0.0
        %v626 = vadd.f32 %v624, %v625
        %627 = vadd.xlane.f32.xlu0 %v626
        %v628 = vpop.xlane.xlu0 %627
        %v629 = vrot.slane %v628, 4
        %v630 = vadd.f32 %v628, %v629
        %v631 = vrot.slane %v630, 2
        %v632 = vadd.f32 %v630, %v631
        %v633 = vrot.slane %v632, 1
        %v634 = vadd.f32 %v632, %v633
        %s635 = vtos %v634
        %v636 = vstv %s635
        %v637 = vmul.f32 %v636, %v487
        %v638 = vadd.f32 %v637, 1e-05
        %v639 = vrsqrt.pop %v638
        %v640 = vmul.f32 %v618, %v639
        %v641 = vmul.f32 %v619, %v639
        %v642 = vmul.f32 %v620, %v639
        %643 = vst [vmem:[#allocation3 + $0x18] sm:$0xff] %v640
        %644 = vst [vmem:[#allocation3 + $0x20] sm:$0xff] %v641
        %645 = vst.msk [vmem:[#allocation3 + $0x28] sm:$0xff] %vm474, %v642
        %s646 = sadd.s32 %s386, 2
        %s647 = smul.u32 %s646, 128
        %s648 = sld [smem:[#allocation4 + %s647]]
        %v649 = vstv %s648
        %v650 = vmul.f32 %v649, %v351
        %v651 = vmul.f32 %v649, %v352
        %v652 = vmul.f32 %v649, %v353
        %s653 = sadd.s32 %s647, 1
        %s654 = sld [smem:[#allocation4 + %s653]]
        %v655 = vstv %s654
        %v656 = vmul.f32 %v655, %v355
        %v657 = vmul.f32 %v655, %v356
        %v658 = vmul.f32 %v655, %v357
        %v659 = vadd.f32 %v650, %v656
        %v660 = vadd.f32 %v651, %v657
        %v661 = vadd.f32 %v652, %v658
        %s662 = sadd.s32 %s647, 2
        %s663 = sld [smem:[#allocation4 + %s662]]
        %v664 = vstv %s663
        %v665 = vmul.f32 %v664, %v359
        %v666 = vmul.f32 %v664, %v360
        %v667 = vmul.f32 %v664, %v361
        %v668 = vadd.f32 %v659, %v665
        %v669 = vadd.f32 %v660, %v666
        %v670 = vadd.f32 %v661, %v667
        %s671 = sadd.s32 %s647, 3
        %s672 = sld [smem:[#allocation4 + %s671]]
        %v673 = vstv %s672
        %v674 = vmul.f32 %v673, %v363
        %v675 = vmul.f32 %v673, %v364
        %v676 = vmul.f32 %v673, %v365
        %v677 = vadd.f32 %v668, %v674
        %v678 = vadd.f32 %v669, %v675
        %v679 = vadd.f32 %v670, %v676
        %s680 = sadd.s32 %s647, 4
        %s681 = sld [smem:[#allocation4 + %s680]]
        %v682 = vstv %s681
        %v683 = vmul.f32 %v682, %v367
        %v684 = vmul.f32 %v682, %v368
        %v685 = vmul.f32 %v682, %v369
        %v686 = vadd.f32 %v677, %v683
        %v687 = vadd.f32 %v678, %v684
        %v688 = vadd.f32 %v679, %v685
        %s689 = sadd.s32 %s647, 5
        %s690 = sld [smem:[#allocation4 + %s689]]
        %v691 = vstv %s690
        %v692 = vmul.f32 %v691, %v371
        %v693 = vmul.f32 %v691, %v372
        %v694 = vmul.f32 %v691, %v373
        %v695 = vadd.f32 %v686, %v692
        %v696 = vadd.f32 %v687, %v693
        %v697 = vadd.f32 %v688, %v694
        %s698 = sadd.s32 %s647, 6
        %s699 = sld [smem:[#allocation4 + %s698]]
        %v700 = vstv %s699
        %v701 = vmul.f32 %v700, %v375
        %v702 = vmul.f32 %v700, %v376
        %v703 = vmul.f32 %v700, %v377
        %v704 = vadd.f32 %v695, %v701
        %v705 = vadd.f32 %v696, %v702
        %v706 = vadd.f32 %v697, %v703
        %s707 = sadd.s32 %s647, 7
        %s708 = sld [smem:[#allocation4 + %s707]]
        %v709 = vstv %s708
        %v710 = vmul.f32 %v709, %v379
        %v711 = vmul.f32 %v709, %v380
        %v712 = vmul.f32 %v709, %v381
        %v713 = vadd.f32 %v704, %v710
        %v714 = vadd.f32 %v705, %v711
        %v715 = vadd.f32 %v706, %v712
        %s716 = sadd.s32 %s647, 8
        %s717 = sld [smem:[#allocation4 + %s716]]
        %v718 = vstv %s717
        %v719 = vmul.f32 %v718, %v383
        %v720 = vmul.f32 %v718, %v384
        %v721 = vmul.f32 %v718, %v385
        %v722 = vadd.f32 %v713, %v719
        %v723 = vadd.f32 %v714, %v720
        %v724 = vadd.f32 %v715, %v721
        %s725 = sld [smem:[#allocation6 + %s646]]
        %v726 = vstv %s725
        %v727 = vadd.f32 %v722, %v726
        %v728 = vadd.f32 %v723, %v726
        %v729 = vadd.f32 %v724, %v726
        %v730 = vmax.f32 %v727, 0.0
        %v731 = vmax.f32 %v728, 0.0
        %v732 = vmax.f32 %v729, 0.0
        %v733 = vadd.f32 %v730, %v731
        %v734 = vsel %vm474, %v732, 0.0
        %v735 = vadd.f32 %v733, %v734
        %736 = vadd.xlane.f32.xlu0 %v735
        %v737 = vpop.xlane.xlu0 %736
        %v738 = vrot.slane %v737, 4
        %v739 = vadd.f32 %v737, %v738
        %v740 = vrot.slane %v739, 2
        %v741 = vadd.f32 %v739, %v740
        %v742 = vrot.slane %v741, 1
        %v743 = vadd.f32 %v741, %v742
        %s744 = vtos %v743
        %v745 = vstv %s744
        %v746 = vmul.f32 %v745, %v487
        %v747 = vsub.f32 %v730, %v746
        %v748 = vsub.f32 %v731, %v746
        %v749 = vsub.f32 %v732, %v746
        %v750 = vmul.f32 %v747, %v747
        %v751 = vmul.f32 %v748, %v748
        %v752 = vmul.f32 %v749, %v749
        %v753 = vadd.f32 %v750, %v751
        %v754 = vsel %vm474, %v752, 0.0
        %v755 = vadd.f32 %v753, %v754
        %756 = vadd.xlane.f32.xlu0 %v755
        %v757 = vpop.xlane.xlu0 %756
        %v758 = vrot.slane %v757, 4
        %v759 = vadd.f32 %v757, %v758
        %v760 = vrot.slane %v759, 2
        %v761 = vadd.f32 %v759, %v760
        %v762 = vrot.slane %v761, 1
        %v763 = vadd.f32 %v761, %v762
        %s764 = vtos %v763
        %v765 = vstv %s764
        %v766 = vmul.f32 %v765, %v487
        %v767 = vadd.f32 %v766, 1e-05
        %v768 = vrsqrt.pop %v767
        %v769 = vmul.f32 %v747, %v768
        %v770 = vmul.f32 %v748, %v768
        %v771 = vmul.f32 %v749, %v768
        %772 = vst [vmem:[#allocation3 + $0x30] sm:$0xff] %v769
        %773 = vst [vmem:[#allocation3 + $0x38] sm:$0xff] %v770
        %774 = vst.msk [vmem:[#allocation3 + $0x40] sm:$0xff] %vm474, %v771
        %s775 = sadd.s32 %s386, 3
        %s776 = smul.u32 %s775, 128
        %s777 = sld [smem:[#allocation4 + %s776]]
        %v778 = vstv %s777
        %v779 = vmul.f32 %v778, %v351
        %v780 = vmul.f32 %v778, %v352
        %v781 = vmul.f32 %v778, %v353
        %s782 = sadd.s32 %s776, 1
        %s783 = sld [smem:[#allocation4 + %s782]]
        %v784 = vstv %s783
        %v785 = vmul.f32 %v784, %v355
        %v786 = vmul.f32 %v784, %v356
        %v787 = vmul.f32 %v784, %v357
        %v788 = vadd.f32 %v779, %v785
        %v789 = vadd.f32 %v780, %v786
        %v790 = vadd.f32 %v781, %v787
        %s791 = sadd.s32 %s776, 2
        %s792 = sld [smem:[#allocation4 + %s791]]
        %v793 = vstv %s792
        %v794 = vmul.f32 %v793, %v359
        %v795 = vmul.f32 %v793, %v360
        %v796 = vmul.f32 %v793, %v361
        %v797 = vadd.f32 %v788, %v794
        %v798 = vadd.f32 %v789, %v795
        %v799 = vadd.f32 %v790, %v796
        %s800 = sadd.s32 %s776, 3
        %s801 = sld [smem:[#allocation4 + %s800]]
        %v802 = vstv %s801
        %v803 = vmul.f32 %v802, %v363
        %v804 = vmul.f32 %v802, %v364
        %v805 = vmul.f32 %v802, %v365
        %v806 = vadd.f32 %v797, %v803
        %v807 = vadd.f32 %v798, %v804
        %v808 = vadd.f32 %v799, %v805
        %s809 = sadd.s32 %s776, 4
        %s810 = sld [smem:[#allocation4 + %s809]]
        %v811 = vstv %s810
        %v812 = vmul.f32 %v811, %v367
        %v813 = vmul.f32 %v811, %v368
        %v814 = vmul.f32 %v811, %v369
        %v815 = vadd.f32 %v806, %v812
        %v816 = vadd.f32 %v807, %v813
        %v817 = vadd.f32 %v808, %v814
        %s818 = sadd.s32 %s776, 5
        %s819 = sld [smem:[#allocation4 + %s818]]
        %v820 = vstv %s819
        %v821 = vmul.f32 %v820, %v371
        %v822 = vmul.f32 %v820, %v372
        %v823 = vmul.f32 %v820, %v373
        %v824 = vadd.f32 %v815, %v821
        %v825 = vadd.f32 %v816, %v822
        %v826 = vadd.f32 %v817, %v823
        %s827 = sadd.s32 %s776, 6
        %s828 = sld [smem:[#allocation4 + %s827]]
        %v829 = vstv %s828
        %v830 = vmul.f32 %v829, %v375
        %v831 = vmul.f32 %v829, %v376
        %v832 = vmul.f32 %v829, %v377
        %v833 = vadd.f32 %v824, %v830
        %v834 = vadd.f32 %v825, %v831
        %v835 = vadd.f32 %v826, %v832
        %s836 = sadd.s32 %s776, 7
        %s837 = sld [smem:[#allocation4 + %s836]]
        %v838 = vstv %s837
        %v839 = vmul.f32 %v838, %v379
        %v840 = vmul.f32 %v838, %v380
        %v841 = vmul.f32 %v838, %v381
        %v842 = vadd.f32 %v833, %v839
        %v843 = vadd.f32 %v834, %v840
        %v844 = vadd.f32 %v835, %v841
        %s845 = sadd.s32 %s776, 8
        %s846 = sld [smem:[#allocation4 + %s845]]
        %v847 = vstv %s846
        %v848 = vmul.f32 %v847, %v383
        %v849 = vmul.f32 %v847, %v384
        %v850 = vmul.f32 %v847, %v385
        %v851 = vadd.f32 %v842, %v848
        %v852 = vadd.f32 %v843, %v849
        %v853 = vadd.f32 %v844, %v850
        %s854 = sld [smem:[#allocation6 + %s775]]
        %v855 = vstv %s854
        %v856 = vadd.f32 %v851, %v855
        %v857 = vadd.f32 %v852, %v855
        %v858 = vadd.f32 %v853, %v855
        %v859 = vmax.f32 %v856, 0.0
        %v860 = vmax.f32 %v857, 0.0
        %v861 = vmax.f32 %v858, 0.0
        %v862 = vadd.f32 %v859, %v860
        %v863 = vsel %vm474, %v861, 0.0
        %v864 = vadd.f32 %v862, %v863
        %865 = vadd.xlane.f32.xlu0 %v864
        %v866 = vpop.xlane.xlu0 %865
        %v867 = vrot.slane %v866, 4
        %v868 = vadd.f32 %v866, %v867
        %v869 = vrot.slane %v868, 2
        %v870 = vadd.f32 %v868, %v869
        %v871 = vrot.slane %v870, 1
        %v872 = vadd.f32 %v870, %v871
        %s873 = vtos %v872
        %v874 = vstv %s873
        %v875 = vmul.f32 %v874, %v487
        %v876 = vsub.f32 %v859, %v875
        %v877 = vsub.f32 %v860, %v875
        %v878 = vsub.f32 %v861, %v875
        %v879 = vmul.f32 %v876, %v876
        %v880 = vmul.f32 %v877, %v877
        %v881 = vmul.f32 %v878, %v878
        %v882 = vadd.f32 %v879, %v880
        %v883 = vsel %vm474, %v881, 0.0
        %v884 = vadd.f32 %v882, %v883
        %885 = vadd.xlane.f32.xlu0 %v884
        %v886 = vpop.xlane.xlu0 %885
        %v887 = vrot.slane %v886, 4
        %v888 = vadd.f32 %v886, %v887
        %v889 = vrot.slane %v888, 2
        %v890 = vadd.f32 %v888, %v889
        %v891 = vrot.slane %v890, 1
        %v892 = vadd.f32 %v890, %v891
        %s893 = vtos %v892
        %v894 = vstv %s893
        %v895 = vmul.f32 %v894, %v487
        %v896 = vadd.f32 %v895, 1e-05
        %v897 = vrsqrt.pop %v896
        %v898 = vmul.f32 %v876, %v897
        %v899 = vmul.f32 %v877, %v897
        %v900 = vmul.f32 %v878, %v897
        %901 = vst [vmem:[#allocation3 + $0x48] sm:$0xff] %v898
        %902 = vst [vmem:[#allocation3 + $0x50] sm:$0xff] %v899
        %903 = vst.msk [vmem:[#allocation3 + $0x58] sm:$0xff] %vm474, %v900
        %s904 = sadd.s32 %s386, 4
        %s905 = smul.u32 %s904, 128
        %s906 = sld [smem:[#allocation4 + %s905]]
        %v907 = vstv %s906
        %v908 = vmul.f32 %v907, %v351
        %v909 = vmul.f32 %v907, %v352
        %v910 = vmul.f32 %v907, %v353
        %s911 = sadd.s32 %s905, 1
        %s912 = sld [smem:[#allocation4 + %s911]]
        %v913 = vstv %s912
        %v914 = vmul.f32 %v913, %v355
        %v915 = vmul.f32 %v913, %v356
        %v916 = vmul.f32 %v913, %v357
        %v917 = vadd.f32 %v908, %v914
        %v918 = vadd.f32 %v909, %v915
        %v919 = vadd.f32 %v910, %v916
        %s920 = sadd.s32 %s905, 2
        %s921 = sld [smem:[#allocation4 + %s920]]
        %v922 = vstv %s921
        %v923 = vmul.f32 %v922, %v359
        %v924 = vmul.f32 %v922, %v360
        %v925 = vmul.f32 %v922, %v361
        %v926 = vadd.f32 %v917, %v923
        %v927 = vadd.f32 %v918, %v924
        %v928 = vadd.f32 %v919, %v925
        %s929 = sadd.s32 %s905, 3
        %s930 = sld [smem:[#allocation4 + %s929]]
        %v931 = vstv %s930
        %v932 = vmul.f32 %v931, %v363
        %v933 = vmul.f32 %v931, %v364
        %v934 = vmul.f32 %v931, %v365
        %v935 = vadd.f32 %v926, %v932
        %v936 = vadd.f32 %v927, %v933
        %v937 = vadd.f32 %v928, %v934
        %s938 = sadd.s32 %s905, 4
        %s939 = sld [smem:[#allocation4 + %s938]]
        %v940 = vstv %s939
        %v941 = vmul.f32 %v940, %v367
        %v942 = vmul.f32 %v940, %v368
        %v943 = vmul.f32 %v940, %v369
        %v944 = vadd.f32 %v935, %v941
        %v945 = vadd.f32 %v936, %v942
        %v946 = vadd.f32 %v937, %v943
        %s947 = sadd.s32 %s905, 5
        %s948 = sld [smem:[#allocation4 + %s947]]
        %v949 = vstv %s948
        %v950 = vmul.f32 %v949, %v371
        %v951 = vmul.f32 %v949, %v372
        %v952 = vmul.f32 %v949, %v373
        %v953 = vadd.f32 %v944, %v950
        %v954 = vadd.f32 %v945, %v951
        %v955 = vadd.f32 %v946, %v952
        %s956 = sadd.s32 %s905, 6
        %s957 = sld [smem:[#allocation4 + %s956]]
        %v958 = vstv %s957
        %v959 = vmul.f32 %v958, %v375
        %v960 = vmul.f32 %v958, %v376
        %v961 = vmul.f32 %v958, %v377
        %v962 = vadd.f32 %v953, %v959
        %v963 = vadd.f32 %v954, %v960
        %v964 = vadd.f32 %v955, %v961
        %s965 = sadd.s32 %s905, 7
        %s966 = sld [smem:[#allocation4 + %s965]]
        %v967 = vstv %s966
        %v968 = vmul.f32 %v967, %v379
        %v969 = vmul.f32 %v967, %v380
        %v970 = vmul.f32 %v967, %v381
        %v971 = vadd.f32 %v962, %v968
        %v972 = vadd.f32 %v963, %v969
        %v973 = vadd.f32 %v964, %v970
        %s974 = sadd.s32 %s905, 8
        %s975 = sld [smem:[#allocation4 + %s974]]
        %v976 = vstv %s975
        %v977 = vmul.f32 %v976, %v383
        %v978 = vmul.f32 %v976, %v384
        %v979 = vmul.f32 %v976, %v385
        %v980 = vadd.f32 %v971, %v977
        %v981 = vadd.f32 %v972, %v978
        %v982 = vadd.f32 %v973, %v979
        %s983 = sld [smem:[#allocation6 + %s904]]
        %v984 = vstv %s983
        %v985 = vadd.f32 %v980, %v984
        %v986 = vadd.f32 %v981, %v984
        %v987 = vadd.f32 %v982, %v984
        %v988 = vmax.f32 %v985, 0.0
        %v989 = vmax.f32 %v986, 0.0
        %v990 = vmax.f32 %v987, 0.0
        %v991 = vadd.f32 %v988, %v989
        %v992 = vsel %vm474, %v990, 0.0
        %v993 = vadd.f32 %v991, %v992
        %994 = vadd.xlane.f32.xlu0 %v993
        %v995 = vpop.xlane.xlu0 %994
        %v996 = vrot.slane %v995, 4
        %v997 = vadd.f32 %v995, %v996
        %v998 = vrot.slane %v997, 2
        %v999 = vadd.f32 %v997, %v998
        %v1000 = vrot.slane %v999, 1
        %v1001 = vadd.f32 %v999, %v1000
        %s1002 = vtos %v1001
        %v1003 = vstv %s1002
        %v1004 = vmul.f32 %v1003, %v487
        %v1005 = vsub.f32 %v988, %v1004
        %v1006 = vsub.f32 %v989, %v1004
        %v1007 = vsub.f32 %v990, %v1004
        %v1008 = vmul.f32 %v1005, %v1005
        %v1009 = vmul.f32 %v1006, %v1006
        %v1010 = vmul.f32 %v1007, %v1007
        %v1011 = vadd.f32 %v1008, %v1009
        %v1012 = vsel %vm474, %v1010, 0.0
        %v1013 = vadd.f32 %v1011, %v1012
        %1014 = vadd.xlane.f32.xlu0 %v1013
        %v1015 = vpop.xlane.xlu0 %1014
        %v1016 = vrot.slane %v1015, 4
        %v1017 = vadd.f32 %v1015, %v1016
        %v1018 = vrot.slane %v1017, 2
        %v1019 = vadd.f32 %v1017, %v1018
        %v1020 = vrot.slane %v1019, 1
        %v1021 = vadd.f32 %v1019, %v1020
        %s1022 = vtos %v1021
        %v1023 = vstv %s1022
        %v1024 = vmul.f32 %v1023, %v487
        %v1025 = vadd.f32 %v1024, 1e-05
        %v1026 = vrsqrt.pop %v1025
        %v1027 = vmul.f32 %v1005, %v1026
        %v1028 = vmul.f32 %v1006, %v1026
        %v1029 = vmul.f32 %v1007, %v1026
        %1030 = vst [vmem:[#allocation3 + $0x60] sm:$0xff] %v1027
        %1031 = vst [vmem:[#allocation3 + $0x68] sm:$0xff] %v1028
        %1032 = vst.msk [vmem:[#allocation3 + $0x70] sm:$0xff] %vm474, %v1029
        %s1033 = sadd.s32 %s386, 5
        %s1034 = smul.u32 %s1033, 128
        %s1035 = sld [smem:[#allocation4 + %s1034]]
        %v1036 = vstv %s1035
        %v1037 = vmul.f32 %v1036, %v351
        %v1038 = vmul.f32 %v1036, %v352
        %v1039 = vmul.f32 %v1036, %v353
        %s1040 = sadd.s32 %s1034, 1
        %s1041 = sld [smem:[#allocation4 + %s1040]]
        %v1042 = vstv %s1041
        %v1043 = vmul.f32 %v1042, %v355
        %v1044 = vmul.f32 %v1042, %v356
        %v1045 = vmul.f32 %v1042, %v357
        %v1046 = vadd.f32 %v1037, %v1043
        %v1047 = vadd.f32 %v1038, %v1044
        %v1048 = vadd.f32 %v1039, %v1045
        %s1049 = sadd.s32 %s1034, 2
        %s1050 = sld [smem:[#allocation4 + %s1049]]
        %v1051 = vstv %s1050
        %v1052 = vmul.f32 %v1051, %v359
        %v1053 = vmul.f32 %v1051, %v360
        %v1054 = vmul.f32 %v1051, %v361
        %v1055 = vadd.f32 %v1046, %v1052
        %v1056 = vadd.f32 %v1047, %v1053
        %v1057 = vadd.f32 %v1048, %v1054
        %s1058 = sadd.s32 %s1034, 3
        %s1059 = sld [smem:[#allocation4 + %s1058]]
        %v1060 = vstv %s1059
        %v1061 = vmul.f32 %v1060, %v363
        %v1062 = vmul.f32 %v1060, %v364
        %v1063 = vmul.f32 %v1060, %v365
        %v1064 = vadd.f32 %v1055, %v1061
        %v1065 = vadd.f32 %v1056, %v1062
        %v1066 = vadd.f32 %v1057, %v1063
        %s1067 = sadd.s32 %s1034, 4
        %s1068 = sld [smem:[#allocation4 + %s1067]]
        %v1069 = vstv %s1068
        %v1070 = vmul.f32 %v1069, %v367
        %v1071 = vmul.f32 %v1069, %v368
        %v1072 = vmul.f32 %v1069, %v369
        %v1073 = vadd.f32 %v1064, %v1070
        %v1074 = vadd.f32 %v1065, %v1071
        %v1075 = vadd.f32 %v1066, %v1072
        %s1076 = sadd.s32 %s1034, 5
        %s1077 = sld [smem:[#allocation4 + %s1076]]
        %v1078 = vstv %s1077
        %v1079 = vmul.f32 %v1078, %v371
        %v1080 = vmul.f32 %v1078, %v372
        %v1081 = vmul.f32 %v1078, %v373
        %v1082 = vadd.f32 %v1073, %v1079
        %v1083 = vadd.f32 %v1074, %v1080
        %v1084 = vadd.f32 %v1075, %v1081
        %s1085 = sadd.s32 %s1034, 6
        %s1086 = sld [smem:[#allocation4 + %s1085]]
        %v1087 = vstv %s1086
        %v1088 = vmul.f32 %v1087, %v375
        %v1089 = vmul.f32 %v1087, %v376
        %v1090 = vmul.f32 %v1087, %v377
        %v1091 = vadd.f32 %v1082, %v1088
        %v1092 = vadd.f32 %v1083, %v1089
        %v1093 = vadd.f32 %v1084, %v1090
        %s1094 = sadd.s32 %s1034, 7
        %s1095 = sld [smem:[#allocation4 + %s1094]]
        %v1096 = vstv %s1095
        %v1097 = vmul.f32 %v1096, %v379
        %v1098 = vmul.f32 %v1096, %v380
        %v1099 = vmul.f32 %v1096, %v381
        %v1100 = vadd.f32 %v1091, %v1097
        %v1101 = vadd.f32 %v1092, %v1098
        %v1102 = vadd.f32 %v1093, %v1099
        %s1103 = sadd.s32 %s1034, 8
        %s1104 = sld [smem:[#allocation4 + %s1103]]
        %v1105 = vstv %s1104
        %v1106 = vmul.f32 %v1105, %v383
        %v1107 = vmul.f32 %v1105, %v384
        %v1108 = vmul.f32 %v1105, %v385
        %v1109 = vadd.f32 %v1100, %v1106
        %v1110 = vadd.f32 %v1101, %v1107
        %v1111 = vadd.f32 %v1102, %v1108
        %s1112 = sld [smem:[#allocation6 + %s1033]]
        %v1113 = vstv %s1112
        %v1114 = vadd.f32 %v1109, %v1113
        %v1115 = vadd.f32 %v1110, %v1113
        %v1116 = vadd.f32 %v1111, %v1113
        %v1117 = vmax.f32 %v1114, 0.0
        %v1118 = vmax.f32 %v1115, 0.0
        %v1119 = vmax.f32 %v1116, 0.0
        %v1120 = vadd.f32 %v1117, %v1118
        %v1121 = vsel %vm474, %v1119, 0.0
        %v1122 = vadd.f32 %v1120, %v1121
        %1123 = vadd.xlane.f32.xlu0 %v1122
        %v1124 = vpop.xlane.xlu0 %1123
        %v1125 = vrot.slane %v1124, 4
        %v1126 = vadd.f32 %v1124, %v1125
        %v1127 = vrot.slane %v1126, 2
        %v1128 = vadd.f32 %v1126, %v1127
        %v1129 = vrot.slane %v1128, 1
        %v1130 = vadd.f32 %v1128, %v1129
        %s1131 = vtos %v1130
        %v1132 = vstv %s1131
        %v1133 = vmul.f32 %v1132, %v487
        %v1134 = vsub.f32 %v1117, %v1133
        %v1135 = vsub.f32 %v1118, %v1133
        %v1136 = vsub.f32 %v1119, %v1133
        %v1137 = vmul.f32 %v1134, %v1134
        %v1138 = vmul.f32 %v1135, %v1135
        %v1139 = vmul.f32 %v1136, %v1136
        %v1140 = vadd.f32 %v1137, %v1138
        %v1141 = vsel %vm474, %v1139, 0.0
        %v1142 = vadd.f32 %v1140, %v1141
        %1143 = vadd.xlane.f32.xlu0 %v1142
        %v1144 = vpop.xlane.xlu0 %1143
        %v1145 = vrot.slane %v1144, 4
        %v1146 = vadd.f32 %v1144, %v1145
        %v1147 = vrot.slane %v1146, 2
        %v1148 = vadd.f32 %v1146, %v1147
        %v1149 = vrot.slane %v1148, 1
        %v1150 = vadd.f32 %v1148, %v1149
        %s1151 = vtos %v1150
        %v1152 = vstv %s1151
        %v1153 = vmul.f32 %v1152, %v487
        %v1154 = vadd.f32 %v1153, 1e-05
        %v1155 = vrsqrt.pop %v1154
        %v1156 = vmul.f32 %v1134, %v1155
        %v1157 = vmul.f32 %v1135, %v1155
        %v1158 = vmul.f32 %v1136, %v1155
        %1159 = vst [vmem:[#allocation3 + $0x78] sm:$0xff] %v1156
        %1160 = vst [vmem:[#allocation3 + $0x80] sm:$0xff] %v1157
        %1161 = vst.msk [vmem:[#allocation3 + $0x88] sm:$0xff] %vm474, %v1158
        %s1162 = sadd.s32 %s386, 6
        %s1163 = smul.u32 %s1162, 128
        %s1164 = sld [smem:[#allocation4 + %s1163]]
        %v1165 = vstv %s1164
        %v1166 = vmul.f32 %v1165, %v351
        %v1167 = vmul.f32 %v1165, %v352
        %v1168 = vmul.f32 %v1165, %v353
        %s1169 = sadd.s32 %s1163, 1
        %s1170 = sld [smem:[#allocation4 + %s1169]]
        %v1171 = vstv %s1170
        %v1172 = vmul.f32 %v1171, %v355
        %v1173 = vmul.f32 %v1171, %v356
        %v1174 = vmul.f32 %v1171, %v357
        %v1175 = vadd.f32 %v1166, %v1172
        %v1176 = vadd.f32 %v1167, %v1173
        %v1177 = vadd.f32 %v1168, %v1174
        %s1178 = sadd.s32 %s1163, 2
        %s1179 = sld [smem:[#allocation4 + %s1178]]
        %v1180 = vstv %s1179
        %v1181 = vmul.f32 %v1180, %v359
        %v1182 = vmul.f32 %v1180, %v360
        %v1183 = vmul.f32 %v1180, %v361
        %v1184 = vadd.f32 %v1175, %v1181
        %v1185 = vadd.f32 %v1176, %v1182
        %v1186 = vadd.f32 %v1177, %v1183
        %s1187 = sadd.s32 %s1163, 3
        %s1188 = sld [smem:[#allocation4 + %s1187]]
        %v1189 = vstv %s1188
        %v1190 = vmul.f32 %v1189, %v363
        %v1191 = vmul.f32 %v1189, %v364
        %v1192 = vmul.f32 %v1189, %v365
        %v1193 = vadd.f32 %v1184, %v1190
        %v1194 = vadd.f32 %v1185, %v1191
        %v1195 = vadd.f32 %v1186, %v1192
        %s1196 = sadd.s32 %s1163, 4
        %s1197 = sld [smem:[#allocation4 + %s1196]]
        %v1198 = vstv %s1197
        %v1199 = vmul.f32 %v1198, %v367
        %v1200 = vmul.f32 %v1198, %v368
        %v1201 = vmul.f32 %v1198, %v369
        %v1202 = vadd.f32 %v1193, %v1199
        %v1203 = vadd.f32 %v1194, %v1200
        %v1204 = vadd.f32 %v1195, %v1201
        %s1205 = sadd.s32 %s1163, 5
        %s1206 = sld [smem:[#allocation4 + %s1205]]
        %v1207 = vstv %s1206
        %v1208 = vmul.f32 %v1207, %v371
        %v1209 = vmul.f32 %v1207, %v372
        %v1210 = vmul.f32 %v1207, %v373
        %v1211 = vadd.f32 %v1202, %v1208
        %v1212 = vadd.f32 %v1203, %v1209
        %v1213 = vadd.f32 %v1204, %v1210
        %s1214 = sadd.s32 %s1163, 6
        %s1215 = sld [smem:[#allocation4 + %s1214]]
        %v1216 = vstv %s1215
        %v1217 = vmul.f32 %v1216, %v375
        %v1218 = vmul.f32 %v1216, %v376
        %v1219 = vmul.f32 %v1216, %v377
        %v1220 = vadd.f32 %v1211, %v1217
        %v1221 = vadd.f32 %v1212, %v1218
        %v1222 = vadd.f32 %v1213, %v1219
        %s1223 = sadd.s32 %s1163, 7
        %s1224 = sld [smem:[#allocation4 + %s1223]]
        %v1225 = vstv %s1224
        %v1226 = vmul.f32 %v1225, %v379
        %v1227 = vmul.f32 %v1225, %v380
        %v1228 = vmul.f32 %v1225, %v381
        %v1229 = vadd.f32 %v1220, %v1226
        %v1230 = vadd.f32 %v1221, %v1227
        %v1231 = vadd.f32 %v1222, %v1228
        %s1232 = sadd.s32 %s1163, 8
        %s1233 = sld [smem:[#allocation4 + %s1232]]
        %v1234 = vstv %s1233
        %v1235 = vmul.f32 %v1234, %v383
        %v1236 = vmul.f32 %v1234, %v384
        %v1237 = vmul.f32 %v1234, %v385
        %v1238 = vadd.f32 %v1229, %v1235
        %v1239 = vadd.f32 %v1230, %v1236
        %v1240 = vadd.f32 %v1231, %v1237
        %s1241 = sld [smem:[#allocation6 + %s1162]]
        %v1242 = vstv %s1241
        %v1243 = vadd.f32 %v1238, %v1242
        %v1244 = vadd.f32 %v1239, %v1242
        %v1245 = vadd.f32 %v1240, %v1242
        %v1246 = vmax.f32 %v1243, 0.0
        %v1247 = vmax.f32 %v1244, 0.0
        %v1248 = vmax.f32 %v1245, 0.0
        %v1249 = vadd.f32 %v1246, %v1247
        %v1250 = vsel %vm474, %v1248, 0.0
        %v1251 = vadd.f32 %v1249, %v1250
        %1252 = vadd.xlane.f32.xlu0 %v1251
        %v1253 = vpop.xlane.xlu0 %1252
        %v1254 = vrot.slane %v1253, 4
        %v1255 = vadd.f32 %v1253, %v1254
        %v1256 = vrot.slane %v1255, 2
        %v1257 = vadd.f32 %v1255, %v1256
        %v1258 = vrot.slane %v1257, 1
        %v1259 = vadd.f32 %v1257, %v1258
        %s1260 = vtos %v1259
        %v1261 = vstv %s1260
        %v1262 = vmul.f32 %v1261, %v487
        %v1263 = vsub.f32 %v1246, %v1262
        %v1264 = vsub.f32 %v1247, %v1262
        %v1265 = vsub.f32 %v1248, %v1262
        %v1266 = vmul.f32 %v1263, %v1263
        %v1267 = vmul.f32 %v1264, %v1264
        %v1268 = vmul.f32 %v1265, %v1265
        %v1269 = vadd.f32 %v1266, %v1267
        %v1270 = vsel %vm474, %v1268, 0.0
        %v1271 = vadd.f32 %v1269, %v1270
        %1272 = vadd.xlane.f32.xlu0 %v1271
        %v1273 = vpop.xlane.xlu0 %1272
        %v1274 = vrot.slane %v1273, 4
        %v1275 = vadd.f32 %v1273, %v1274
        %v1276 = vrot.slane %v1275, 2
        %v1277 = vadd.f32 %v1275, %v1276
        %v1278 = vrot.slane %v1277, 1
        %v1279 = vadd.f32 %v1277, %v1278
        %s1280 = vtos %v1279
        %v1281 = vstv %s1280
        %v1282 = vmul.f32 %v1281, %v487
        %v1283 = vadd.f32 %v1282, 1e-05
        %v1284 = vrsqrt.pop %v1283
        %v1285 = vmul.f32 %v1263, %v1284
        %v1286 = vmul.f32 %v1264, %v1284
        %v1287 = vmul.f32 %v1265, %v1284
        %1288 = vst [vmem:[#allocation3 + $0x90] sm:$0xff] %v1285
        %1289 = vst [vmem:[#allocation3 + $0x98] sm:$0xff] %v1286
        %1290 = vst.msk [vmem:[#allocation3 + $0xa0] sm:$0xff] %vm474, %v1287
        %s1291 = sadd.s32 %s386, 7
        %s1292 = smul.u32 %s1291, 128
        %s1293 = sld [smem:[#allocation4 + %s1292]]
        %v1294 = vstv %s1293
        %v1295 = vmul.f32 %v1294, %v351
        %v1296 = vmul.f32 %v1294, %v352
        %v1297 = vmul.f32 %v1294, %v353
        %s1298 = sadd.s32 %s1292, 1
        %s1299 = sld [smem:[#allocation4 + %s1298]]
        %v1300 = vstv %s1299
        %v1301 = vmul.f32 %v1300, %v355
        %v1302 = vmul.f32 %v1300, %v356
        %v1303 = vmul.f32 %v1300, %v357
        %v1304 = vadd.f32 %v1295, %v1301
        %v1305 = vadd.f32 %v1296, %v1302
        %v1306 = vadd.f32 %v1297, %v1303
        %s1307 = sadd.s32 %s1292, 2
        %s1308 = sld [smem:[#allocation4 + %s1307]]
        %v1309 = vstv %s1308
        %v1310 = vmul.f32 %v1309, %v359
        %v1311 = vmul.f32 %v1309, %v360
        %v1312 = vmul.f32 %v1309, %v361
        %v1313 = vadd.f32 %v1304, %v1310
        %v1314 = vadd.f32 %v1305, %v1311
        %v1315 = vadd.f32 %v1306, %v1312
        %s1316 = sadd.s32 %s1292, 3
        %s1317 = sld [smem:[#allocation4 + %s1316]]
        %v1318 = vstv %s1317
        %v1319 = vmul.f32 %v1318, %v363
        %v1320 = vmul.f32 %v1318, %v364
        %v1321 = vmul.f32 %v1318, %v365
        %v1322 = vadd.f32 %v1313, %v1319
        %v1323 = vadd.f32 %v1314, %v1320
        %v1324 = vadd.f32 %v1315, %v1321
        %s1325 = sadd.s32 %s1292, 4
        %s1326 = sld [smem:[#allocation4 + %s1325]]
        %v1327 = vstv %s1326
        %v1328 = vmul.f32 %v1327, %v367
        %v1329 = vmul.f32 %v1327, %v368
        %v1330 = vmul.f32 %v1327, %v369
        %v1331 = vadd.f32 %v1322, %v1328
        %v1332 = vadd.f32 %v1323, %v1329
        %v1333 = vadd.f32 %v1324, %v1330
        %s1334 = sadd.s32 %s1292, 5
        %s1335 = sld [smem:[#allocation4 + %s1334]]
        %v1336 = vstv %s1335
        %v1337 = vmul.f32 %v1336, %v371
        %v1338 = vmul.f32 %v1336, %v372
        %v1339 = vmul.f32 %v1336, %v373
        %v1340 = vadd.f32 %v1331, %v1337
        %v1341 = vadd.f32 %v1332, %v1338
        %v1342 = vadd.f32 %v1333, %v1339
        %s1343 = sadd.s32 %s1292, 6
        %s1344 = sld [smem:[#allocation4 + %s1343]]
        %v1345 = vstv %s1344
        %v1346 = vmul.f32 %v1345, %v375
        %v1347 = vmul.f32 %v1345, %v376
        %v1348 = vmul.f32 %v1345, %v377
        %v1349 = vadd.f32 %v1340, %v1346
        %v1350 = vadd.f32 %v1341, %v1347
        %v1351 = vadd.f32 %v1342, %v1348
        %s1352 = sadd.s32 %s1292, 7
        %s1353 = sld [smem:[#allocation4 + %s1352]]
        %v1354 = vstv %s1353
        %v1355 = vmul.f32 %v1354, %v379
        %v1356 = vmul.f32 %v1354, %v380
        %v1357 = vmul.f32 %v1354, %v381
        %v1358 = vadd.f32 %v1349, %v1355
        %v1359 = vadd.f32 %v1350, %v1356
        %v1360 = vadd.f32 %v1351, %v1357
        %s1361 = sadd.s32 %s1292, 8
        %s1362 = sld [smem:[#allocation4 + %s1361]]
        %v1363 = vstv %s1362
        %v1364 = vmul.f32 %v1363, %v383
        %v1365 = vmul.f32 %v1363, %v384
        %v1366 = vmul.f32 %v1363, %v385
        %v1367 = vadd.f32 %v1358, %v1364
        %v1368 = vadd.f32 %v1359, %v1365
        %v1369 = vadd.f32 %v1360, %v1366
        %s1370 = sld [smem:[#allocation6 + %s1291]]
        %v1371 = vstv %s1370
        %v1372 = vadd.f32 %v1367, %v1371
        %v1373 = vadd.f32 %v1368, %v1371
        %v1374 = vadd.f32 %v1369, %v1371
        %v1375 = vmax.f32 %v1372, 0.0
        %v1376 = vmax.f32 %v1373, 0.0
        %v1377 = vmax.f32 %v1374, 0.0
        %v1378 = vadd.f32 %v1375, %v1376
        %v1379 = vsel %vm474, %v1377, 0.0
        %v1380 = vadd.f32 %v1378, %v1379
        %1381 = vadd.xlane.f32.xlu0 %v1380
        %v1382 = vpop.xlane.xlu0 %1381
        %v1383 = vrot.slane %v1382, 4
        %v1384 = vadd.f32 %v1382, %v1383
        %v1385 = vrot.slane %v1384, 2
        %v1386 = vadd.f32 %v1384, %v1385
        %v1387 = vrot.slane %v1386, 1
        %v1388 = vadd.f32 %v1386, %v1387
        %s1389 = vtos %v1388
        %v1390 = vstv %s1389
        %v1391 = vmul.f32 %v1390, %v487
        %v1392 = vsub.f32 %v1375, %v1391
        %v1393 = vsub.f32 %v1376, %v1391
        %v1394 = vsub.f32 %v1377, %v1391
        %v1395 = vmul.f32 %v1392, %v1392
        %v1396 = vmul.f32 %v1393, %v1393
        %v1397 = vmul.f32 %v1394, %v1394
        %v1398 = vadd.f32 %v1395, %v1396
        %v1399 = vsel %vm474, %v1397, 0.0
        %v1400 = vadd.f32 %v1398, %v1399
        %1401 = vadd.xlane.f32.xlu0 %v1400
        %v1402 = vpop.xlane.xlu0 %1401
        %v1403 = vrot.slane %v1402, 4
        %v1404 = vadd.f32 %v1402, %v1403
        %v1405 = vrot.slane %v1404, 2
        %v1406 = vadd.f32 %v1404, %v1405
        %v1407 = vrot.slane %v1406, 1
        %v1408 = vadd.f32 %v1406, %v1407
        %s1409 = vtos %v1408
        %v1410 = vstv %s1409
        %v1411 = vmul.f32 %v1410, %v487
        %v1412 = vadd.f32 %v1411, 1e-05
        %v1413 = vrsqrt.pop %v1412
        %v1414 = vmul.f32 %v1392, %v1413
        %v1415 = vmul.f32 %v1393, %v1413
        %v1416 = vmul.f32 %v1394, %v1413
        %1417 = vst [vmem:[#allocation3 + $0xa8] sm:$0xff] %v1414
        %1418 = vst [vmem:[#allocation3 + $0xb0] sm:$0xff] %v1415
        %1419 = vst.msk [vmem:[#allocation3 + $0xb8] sm:$0xff] %vm474, %v1416
        %v1420 = vld [vmem:[#allocation2] sm:$0xff]
        %v1421 = vld [vmem:[#allocation2 + $0x8] sm:$0xff]
        %v1422 = vld [vmem:[#allocation3] sm:$0xff]
        %v1423 = vld [vmem:[#allocation3 + $0x8] sm:$0xff]
        %v1424 = vld [vmem:[#allocation3 + $0x10] sm:$0xff]
        %v1425 = vld [vmem:[#allocation3 + $0x18] sm:$0xff]
        %v1426 = vld [vmem:[#allocation3 + $0x20] sm:$0xff]
        %v1427 = vld [vmem:[#allocation3 + $0x28] sm:$0xff]
        %v1428 = vld [vmem:[#allocation3 + $0x30] sm:$0xff]
        %v1429 = vld [vmem:[#allocation3 + $0x38] sm:$0xff]
        %v1430 = vld [vmem:[#allocation3 + $0x40] sm:$0xff]
        %v1431 = vld [vmem:[#allocation3 + $0x48] sm:$0xff]
        %v1432 = vld [vmem:[#allocation3 + $0x50] sm:$0xff]
        %v1433 = vld [vmem:[#allocation3 + $0x58] sm:$0xff]
        %v1434 = vld [vmem:[#allocation3 + $0x60] sm:$0xff]
        %v1435 = vld [vmem:[#allocation3 + $0x68] sm:$0xff]
        %v1436 = vld [vmem:[#allocation3 + $0x70] sm:$0xff]
        %v1437 = vld [vmem:[#allocation3 + $0x78] sm:$0xff]
        %v1438 = vld [vmem:[#allocation3 + $0x80] sm:$0xff]
        %v1439 = vld [vmem:[#allocation3 + $0x88] sm:$0xff]
        %v1440 = vld [vmem:[#allocation3 + $0x90] sm:$0xff]
        %v1441 = vld [vmem:[#allocation3 + $0x98] sm:$0xff]
        %v1442 = vld [vmem:[#allocation3 + $0xa0] sm:$0xff]
        %v1443 = vld [vmem:[#allocation3 + $0xa8] sm:$0xff]
        %v1444 = vld [vmem:[#allocation3 + $0xb0] sm:$0xff]
        %v1445 = vld [vmem:[#allocation3 + $0xb8] sm:$0xff]
        %v1446 = vpack.c.bf16 %v1422, %v1422
        %v1447 = vpack.c.bf16 %v1423, %v1423
        %v1448 = vpack.c.bf16 %v1424, %v1424
        %v1449 = vpack.c.bf16 %v1425, %v1425
        %v1450 = vpack.c.bf16 %v1426, %v1426
        %v1451 = vpack.c.bf16 %v1427, %v1427
        %v1452 = vpack.c.bf16 %v1428, %v1428
        %v1453 = vpack.c.bf16 %v1429, %v1429
        %v1454 = vpack.c.bf16 %v1430, %v1430
        %v1455 = vpack.c.bf16 %v1431, %v1431
        %v1456 = vpack.c.bf16 %v1432, %v1432
        %v1457 = vpack.c.bf16 %v1433, %v1433
        %v1458 = vpack.c.bf16 %v1434, %v1434
        %v1459 = vpack.c.bf16 %v1435, %v1435
        %v1460 = vpack.c.bf16 %v1436, %v1436
        %v1461 = vpack.c.bf16 %v1437, %v1437
        %v1462 = vpack.c.bf16 %v1438, %v1438
        %v1463 = vpack.c.bf16 %v1439, %v1439
        %v1464 = vpack.c.bf16 %v1440, %v1440
        %v1465 = vpack.c.bf16 %v1441, %v1441
        %v1466 = vpack.c.bf16 %v1442, %v1442
        %v1467 = vpack.c.bf16 %v1443, %v1443
        %v1468 = vpack.c.bf16 %v1444, %v1444
        %v1469 = vpack.c.bf16 %v1445, %v1445
        %v1470 = vld [vmem:[%s319] sm:$0xff]
        %v1471 = vld [vmem:[%s319 + $0x8] sm:$0xff]
        %v1472 = vld [vmem:[%s319 + $0x10] sm:$0xff]
        %v1473 = vld [vmem:[%s319 + $0x18] sm:$0xff]
        %v1474 = vld [vmem:[%s319 + $0x20] sm:$0xff]
        %v1475 = vld [vmem:[%s319 + $0x28] sm:$0xff]
        %v1476 = vld [vmem:[%s319 + $0x30] sm:$0xff]
        %v1477 = vld [vmem:[%s319 + $0x38] sm:$0xff]
        %v1478 = vld [vmem:[%s319 + $0x40] sm:$0xff]
        %v1479 = vld [vmem:[%s319 + $0x48] sm:$0xff]
        %v1480 = vld [vmem:[%s319 + $0x50] sm:$0xff]
        %v1481 = vld [vmem:[%s319 + $0x58] sm:$0xff]
        %v1482 = vld [vmem:[%s319 + $0x60] sm:$0xff]
        %v1483 = vld [vmem:[%s319 + $0x68] sm:$0xff]
        %v1484 = vld [vmem:[%s319 + $0x70] sm:$0xff]
        %v1485 = vld [vmem:[%s319 + $0x78] sm:$0xff]
        %v1486 = vld [vmem:[%s319 + $0x80] sm:$0xff]
        %v1487 = vld [vmem:[%s319 + $0x88] sm:$0xff]
        %v1488 = vld [vmem:[%s319 + $0x90] sm:$0xff]
        %v1489 = vld [vmem:[%s319 + $0x98] sm:$0xff]
        %v1490 = vld [vmem:[%s319 + $0xa0] sm:$0xff]
        %v1491 = vld [vmem:[%s319 + $0xa8] sm:$0xff]
        %v1492 = vld [vmem:[%s319 + $0xb0] sm:$0xff]
        %v1493 = vld [vmem:[%s319 + $0xb8] sm:$0xff]
        %v1494 = vld [vmem:[%s319 + $0xc0] sm:$0xff]
        %v1495 = vld [vmem:[%s319 + $0xc8] sm:$0xff]
        %v1496 = vld [vmem:[%s319 + $0xd0] sm:$0xff]
        %v1497 = vld [vmem:[%s319 + $0xd8] sm:$0xff]
        %v1498 = vld [vmem:[%s319 + $0xe0] sm:$0xff]
        %v1499 = vld [vmem:[%s319 + $0xe8] sm:$0xff]
        %v1500 = vld [vmem:[%s319 + $0xf0] sm:$0xff]
        %v1501 = vld [vmem:[%s319 + $0xf8] sm:$0xff]
        %v1502 = vld [vmem:[%s319 + $0x100] sm:$0xff]
        %v1503 = vld [vmem:[%s319 + $0x108] sm:$0xff]
        %v1504 = vld [vmem:[%s319 + $0x110] sm:$0xff]
        %v1505 = vld [vmem:[%s319 + $0x118] sm:$0xff]
        %v1506 = vld [vmem:[%s319 + $0x120] sm:$0xff]
        %v1507 = vld [vmem:[%s319 + $0x128] sm:$0xff]
        %v1508 = vld [vmem:[%s319 + $0x130] sm:$0xff]
        %v1509 = vld [vmem:[%s319 + $0x138] sm:$0xff]
        %v1510 = vld [vmem:[%s319 + $0x140] sm:$0xff]
        %v1511 = vld [vmem:[%s319 + $0x148] sm:$0xff]
        %v1512 = vld [vmem:[%s319 + $0x150] sm:$0xff]
        %v1513 = vld [vmem:[%s319 + $0x158] sm:$0xff]
        %v1514 = vld [vmem:[%s319 + $0x160] sm:$0xff]
        %v1515 = vld [vmem:[%s319 + $0x168] sm:$0xff]
        %v1516 = vld [vmem:[%s319 + $0x170] sm:$0xff]
        %v1517 = vld [vmem:[%s319 + $0x178] sm:$0xff]
        %v1518 = vld [vmem:[%s319 + $0x180] sm:$0xff]
        %v1519 = vld [vmem:[%s319 + $0x188] sm:$0xff]
        %v1520 = vld [vmem:[%s319 + $0x190] sm:$0xff]
        %v1521 = vld [vmem:[%s319 + $0x198] sm:$0xff]
        %v1522 = vld [vmem:[%s319 + $0x1a0] sm:$0xff]
        %v1523 = vld [vmem:[%s319 + $0x1a8] sm:$0xff]
        %v1524 = vld [vmem:[%s319 + $0x1b0] sm:$0xff]
        %v1525 = vld [vmem:[%s319 + $0x1b8] sm:$0xff]
        %v1526 = vld [vmem:[%s319 + $0x1c0] sm:$0xff]
        %v1527 = vld [vmem:[%s319 + $0x1c8] sm:$0xff]
        %v1528 = vld [vmem:[%s319 + $0x1d0] sm:$0xff]
        %v1529 = vld [vmem:[%s319 + $0x1d8] sm:$0xff]
        %v1530 = vld [vmem:[%s319 + $0x1e0] sm:$0xff]
        %v1531 = vld [vmem:[%s319 + $0x1e8] sm:$0xff]
        %v1532 = vld [vmem:[%s319 + $0x1f0] sm:$0xff]
        %v1533 = vld [vmem:[%s319 + $0x1f8] sm:$0xff]
        %v1534 = vld [vmem:[%s319 + $0x200] sm:$0xff]
        %v1535 = vld [vmem:[%s319 + $0x208] sm:$0xff]
        %v1536 = vld [vmem:[%s319 + $0x210] sm:$0xff]
        %v1537 = vld [vmem:[%s319 + $0x218] sm:$0xff]
        %v1538 = vld [vmem:[%s319 + $0x220] sm:$0xff]
        %v1539 = vld [vmem:[%s319 + $0x228] sm:$0xff]
        %v1540 = vld [vmem:[%s319 + $0x230] sm:$0xff]
        %v1541 = vld [vmem:[%s319 + $0x238] sm:$0xff]
        %v1542 = vld [vmem:[%s319 + $0x240] sm:$0xff]
        %v1543 = vld [vmem:[%s319 + $0x248] sm:$0xff]
        %v1544 = vld [vmem:[%s319 + $0x250] sm:$0xff]
        %v1545 = vld [vmem:[%s319 + $0x258] sm:$0xff]
        %v1546 = vld [vmem:[%s319 + $0x260] sm:$0xff]
        %v1547 = vld [vmem:[%s319 + $0x268] sm:$0xff]
        %v1548 = vld [vmem:[%s319 + $0x270] sm:$0xff]
        %v1549 = vld [vmem:[%s319 + $0x278] sm:$0xff]
        %v1550 = vld [vmem:[%s319 + $0x280] sm:$0xff]
        %v1551 = vld [vmem:[%s319 + $0x288] sm:$0xff]
        %v1552 = vld [vmem:[%s319 + $0x290] sm:$0xff]
        %v1553 = vld [vmem:[%s319 + $0x298] sm:$0xff]
        %v1554 = vld [vmem:[%s319 + $0x2a0] sm:$0xff]
        %v1555 = vld [vmem:[%s319 + $0x2a8] sm:$0xff]
        %v1556 = vld [vmem:[%s319 + $0x2b0] sm:$0xff]
        %v1557 = vld [vmem:[%s319 + $0x2b8] sm:$0xff]
        %v1558 = vld [vmem:[%s319 + $0x2c0] sm:$0xff]
        %v1559 = vld [vmem:[%s319 + $0x2c8] sm:$0xff]
        %v1560 = vld [vmem:[%s319 + $0x2d0] sm:$0xff]
        %v1561 = vld [vmem:[%s319 + $0x2d8] sm:$0xff]
        %v1562 = vld [vmem:[%s319 + $0x2e0] sm:$0xff]
        %v1563 = vld [vmem:[%s319 + $0x2e8] sm:$0xff]
        %v1564 = vld [vmem:[%s319 + $0x2f0] sm:$0xff]
        %v1565 = vld [vmem:[%s319 + $0x2f8] sm:$0xff]
        %v1566 = vld [vmem:[%s319 + $0x300] sm:$0xff]
        %v1567 = vld [vmem:[%s319 + $0x308] sm:$0xff]
        %v1568 = vld [vmem:[%s319 + $0x310] sm:$0xff]
        %v1569 = vld [vmem:[%s319 + $0x318] sm:$0xff]
        %v1570 = vld [vmem:[%s319 + $0x320] sm:$0xff]
        %v1571 = vld [vmem:[%s319 + $0x328] sm:$0xff]
        %v1572 = vld [vmem:[%s319 + $0x330] sm:$0xff]
        %v1573 = vld [vmem:[%s319 + $0x338] sm:$0xff]
        %v1574 = vld [vmem:[%s319 + $0x340] sm:$0xff]
        %v1575 = vld [vmem:[%s319 + $0x348] sm:$0xff]
        %v1576 = vld [vmem:[%s319 + $0x350] sm:$0xff]
        %v1577 = vld [vmem:[%s319 + $0x358] sm:$0xff]
        %v1578 = vld [vmem:[%s319 + $0x360] sm:$0xff]
        %v1579 = vld [vmem:[%s319 + $0x368] sm:$0xff]
        %v1580 = vld [vmem:[%s319 + $0x370] sm:$0xff]
        %v1581 = vld [vmem:[%s319 + $0x378] sm:$0xff]
        %v1582 = vld [vmem:[%s319 + $0x380] sm:$0xff]
        %v1583 = vld [vmem:[%s319 + $0x388] sm:$0xff]
        %v1584 = vld [vmem:[%s319 + $0x390] sm:$0xff]
        %v1585 = vld [vmem:[%s319 + $0x398] sm:$0xff]
        %v1586 = vld [vmem:[%s319 + $0x3a0] sm:$0xff]
        %v1587 = vld [vmem:[%s319 + $0x3a8] sm:$0xff]
        %v1588 = vld [vmem:[%s319 + $0x3b0] sm:$0xff]
        %v1589 = vld [vmem:[%s319 + $0x3b8] sm:$0xff]
        %v1590 = vld [vmem:[%s319 + $0x3c0] sm:$0xff]
        %v1591 = vld [vmem:[%s319 + $0x3c8] sm:$0xff]
        %v1592 = vld [vmem:[%s319 + $0x3d0] sm:$0xff]
        %v1593 = vld [vmem:[%s319 + $0x3d8] sm:$0xff]
        %v1594 = vld [vmem:[%s319 + $0x3e0] sm:$0xff]
        %v1595 = vld [vmem:[%s319 + $0x3e8] sm:$0xff]
        %v1596 = vld [vmem:[%s319 + $0x3f0] sm:$0xff]
        %v1597 = vld [vmem:[%s319 + $0x3f8] sm:$0xff]
        %v1598 = vld [vmem:[%s319 + $0x400] sm:$0xff]
        %v1599 = vld [vmem:[%s319 + $0x408] sm:$0xff]
        %v1600 = vld [vmem:[%s319 + $0x410] sm:$0xff]
        %v1601 = vld [vmem:[%s319 + $0x418] sm:$0xff]
        %v1602 = vld [vmem:[%s319 + $0x420] sm:$0xff]
        %v1603 = vld [vmem:[%s319 + $0x428] sm:$0xff]
        %v1604 = vld [vmem:[%s319 + $0x430] sm:$0xff]
        %v1605 = vld [vmem:[%s319 + $0x438] sm:$0xff]
        %v1606 = vld [vmem:[%s319 + $0x440] sm:$0xff]
        %v1607 = vld [vmem:[%s319 + $0x448] sm:$0xff]
        %v1608 = vld [vmem:[%s319 + $0x450] sm:$0xff]
        %v1609 = vld [vmem:[%s319 + $0x458] sm:$0xff]
        %v1610 = vld [vmem:[%s319 + $0x460] sm:$0xff]
        %v1611 = vld [vmem:[%s319 + $0x468] sm:$0xff]
        %v1612 = vld [vmem:[%s319 + $0x470] sm:$0xff]
        %v1613 = vld [vmem:[%s319 + $0x478] sm:$0xff]
        %v1614 = vld [vmem:[%s319 + $0x480] sm:$0xff]
        %v1615 = vld [vmem:[%s319 + $0x488] sm:$0xff]
        %v1616 = vld [vmem:[%s319 + $0x490] sm:$0xff]
        %v1617 = vld [vmem:[%s319 + $0x498] sm:$0xff]
        %v1618 = vld [vmem:[%s319 + $0x4a0] sm:$0xff]
        %v1619 = vld [vmem:[%s319 + $0x4a8] sm:$0xff]
        %v1620 = vld [vmem:[%s319 + $0x4b0] sm:$0xff]
        %v1621 = vld [vmem:[%s319 + $0x4b8] sm:$0xff]
        %v1622 = vld [vmem:[%s319 + $0x4c0] sm:$0xff]
        %v1623 = vld [vmem:[%s319 + $0x4c8] sm:$0xff]
        %v1624 = vld [vmem:[%s319 + $0x4d0] sm:$0xff]
        %v1625 = vld [vmem:[%s319 + $0x4d8] sm:$0xff]
        %v1626 = vld [vmem:[%s319 + $0x4e0] sm:$0xff]
        %v1627 = vld [vmem:[%s319 + $0x4e8] sm:$0xff]
        %v1628 = vld [vmem:[%s319 + $0x4f0] sm:$0xff]
        %v1629 = vld [vmem:[%s319 + $0x4f8] sm:$0xff]
        %v1630 = vld [vmem:[%s319 + $0x500] sm:$0xff]
        %v1631 = vld [vmem:[%s319 + $0x508] sm:$0xff]
        %v1632 = vld [vmem:[%s319 + $0x510] sm:$0xff]
        %v1633 = vld [vmem:[%s319 + $0x518] sm:$0xff]
        %v1634 = vld [vmem:[%s319 + $0x520] sm:$0xff]
        %v1635 = vld [vmem:[%s319 + $0x528] sm:$0xff]
        %v1636 = vld [vmem:[%s319 + $0x530] sm:$0xff]
        %v1637 = vld [vmem:[%s319 + $0x538] sm:$0xff]
        %v1638 = vld [vmem:[%s319 + $0x540] sm:$0xff]
        %v1639 = vld [vmem:[%s319 + $0x548] sm:$0xff]
        %v1640 = vld [vmem:[%s319 + $0x550] sm:$0xff]
        %v1641 = vld [vmem:[%s319 + $0x558] sm:$0xff]
        %v1642 = vld [vmem:[%s319 + $0x560] sm:$0xff]
        %v1643 = vld [vmem:[%s319 + $0x568] sm:$0xff]
        %v1644 = vld [vmem:[%s319 + $0x570] sm:$0xff]
        %v1645 = vld [vmem:[%s319 + $0x578] sm:$0xff]
        %v1646 = vld [vmem:[%s319 + $0x580] sm:$0xff]
        %v1647 = vld [vmem:[%s319 + $0x588] sm:$0xff]
        %v1648 = vld [vmem:[%s319 + $0x590] sm:$0xff]
        %v1649 = vld [vmem:[%s319 + $0x598] sm:$0xff]
        %v1650 = vld [vmem:[%s319 + $0x5a0] sm:$0xff]
        %v1651 = vld [vmem:[%s319 + $0x5a8] sm:$0xff]
        %v1652 = vld [vmem:[%s319 + $0x5b0] sm:$0xff]
        %v1653 = vld [vmem:[%s319 + $0x5b8] sm:$0xff]
        %v1654 = vld [vmem:[%s319 + $0x5c0] sm:$0xff]
        %v1655 = vld [vmem:[%s319 + $0x5c8] sm:$0xff]
        %v1656 = vld [vmem:[%s319 + $0x5d0] sm:$0xff]
        %v1657 = vld [vmem:[%s319 + $0x5d8] sm:$0xff]
        %v1658 = vld [vmem:[%s319 + $0x5e0] sm:$0xff]
        %v1659 = vld [vmem:[%s319 + $0x5e8] sm:$0xff]
        %v1660 = vld [vmem:[%s319 + $0x5f0] sm:$0xff]
        %v1661 = vld [vmem:[%s319 + $0x5f8] sm:$0xff]
        %v1662 = vld [vmem:[%s319 + $0x600] sm:$0xff]
        %v1663 = vld [vmem:[%s319 + $0x608] sm:$0xff]
        %v1664 = vld [vmem:[%s319 + $0x610] sm:$0xff]
        %v1665 = vld [vmem:[%s319 + $0x618] sm:$0xff]
        %v1666 = vld [vmem:[%s319 + $0x620] sm:$0xff]
        %v1667 = vld [vmem:[%s319 + $0x628] sm:$0xff]
        %v1668 = vld [vmem:[%s319 + $0x630] sm:$0xff]
        %v1669 = vld [vmem:[%s319 + $0x638] sm:$0xff]
        %v1670 = vld [vmem:[%s319 + $0x640] sm:$0xff]
        %v1671 = vld [vmem:[%s319 + $0x648] sm:$0xff]
        %v1672 = vld [vmem:[%s319 + $0x650] sm:$0xff]
        %v1673 = vld [vmem:[%s319 + $0x658] sm:$0xff]
        %v1674 = vld [vmem:[%s319 + $0x660] sm:$0xff]
        %v1675 = vld [vmem:[%s319 + $0x668] sm:$0xff]
        %v1676 = vld [vmem:[%s319 + $0x670] sm:$0xff]
        %v1677 = vld [vmem:[%s319 + $0x678] sm:$0xff]
        %v1678 = vld [vmem:[%s319 + $0x680] sm:$0xff]
        %v1679 = vld [vmem:[%s319 + $0x688] sm:$0xff]
        %v1680 = vld [vmem:[%s319 + $0x690] sm:$0xff]
        %v1681 = vld [vmem:[%s319 + $0x698] sm:$0xff]
        %v1682 = vld [vmem:[%s319 + $0x6a0] sm:$0xff]
        %v1683 = vld [vmem:[%s319 + $0x6a8] sm:$0xff]
        %v1684 = vld [vmem:[%s319 + $0x6b0] sm:$0xff]
        %v1685 = vld [vmem:[%s319 + $0x6b8] sm:$0xff]
        %v1686 = vld [vmem:[%s319 + $0x6c0] sm:$0xff]
        %v1687 = vld [vmem:[%s319 + $0x6c8] sm:$0xff]
        %v1688 = vld [vmem:[%s319 + $0x6d0] sm:$0xff]
        %v1689 = vld [vmem:[%s319 + $0x6d8] sm:$0xff]
        %v1690 = vld [vmem:[%s319 + $0x6e0] sm:$0xff]
        %v1691 = vld [vmem:[%s319 + $0x6e8] sm:$0xff]
        %v1692 = vld [vmem:[%s319 + $0x6f0] sm:$0xff]
        %v1693 = vld [vmem:[%s319 + $0x6f8] sm:$0xff]
        %v1694 = vld [vmem:[%s319 + $0x700] sm:$0xff]
        %v1695 = vld [vmem:[%s319 + $0x708] sm:$0xff]
        %v1696 = vld [vmem:[%s319 + $0x710] sm:$0xff]
        %v1697 = vld [vmem:[%s319 + $0x718] sm:$0xff]
        %v1698 = vld [vmem:[%s319 + $0x720] sm:$0xff]
        %v1699 = vld [vmem:[%s319 + $0x728] sm:$0xff]
        %v1700 = vld [vmem:[%s319 + $0x730] sm:$0xff]
        %v1701 = vld [vmem:[%s319 + $0x738] sm:$0xff]
        %v1702 = vld [vmem:[%s319 + $0x740] sm:$0xff]
        %v1703 = vld [vmem:[%s319 + $0x748] sm:$0xff]
        %v1704 = vld [vmem:[%s319 + $0x750] sm:$0xff]
        %v1705 = vld [vmem:[%s319 + $0x758] sm:$0xff]
        %v1706 = vld [vmem:[%s319 + $0x760] sm:$0xff]
        %v1707 = vld [vmem:[%s319 + $0x768] sm:$0xff]
        %v1708 = vld [vmem:[%s319 + $0x770] sm:$0xff]
        %v1709 = vld [vmem:[%s319 + $0x778] sm:$0xff]
        %v1710 = vld [vmem:[%s319 + $0x780] sm:$0xff]
        %v1711 = vld [vmem:[%s319 + $0x788] sm:$0xff]
        %v1712 = vld [vmem:[%s319 + $0x790] sm:$0xff]
        %v1713 = vld [vmem:[%s319 + $0x798] sm:$0xff]
        %v1714 = vld [vmem:[%s319 + $0x7a0] sm:$0xff]
        %v1715 = vld [vmem:[%s319 + $0x7a8] sm:$0xff]
        %v1716 = vld [vmem:[%s319 + $0x7b0] sm:$0xff]
        %v1717 = vld [vmem:[%s319 + $0x7b8] sm:$0xff]
        %v1718 = vld [vmem:[%s319 + $0x7c0] sm:$0xff]
        %v1719 = vld [vmem:[%s319 + $0x7c8] sm:$0xff]
        %v1720 = vld [vmem:[%s319 + $0x7d0] sm:$0xff]
        %v1721 = vld [vmem:[%s319 + $0x7d8] sm:$0xff]
        %v1722 = vld [vmem:[%s319 + $0x7e0] sm:$0xff]
        %v1723 = vld [vmem:[%s319 + $0x7e8] sm:$0xff]
        %v1724 = vld [vmem:[%s319 + $0x7f0] sm:$0xff]
        %v1725 = vld [vmem:[%s319 + $0x7f8] sm:$0xff]
        %v1726 = vld [vmem:[%s319 + $0x800] sm:$0xff]
        %v1727 = vld [vmem:[%s319 + $0x808] sm:$0xff]
        %v1728 = vld [vmem:[%s319 + $0x810] sm:$0xff]
        %v1729 = vld [vmem:[%s319 + $0x818] sm:$0xff]
        %v1730 = vld [vmem:[%s319 + $0x820] sm:$0xff]
        %v1731 = vld [vmem:[%s319 + $0x828] sm:$0xff]
        %v1732 = vld [vmem:[%s319 + $0x830] sm:$0xff]
        %v1733 = vld [vmem:[%s319 + $0x838] sm:$0xff]
        %v1734 = vld [vmem:[%s319 + $0x840] sm:$0xff]
        %v1735 = vld [vmem:[%s319 + $0x848] sm:$0xff]
        %v1736 = vld [vmem:[%s319 + $0x850] sm:$0xff]
        %v1737 = vld [vmem:[%s319 + $0x858] sm:$0xff]
        %v1738 = vld [vmem:[%s319 + $0x860] sm:$0xff]
        %v1739 = vld [vmem:[%s319 + $0x868] sm:$0xff]
        %v1740 = vld [vmem:[%s319 + $0x870] sm:$0xff]
        %v1741 = vld [vmem:[%s319 + $0x878] sm:$0xff]
        %v1742 = vld [vmem:[%s319 + $0x880] sm:$0xff]
        %v1743 = vld [vmem:[%s319 + $0x888] sm:$0xff]
        %v1744 = vld [vmem:[%s319 + $0x890] sm:$0xff]
        %v1745 = vld [vmem:[%s319 + $0x898] sm:$0xff]
        %v1746 = vld [vmem:[%s319 + $0x8a0] sm:$0xff]
        %v1747 = vld [vmem:[%s319 + $0x8a8] sm:$0xff]
        %v1748 = vld [vmem:[%s319 + $0x8b0] sm:$0xff]
        %v1749 = vld [vmem:[%s319 + $0x8b8] sm:$0xff]
        %v1750 = vld [vmem:[%s319 + $0x8c0] sm:$0xff]
        %v1751 = vld [vmem:[%s319 + $0x8c8] sm:$0xff]
        %v1752 = vld [vmem:[%s319 + $0x8d0] sm:$0xff]
        %v1753 = vld [vmem:[%s319 + $0x8d8] sm:$0xff]
        %v1754 = vld [vmem:[%s319 + $0x8e0] sm:$0xff]
        %v1755 = vld [vmem:[%s319 + $0x8e8] sm:$0xff]
        %v1756 = vld [vmem:[%s319 + $0x8f0] sm:$0xff]
        %v1757 = vld [vmem:[%s319 + $0x8f8] sm:$0xff]
        %v1758 = vld [vmem:[%s319 + $0x900] sm:$0xff]
        %v1759 = vld [vmem:[%s319 + $0x908] sm:$0xff]
        %v1760 = vld [vmem:[%s319 + $0x910] sm:$0xff]
        %v1761 = vld [vmem:[%s319 + $0x918] sm:$0xff]
        %v1762 = vld [vmem:[%s319 + $0x920] sm:$0xff]
        %v1763 = vld [vmem:[%s319 + $0x928] sm:$0xff]
        %v1764 = vld [vmem:[%s319 + $0x930] sm:$0xff]
        %v1765 = vld [vmem:[%s319 + $0x938] sm:$0xff]
        %v1766 = vld [vmem:[%s319 + $0x940] sm:$0xff]
        %v1767 = vld [vmem:[%s319 + $0x948] sm:$0xff]
        %v1768 = vld [vmem:[%s319 + $0x950] sm:$0xff]
        %v1769 = vld [vmem:[%s319 + $0x958] sm:$0xff]
        %v1770 = vld [vmem:[%s319 + $0x960] sm:$0xff]
        %v1771 = vld [vmem:[%s319 + $0x968] sm:$0xff]
        %v1772 = vld [vmem:[%s319 + $0x970] sm:$0xff]
        %v1773 = vld [vmem:[%s319 + $0x978] sm:$0xff]
        %v1774 = vld [vmem:[%s319 + $0x980] sm:$0xff]
        %v1775 = vld [vmem:[%s319 + $0x988] sm:$0xff]
        %v1776 = vld [vmem:[%s319 + $0x990] sm:$0xff]
        %v1777 = vld [vmem:[%s319 + $0x998] sm:$0xff]
        %v1778 = vld [vmem:[%s319 + $0x9a0] sm:$0xff]
        %v1779 = vld [vmem:[%s319 + $0x9a8] sm:$0xff]
        %v1780 = vld [vmem:[%s319 + $0x9b0] sm:$0xff]
        %v1781 = vld [vmem:[%s319 + $0x9b8] sm:$0xff]
        %v1782 = vld [vmem:[%s319 + $0x9c0] sm:$0xff]
        %v1783 = vld [vmem:[%s319 + $0x9c8] sm:$0xff]
        %v1784 = vld [vmem:[%s319 + $0x9d0] sm:$0xff]
        %v1785 = vld [vmem:[%s319 + $0x9d8] sm:$0xff]
        %v1786 = vld [vmem:[%s319 + $0x9e0] sm:$0xff]
        %v1787 = vld [vmem:[%s319 + $0x9e8] sm:$0xff]
        %v1788 = vld [vmem:[%s319 + $0x9f0] sm:$0xff]
        %v1789 = vld [vmem:[%s319 + $0x9f8] sm:$0xff]
        %v1790 = vld [vmem:[%s319 + $0xa00] sm:$0xff]
        %v1791 = vld [vmem:[%s319 + $0xa08] sm:$0xff]
        %v1792 = vld [vmem:[%s319 + $0xa10] sm:$0xff]
        %v1793 = vld [vmem:[%s319 + $0xa18] sm:$0xff]
        %v1794 = vld [vmem:[%s319 + $0xa20] sm:$0xff]
        %v1795 = vld [vmem:[%s319 + $0xa28] sm:$0xff]
        %v1796 = vld [vmem:[%s319 + $0xa30] sm:$0xff]
        %v1797 = vld [vmem:[%s319 + $0xa38] sm:$0xff]
        %v1798 = vld [vmem:[%s319 + $0xa40] sm:$0xff]
        %v1799 = vld [vmem:[%s319 + $0xa48] sm:$0xff]
        %v1800 = vld [vmem:[%s319 + $0xa50] sm:$0xff]
        %v1801 = vld [vmem:[%s319 + $0xa58] sm:$0xff]
        %v1802 = vld [vmem:[%s319 + $0xa60] sm:$0xff]
        %v1803 = vld [vmem:[%s319 + $0xa68] sm:$0xff]
        %v1804 = vld [vmem:[%s319 + $0xa70] sm:$0xff]
        %v1805 = vld [vmem:[%s319 + $0xa78] sm:$0xff]
        %v1806 = vld [vmem:[%s319 + $0xa80] sm:$0xff]
        %v1807 = vld [vmem:[%s319 + $0xa88] sm:$0xff]
        %v1808 = vld [vmem:[%s319 + $0xa90] sm:$0xff]
        %v1809 = vld [vmem:[%s319 + $0xa98] sm:$0xff]
        %v1810 = vld [vmem:[%s319 + $0xaa0] sm:$0xff]
        %v1811 = vld [vmem:[%s319 + $0xaa8] sm:$0xff]
        %v1812 = vld [vmem:[%s319 + $0xab0] sm:$0xff]
        %v1813 = vld [vmem:[%s319 + $0xab8] sm:$0xff]
        %v1814 = vld [vmem:[%s319 + $0xac0] sm:$0xff]
        %v1815 = vld [vmem:[%s319 + $0xac8] sm:$0xff]
        %v1816 = vld [vmem:[%s319 + $0xad0] sm:$0xff]
        %v1817 = vld [vmem:[%s319 + $0xad8] sm:$0xff]
        %v1818 = vld [vmem:[%s319 + $0xae0] sm:$0xff]
        %v1819 = vld [vmem:[%s319 + $0xae8] sm:$0xff]
        %v1820 = vld [vmem:[%s319 + $0xaf0] sm:$0xff]
        %v1821 = vld [vmem:[%s319 + $0xaf8] sm:$0xff]
        %v1822 = vld [vmem:[%s319 + $0xb00] sm:$0xff]
        %v1823 = vld [vmem:[%s319 + $0xb08] sm:$0xff]
        %v1824 = vld [vmem:[%s319 + $0xb10] sm:$0xff]
        %v1825 = vld [vmem:[%s319 + $0xb18] sm:$0xff]
        %v1826 = vld [vmem:[%s319 + $0xb20] sm:$0xff]
        %v1827 = vld [vmem:[%s319 + $0xb28] sm:$0xff]
        %v1828 = vld [vmem:[%s319 + $0xb30] sm:$0xff]
        %v1829 = vld [vmem:[%s319 + $0xb38] sm:$0xff]
        %v1830 = vld [vmem:[%s319 + $0xb40] sm:$0xff]
        %v1831 = vld [vmem:[%s319 + $0xb48] sm:$0xff]
        %v1832 = vld [vmem:[%s319 + $0xb50] sm:$0xff]
        %v1833 = vld [vmem:[%s319 + $0xb58] sm:$0xff]
        %v1834 = vld [vmem:[%s319 + $0xb60] sm:$0xff]
        %v1835 = vld [vmem:[%s319 + $0xb68] sm:$0xff]
        %v1836 = vld [vmem:[%s319 + $0xb70] sm:$0xff]
        %v1837 = vld [vmem:[%s319 + $0xb78] sm:$0xff]
        %v1838 = vld [vmem:[%s319 + $0xb80] sm:$0xff]
        %v1839 = vld [vmem:[%s319 + $0xb88] sm:$0xff]
        %v1840 = vld [vmem:[%s319 + $0xb90] sm:$0xff]
        %v1841 = vld [vmem:[%s319 + $0xb98] sm:$0xff]
        %v1842 = vld [vmem:[%s319 + $0xba0] sm:$0xff]
        %v1843 = vld [vmem:[%s319 + $0xba8] sm:$0xff]
        %v1844 = vld [vmem:[%s319 + $0xbb0] sm:$0xff]
        %v1845 = vld [vmem:[%s319 + $0xbb8] sm:$0xff]
        %v1846 = vld [vmem:[%s319 + $0xbc0] sm:$0xff]
        %v1847 = vld [vmem:[%s319 + $0xbc8] sm:$0xff]
        %v1848 = vld [vmem:[%s319 + $0xbd0] sm:$0xff]
        %v1849 = vld [vmem:[%s319 + $0xbd8] sm:$0xff]
        %v1850 = vld [vmem:[%s319 + $0xbe0] sm:$0xff]
        %v1851 = vld [vmem:[%s319 + $0xbe8] sm:$0xff]
        %v1852 = vld [vmem:[%s319 + $0xbf0] sm:$0xff]
        %v1853 = vld [vmem:[%s319 + $0xbf8] sm:$0xff]
        %v2238 = vunpack.c.l.b16 %v1470
        %v2239 = vunpack.c.h.b16 %v1470
        %v2240 = vunpack.c.l.b16 %v1471
        %v2241 = vunpack.c.h.b16 %v1471
        %v2242 = vunpack.c.l.b16 %v1472
        %v2243 = vunpack.c.h.b16 %v1472
        %v2244 = vunpack.c.l.b16 %v1473
        %v2245 = vunpack.c.h.b16 %v1473
        %v2246 = vunpack.c.l.b16 %v1474
        %v2247 = vunpack.c.h.b16 %v1474
        %v2248 = vunpack.c.l.b16 %v1475
        %v2249 = vunpack.c.h.b16 %v1475
        %v2250 = vunpack.c.l.b16 %v1476
        %v2251 = vunpack.c.h.b16 %v1476
        %v2252 = vunpack.c.l.b16 %v1477
        %v2253 = vunpack.c.h.b16 %v1477
        %v2254 = vunpack.c.l.b16 %v1478
        %v2255 = vunpack.c.h.b16 %v1478
        %v2256 = vunpack.c.l.b16 %v1479
        %v2257 = vunpack.c.h.b16 %v1479
        %v2258 = vunpack.c.l.b16 %v1480
        %v2259 = vunpack.c.h.b16 %v1480
        %v2260 = vunpack.c.l.b16 %v1481
        %v2261 = vunpack.c.h.b16 %v1481
        %v2262 = vunpack.c.l.b16 %v1482
        %v2263 = vunpack.c.h.b16 %v1482
        %v2264 = vunpack.c.l.b16 %v1483
        %v2265 = vunpack.c.h.b16 %v1483
        %v2266 = vunpack.c.l.b16 %v1484
        %v2267 = vunpack.c.h.b16 %v1484
        %v2268 = vunpack.c.l.b16 %v1485
        %v2269 = vunpack.c.h.b16 %v1485
        %v2270 = vunpack.c.l.b16 %v1486
        %v2271 = vunpack.c.h.b16 %v1486
        %v2272 = vunpack.c.l.b16 %v1487
        %v2273 = vunpack.c.h.b16 %v1487
        %v2274 = vunpack.c.l.b16 %v1488
        %v2275 = vunpack.c.h.b16 %v1488
        %v2276 = vunpack.c.l.b16 %v1489
        %v2277 = vunpack.c.h.b16 %v1489
        %v2278 = vunpack.c.l.b16 %v1490
        %v2279 = vunpack.c.h.b16 %v1490
        %v2280 = vunpack.c.l.b16 %v1491
        %v2281 = vunpack.c.h.b16 %v1491
        %v2282 = vunpack.c.l.b16 %v1492
        %v2283 = vunpack.c.h.b16 %v1492
        %v2284 = vunpack.c.l.b16 %v1493
        %v2285 = vunpack.c.h.b16 %v1493
        %v2286 = vunpack.c.l.b16 %v1494
        %v2287 = vunpack.c.h.b16 %v1494
        %v2288 = vunpack.c.l.b16 %v1495
        %v2289 = vunpack.c.h.b16 %v1495
        %v2290 = vunpack.c.l.b16 %v1496
        %v2291 = vunpack.c.h.b16 %v1496
        %v2292 = vunpack.c.l.b16 %v1497
        %v2293 = vunpack.c.h.b16 %v1497
        %v2294 = vunpack.c.l.b16 %v1498
        %v2295 = vunpack.c.h.b16 %v1498
        %v2296 = vunpack.c.l.b16 %v1499
        %v2297 = vunpack.c.h.b16 %v1499
        %v2298 = vunpack.c.l.b16 %v1500
        %v2299 = vunpack.c.h.b16 %v1500
        %v2300 = vunpack.c.l.b16 %v1501
        %v2301 = vunpack.c.h.b16 %v1501
        %v2302 = vunpack.c.l.b16 %v1502
        %v2303 = vunpack.c.h.b16 %v1502
        %v2304 = vunpack.c.l.b16 %v1503
        %v2305 = vunpack.c.h.b16 %v1503
        %v2306 = vunpack.c.l.b16 %v1504
        %v2307 = vunpack.c.h.b16 %v1504
        %v2308 = vunpack.c.l.b16 %v1505
        %v2309 = vunpack.c.h.b16 %v1505
        %v2310 = vunpack.c.l.b16 %v1506
        %v2311 = vunpack.c.h.b16 %v1506
        %v2312 = vunpack.c.l.b16 %v1507
        %v2313 = vunpack.c.h.b16 %v1507
        %v2314 = vunpack.c.l.b16 %v1508
        %v2315 = vunpack.c.h.b16 %v1508
        %v2316 = vunpack.c.l.b16 %v1509
        %v2317 = vunpack.c.h.b16 %v1509
        %v2318 = vunpack.c.l.b16 %v1510
        %v2319 = vunpack.c.h.b16 %v1510
        %v2320 = vunpack.c.l.b16 %v1511
        %v2321 = vunpack.c.h.b16 %v1511
        %v2322 = vunpack.c.l.b16 %v1512
        %v2323 = vunpack.c.h.b16 %v1512
        %v2324 = vunpack.c.l.b16 %v1513
        %v2325 = vunpack.c.h.b16 %v1513
        %v2326 = vunpack.c.l.b16 %v1514
        %v2327 = vunpack.c.h.b16 %v1514
        %v2328 = vunpack.c.l.b16 %v1515
        %v2329 = vunpack.c.h.b16 %v1515
        %v2330 = vunpack.c.l.b16 %v1516
        %v2331 = vunpack.c.h.b16 %v1516
        %v2332 = vunpack.c.l.b16 %v1517
        %v2333 = vunpack.c.h.b16 %v1517
        %v2334 = vunpack.c.l.b16 %v1518
        %v2335 = vunpack.c.h.b16 %v1518
        %v2336 = vunpack.c.l.b16 %v1519
        %v2337 = vunpack.c.h.b16 %v1519
        %v2338 = vunpack.c.l.b16 %v1520
        %v2339 = vunpack.c.h.b16 %v1520
        %v2340 = vunpack.c.l.b16 %v1521
        %v2341 = vunpack.c.h.b16 %v1521
        %v2342 = vunpack.c.l.b16 %v1522
        %v2343 = vunpack.c.h.b16 %v1522
        %v2344 = vunpack.c.l.b16 %v1523
        %v2345 = vunpack.c.h.b16 %v1523
        %v2346 = vunpack.c.l.b16 %v1524
        %v2347 = vunpack.c.h.b16 %v1524
        %v2348 = vunpack.c.l.b16 %v1525
        %v2349 = vunpack.c.h.b16 %v1525
        %v2350 = vunpack.c.l.b16 %v1526
        %v2351 = vunpack.c.h.b16 %v1526
        %v2352 = vunpack.c.l.b16 %v1527
        %v2353 = vunpack.c.h.b16 %v1527
        %v2354 = vunpack.c.l.b16 %v1528
        %v2355 = vunpack.c.h.b16 %v1528
        %v2356 = vunpack.c.l.b16 %v1529
        %v2357 = vunpack.c.h.b16 %v1529
        %v2358 = vunpack.c.l.b16 %v1530
        %v2359 = vunpack.c.h.b16 %v1530
        %v2360 = vunpack.c.l.b16 %v1531
        %v2361 = vunpack.c.h.b16 %v1531
        %v2362 = vunpack.c.l.b16 %v1532
        %v2363 = vunpack.c.h.b16 %v1532
        %v2364 = vunpack.c.l.b16 %v1533
        %v2365 = vunpack.c.h.b16 %v1533
        %v2366 = vunpack.c.l.b16 %v1534
        %v2367 = vunpack.c.h.b16 %v1534
        %v2368 = vunpack.c.l.b16 %v1535
        %v2369 = vunpack.c.h.b16 %v1535
        %v2370 = vunpack.c.l.b16 %v1536
        %v2371 = vunpack.c.h.b16 %v1536
        %v2372 = vunpack.c.l.b16 %v1537
        %v2373 = vunpack.c.h.b16 %v1537
        %v2374 = vunpack.c.l.b16 %v1538
        %v2375 = vunpack.c.h.b16 %v1538
        %v2376 = vunpack.c.l.b16 %v1539
        %v2377 = vunpack.c.h.b16 %v1539
        %v2378 = vunpack.c.l.b16 %v1540
        %v2379 = vunpack.c.h.b16 %v1540
        %v2380 = vunpack.c.l.b16 %v1541
        %v2381 = vunpack.c.h.b16 %v1541
        %v2382 = vunpack.c.l.b16 %v1542
        %v2383 = vunpack.c.h.b16 %v1542
        %v2384 = vunpack.c.l.b16 %v1543
        %v2385 = vunpack.c.h.b16 %v1543
        %v2386 = vunpack.c.l.b16 %v1544
        %v2387 = vunpack.c.h.b16 %v1544
        %v2388 = vunpack.c.l.b16 %v1545
        %v2389 = vunpack.c.h.b16 %v1545
        %v2390 = vunpack.c.l.b16 %v1546
        %v2391 = vunpack.c.h.b16 %v1546
        %v2392 = vunpack.c.l.b16 %v1547
        %v2393 = vunpack.c.h.b16 %v1547
        %v2394 = vunpack.c.l.b16 %v1548
        %v2395 = vunpack.c.h.b16 %v1548
        %v2396 = vunpack.c.l.b16 %v1549
        %v2397 = vunpack.c.h.b16 %v1549
        %v2398 = vunpack.c.l.b16 %v1550
        %v2399 = vunpack.c.h.b16 %v1550
        %v2400 = vunpack.c.l.b16 %v1551
        %v2401 = vunpack.c.h.b16 %v1551
        %v2402 = vunpack.c.l.b16 %v1552
        %v2403 = vunpack.c.h.b16 %v1552
        %v2404 = vunpack.c.l.b16 %v1553
        %v2405 = vunpack.c.h.b16 %v1553
        %v2406 = vunpack.c.l.b16 %v1554
        %v2407 = vunpack.c.h.b16 %v1554
        %v2408 = vunpack.c.l.b16 %v1555
        %v2409 = vunpack.c.h.b16 %v1555
        %v2410 = vunpack.c.l.b16 %v1556
        %v2411 = vunpack.c.h.b16 %v1556
        %v2412 = vunpack.c.l.b16 %v1557
        %v2413 = vunpack.c.h.b16 %v1557
        %v2414 = vunpack.c.l.b16 %v1558
        %v2415 = vunpack.c.h.b16 %v1558
        %v2416 = vunpack.c.l.b16 %v1559
        %v2417 = vunpack.c.h.b16 %v1559
        %v2418 = vunpack.c.l.b16 %v1560
        %v2419 = vunpack.c.h.b16 %v1560
        %v2420 = vunpack.c.l.b16 %v1561
        %v2421 = vunpack.c.h.b16 %v1561
        %v2422 = vunpack.c.l.b16 %v1562
        %v2423 = vunpack.c.h.b16 %v1562
        %v2424 = vunpack.c.l.b16 %v1563
        %v2425 = vunpack.c.h.b16 %v1563
        %v2426 = vunpack.c.l.b16 %v1564
        %v2427 = vunpack.c.h.b16 %v1564
        %v2428 = vunpack.c.l.b16 %v1565
        %v2429 = vunpack.c.h.b16 %v1565
        %v2430 = vunpack.c.l.b16 %v1566
        %v2431 = vunpack.c.h.b16 %v1566
        %v2432 = vunpack.c.l.b16 %v1567
        %v2433 = vunpack.c.h.b16 %v1567
        %v2434 = vunpack.c.l.b16 %v1568
        %v2435 = vunpack.c.h.b16 %v1568
        %v2436 = vunpack.c.l.b16 %v1569
        %v2437 = vunpack.c.h.b16 %v1569
        %v2438 = vunpack.c.l.b16 %v1570
        %v2439 = vunpack.c.h.b16 %v1570
        %v2440 = vunpack.c.l.b16 %v1571
        %v2441 = vunpack.c.h.b16 %v1571
        %v2442 = vunpack.c.l.b16 %v1572
        %v2443 = vunpack.c.h.b16 %v1572
        %v2444 = vunpack.c.l.b16 %v1573
        %v2445 = vunpack.c.h.b16 %v1573
        %v2446 = vunpack.c.l.b16 %v1574
        %v2447 = vunpack.c.h.b16 %v1574
        %v2448 = vunpack.c.l.b16 %v1575
        %v2449 = vunpack.c.h.b16 %v1575
        %v2450 = vunpack.c.l.b16 %v1576
        %v2451 = vunpack.c.h.b16 %v1576
        %v2452 = vunpack.c.l.b16 %v1577
        %v2453 = vunpack.c.h.b16 %v1577
        %v2454 = vunpack.c.l.b16 %v1578
        %v2455 = vunpack.c.h.b16 %v1578
        %v2456 = vunpack.c.l.b16 %v1579
        %v2457 = vunpack.c.h.b16 %v1579
        %v2458 = vunpack.c.l.b16 %v1580
        %v2459 = vunpack.c.h.b16 %v1580
        %v2460 = vunpack.c.l.b16 %v1581
        %v2461 = vunpack.c.h.b16 %v1581
        %v2462 = vunpack.c.l.b16 %v1582
        %v2463 = vunpack.c.h.b16 %v1582
        %v2464 = vunpack.c.l.b16 %v1583
        %v2465 = vunpack.c.h.b16 %v1583
        %v2466 = vunpack.c.l.b16 %v1584
        %v2467 = vunpack.c.h.b16 %v1584
        %v2468 = vunpack.c.l.b16 %v1585
        %v2469 = vunpack.c.h.b16 %v1585
        %v2470 = vunpack.c.l.b16 %v1586
        %v2471 = vunpack.c.h.b16 %v1586
        %v2472 = vunpack.c.l.b16 %v1587
        %v2473 = vunpack.c.h.b16 %v1587
        %v2474 = vunpack.c.l.b16 %v1588
        %v2475 = vunpack.c.h.b16 %v1588
        %v2476 = vunpack.c.l.b16 %v1589
        %v2477 = vunpack.c.h.b16 %v1589
        %v2478 = vunpack.c.l.b16 %v1590
        %v2479 = vunpack.c.h.b16 %v1590
        %v2480 = vunpack.c.l.b16 %v1591
        %v2481 = vunpack.c.h.b16 %v1591
        %v2482 = vunpack.c.l.b16 %v1592
        %v2483 = vunpack.c.h.b16 %v1592
        %v2484 = vunpack.c.l.b16 %v1593
        %v2485 = vunpack.c.h.b16 %v1593
        %v2486 = vunpack.c.l.b16 %v1594
        %v2487 = vunpack.c.h.b16 %v1594
        %v2488 = vunpack.c.l.b16 %v1595
        %v2489 = vunpack.c.h.b16 %v1595
        %v2490 = vunpack.c.l.b16 %v1596
        %v2491 = vunpack.c.h.b16 %v1596
        %v2492 = vunpack.c.l.b16 %v1597
        %v2493 = vunpack.c.h.b16 %v1597
        %v2494 = vunpack.c.l.b16 %v1598
        %v2495 = vunpack.c.h.b16 %v1598
        %v2496 = vunpack.c.l.b16 %v1599
        %v2497 = vunpack.c.h.b16 %v1599
        %v2498 = vunpack.c.l.b16 %v1600
        %v2499 = vunpack.c.h.b16 %v1600
        %v2500 = vunpack.c.l.b16 %v1601
        %v2501 = vunpack.c.h.b16 %v1601
        %v2502 = vunpack.c.l.b16 %v1602
        %v2503 = vunpack.c.h.b16 %v1602
        %v2504 = vunpack.c.l.b16 %v1603
        %v2505 = vunpack.c.h.b16 %v1603
        %v2506 = vunpack.c.l.b16 %v1604
        %v2507 = vunpack.c.h.b16 %v1604
        %v2508 = vunpack.c.l.b16 %v1605
        %v2509 = vunpack.c.h.b16 %v1605
        %v2510 = vunpack.c.l.b16 %v1606
        %v2511 = vunpack.c.h.b16 %v1606
        %v2512 = vunpack.c.l.b16 %v1607
        %v2513 = vunpack.c.h.b16 %v1607
        %v2514 = vunpack.c.l.b16 %v1608
        %v2515 = vunpack.c.h.b16 %v1608
        %v2516 = vunpack.c.l.b16 %v1609
        %v2517 = vunpack.c.h.b16 %v1609
        %v2518 = vunpack.c.l.b16 %v1610
        %v2519 = vunpack.c.h.b16 %v1610
        %v2520 = vunpack.c.l.b16 %v1611
        %v2521 = vunpack.c.h.b16 %v1611
        %v2522 = vunpack.c.l.b16 %v1612
        %v2523 = vunpack.c.h.b16 %v1612
        %v2524 = vunpack.c.l.b16 %v1613
        %v2525 = vunpack.c.h.b16 %v1613
        %v2526 = vunpack.c.l.b16 %v1614
        %v2527 = vunpack.c.h.b16 %v1614
        %v2528 = vunpack.c.l.b16 %v1615
        %v2529 = vunpack.c.h.b16 %v1615
        %v2530 = vunpack.c.l.b16 %v1616
        %v2531 = vunpack.c.h.b16 %v1616
        %v2532 = vunpack.c.l.b16 %v1617
        %v2533 = vunpack.c.h.b16 %v1617
        %v2534 = vunpack.c.l.b16 %v1618
        %v2535 = vunpack.c.h.b16 %v1618
        %v2536 = vunpack.c.l.b16 %v1619
        %v2537 = vunpack.c.h.b16 %v1619
        %v2538 = vunpack.c.l.b16 %v1620
        %v2539 = vunpack.c.h.b16 %v1620
        %v2540 = vunpack.c.l.b16 %v1621
        %v2541 = vunpack.c.h.b16 %v1621
        %v2542 = vunpack.c.l.b16 %v1622
        %v2543 = vunpack.c.h.b16 %v1622
        %v2544 = vunpack.c.l.b16 %v1623
        %v2545 = vunpack.c.h.b16 %v1623
        %v2546 = vunpack.c.l.b16 %v1624
        %v2547 = vunpack.c.h.b16 %v1624
        %v2548 = vunpack.c.l.b16 %v1625
        %v2549 = vunpack.c.h.b16 %v1625
        %v2550 = vunpack.c.l.b16 %v1626
        %v2551 = vunpack.c.h.b16 %v1626
        %v2552 = vunpack.c.l.b16 %v1627
        %v2553 = vunpack.c.h.b16 %v1627
        %v2554 = vunpack.c.l.b16 %v1628
        %v2555 = vunpack.c.h.b16 %v1628
        %v2556 = vunpack.c.l.b16 %v1629
        %v2557 = vunpack.c.h.b16 %v1629
        %v2558 = vunpack.c.l.b16 %v1630
        %v2559 = vunpack.c.h.b16 %v1630
        %v2560 = vunpack.c.l.b16 %v1631
        %v2561 = vunpack.c.h.b16 %v1631
        %v2562 = vunpack.c.l.b16 %v1632
        %v2563 = vunpack.c.h.b16 %v1632
        %v2564 = vunpack.c.l.b16 %v1633
        %v2565 = vunpack.c.h.b16 %v1633
        %v2566 = vunpack.c.l.b16 %v1634
        %v2567 = vunpack.c.h.b16 %v1634
        %v2568 = vunpack.c.l.b16 %v1635
        %v2569 = vunpack.c.h.b16 %v1635
        %v2570 = vunpack.c.l.b16 %v1636
        %v2571 = vunpack.c.h.b16 %v1636
        %v2572 = vunpack.c.l.b16 %v1637
        %v2573 = vunpack.c.h.b16 %v1637
        %v2574 = vunpack.c.l.b16 %v1638
        %v2575 = vunpack.c.h.b16 %v1638
        %v2576 = vunpack.c.l.b16 %v1639
        %v2577 = vunpack.c.h.b16 %v1639
        %v2578 = vunpack.c.l.b16 %v1640
        %v2579 = vunpack.c.h.b16 %v1640
        %v2580 = vunpack.c.l.b16 %v1641
        %v2581 = vunpack.c.h.b16 %v1641
        %v2582 = vunpack.c.l.b16 %v1642
        %v2583 = vunpack.c.h.b16 %v1642
        %v2584 = vunpack.c.l.b16 %v1643
        %v2585 = vunpack.c.h.b16 %v1643
        %v2586 = vunpack.c.l.b16 %v1644
        %v2587 = vunpack.c.h.b16 %v1644
        %v2588 = vunpack.c.l.b16 %v1645
        %v2589 = vunpack.c.h.b16 %v1645
        %v2590 = vunpack.c.l.b16 %v1646
        %v2591 = vunpack.c.h.b16 %v1646
        %v2592 = vunpack.c.l.b16 %v1647
        %v2593 = vunpack.c.h.b16 %v1647
        %v2594 = vunpack.c.l.b16 %v1648
        %v2595 = vunpack.c.h.b16 %v1648
        %v2596 = vunpack.c.l.b16 %v1649
        %v2597 = vunpack.c.h.b16 %v1649
        %v2598 = vunpack.c.l.b16 %v1650
        %v2599 = vunpack.c.h.b16 %v1650
        %v2600 = vunpack.c.l.b16 %v1651
        %v2601 = vunpack.c.h.b16 %v1651
        %v2602 = vunpack.c.l.b16 %v1652
        %v2603 = vunpack.c.h.b16 %v1652
        %v2604 = vunpack.c.l.b16 %v1653
        %v2605 = vunpack.c.h.b16 %v1653
        %v2606 = vunpack.c.l.b16 %v1654
        %v2607 = vunpack.c.h.b16 %v1654
        %v2608 = vunpack.c.l.b16 %v1655
        %v2609 = vunpack.c.h.b16 %v1655
        %v2610 = vunpack.c.l.b16 %v1656
        %v2611 = vunpack.c.h.b16 %v1656
        %v2612 = vunpack.c.l.b16 %v1657
        %v2613 = vunpack.c.h.b16 %v1657
        %v2614 = vunpack.c.l.b16 %v1658
        %v2615 = vunpack.c.h.b16 %v1658
        %v2616 = vunpack.c.l.b16 %v1659
        %v2617 = vunpack.c.h.b16 %v1659
        %v2618 = vunpack.c.l.b16 %v1660
        %v2619 = vunpack.c.h.b16 %v1660
        %v2620 = vunpack.c.l.b16 %v1661
        %v2621 = vunpack.c.h.b16 %v1661
        %v2622 = vunpack.c.l.b16 %v1662
        %v2623 = vunpack.c.h.b16 %v1662
        %v2624 = vunpack.c.l.b16 %v1663
        %v2625 = vunpack.c.h.b16 %v1663
        %v2626 = vunpack.c.l.b16 %v1664
        %v2627 = vunpack.c.h.b16 %v1664
        %v2628 = vunpack.c.l.b16 %v1665
        %v2629 = vunpack.c.h.b16 %v1665
        %v2630 = vunpack.c.l.b16 %v1666
        %v2631 = vunpack.c.h.b16 %v1666
        %v2632 = vunpack.c.l.b16 %v1667
        %v2633 = vunpack.c.h.b16 %v1667
        %v2634 = vunpack.c.l.b16 %v1668
        %v2635 = vunpack.c.h.b16 %v1668
        %v2636 = vunpack.c.l.b16 %v1669
        %v2637 = vunpack.c.h.b16 %v1669
        %v2638 = vunpack.c.l.b16 %v1670
        %v2639 = vunpack.c.h.b16 %v1670
        %v2640 = vunpack.c.l.b16 %v1671
        %v2641 = vunpack.c.h.b16 %v1671
        %v2642 = vunpack.c.l.b16 %v1672
        %v2643 = vunpack.c.h.b16 %v1672
        %v2644 = vunpack.c.l.b16 %v1673
        %v2645 = vunpack.c.h.b16 %v1673
        %v2646 = vunpack.c.l.b16 %v1674
        %v2647 = vunpack.c.h.b16 %v1674
        %v2648 = vunpack.c.l.b16 %v1675
        %v2649 = vunpack.c.h.b16 %v1675
        %v2650 = vunpack.c.l.b16 %v1676
        %v2651 = vunpack.c.h.b16 %v1676
        %v2652 = vunpack.c.l.b16 %v1677
        %v2653 = vunpack.c.h.b16 %v1677
        %v2654 = vunpack.c.l.b16 %v1678
        %v2655 = vunpack.c.h.b16 %v1678
        %v2656 = vunpack.c.l.b16 %v1679
        %v2657 = vunpack.c.h.b16 %v1679
        %v2658 = vunpack.c.l.b16 %v1680
        %v2659 = vunpack.c.h.b16 %v1680
        %v2660 = vunpack.c.l.b16 %v1681
        %v2661 = vunpack.c.h.b16 %v1681
        %v2662 = vunpack.c.l.b16 %v1682
        %v2663 = vunpack.c.h.b16 %v1682
        %v2664 = vunpack.c.l.b16 %v1683
        %v2665 = vunpack.c.h.b16 %v1683
        %v2666 = vunpack.c.l.b16 %v1684
        %v2667 = vunpack.c.h.b16 %v1684
        %v2668 = vunpack.c.l.b16 %v1685
        %v2669 = vunpack.c.h.b16 %v1685
        %v2670 = vunpack.c.l.b16 %v1686
        %v2671 = vunpack.c.h.b16 %v1686
        %v2672 = vunpack.c.l.b16 %v1687
        %v2673 = vunpack.c.h.b16 %v1687
        %v2674 = vunpack.c.l.b16 %v1688
        %v2675 = vunpack.c.h.b16 %v1688
        %v2676 = vunpack.c.l.b16 %v1689
        %v2677 = vunpack.c.h.b16 %v1689
        %v2678 = vunpack.c.l.b16 %v1690
        %v2679 = vunpack.c.h.b16 %v1690
        %v2680 = vunpack.c.l.b16 %v1691
        %v2681 = vunpack.c.h.b16 %v1691
        %v2682 = vunpack.c.l.b16 %v1692
        %v2683 = vunpack.c.h.b16 %v1692
        %v2684 = vunpack.c.l.b16 %v1693
        %v2685 = vunpack.c.h.b16 %v1693
        %v2686 = vunpack.c.l.b16 %v1694
        %v2687 = vunpack.c.h.b16 %v1694
        %v2688 = vunpack.c.l.b16 %v1695
        %v2689 = vunpack.c.h.b16 %v1695
        %v2690 = vunpack.c.l.b16 %v1696
        %v2691 = vunpack.c.h.b16 %v1696
        %v2692 = vunpack.c.l.b16 %v1697
        %v2693 = vunpack.c.h.b16 %v1697
        %v2694 = vunpack.c.l.b16 %v1698
        %v2695 = vunpack.c.h.b16 %v1698
        %v2696 = vunpack.c.l.b16 %v1699
        %v2697 = vunpack.c.h.b16 %v1699
        %v2698 = vunpack.c.l.b16 %v1700
        %v2699 = vunpack.c.h.b16 %v1700
        %v2700 = vunpack.c.l.b16 %v1701
        %v2701 = vunpack.c.h.b16 %v1701
        %v2702 = vunpack.c.l.b16 %v1702
        %v2703 = vunpack.c.h.b16 %v1702
        %v2704 = vunpack.c.l.b16 %v1703
        %v2705 = vunpack.c.h.b16 %v1703
        %v2706 = vunpack.c.l.b16 %v1704
        %v2707 = vunpack.c.h.b16 %v1704
        %v2708 = vunpack.c.l.b16 %v1705
        %v2709 = vunpack.c.h.b16 %v1705
        %v2710 = vunpack.c.l.b16 %v1706
        %v2711 = vunpack.c.h.b16 %v1706
        %v2712 = vunpack.c.l.b16 %v1707
        %v2713 = vunpack.c.h.b16 %v1707
        %v2714 = vunpack.c.l.b16 %v1708
        %v2715 = vunpack.c.h.b16 %v1708
        %v2716 = vunpack.c.l.b16 %v1709
        %v2717 = vunpack.c.h.b16 %v1709
        %v2718 = vunpack.c.l.b16 %v1710
        %v2719 = vunpack.c.h.b16 %v1710
        %v2720 = vunpack.c.l.b16 %v1711
        %v2721 = vunpack.c.h.b16 %v1711
        %v2722 = vunpack.c.l.b16 %v1712
        %v2723 = vunpack.c.h.b16 %v1712
        %v2724 = vunpack.c.l.b16 %v1713
        %v2725 = vunpack.c.h.b16 %v1713
        %v2726 = vunpack.c.l.b16 %v1714
        %v2727 = vunpack.c.h.b16 %v1714
        %v2728 = vunpack.c.l.b16 %v1715
        %v2729 = vunpack.c.h.b16 %v1715
        %v2730 = vunpack.c.l.b16 %v1716
        %v2731 = vunpack.c.h.b16 %v1716
        %v2732 = vunpack.c.l.b16 %v1717
        %v2733 = vunpack.c.h.b16 %v1717
        %v2734 = vunpack.c.l.b16 %v1718
        %v2735 = vunpack.c.h.b16 %v1718
        %v2736 = vunpack.c.l.b16 %v1719
        %v2737 = vunpack.c.h.b16 %v1719
        %v2738 = vunpack.c.l.b16 %v1720
        %v2739 = vunpack.c.h.b16 %v1720
        %v2740 = vunpack.c.l.b16 %v1721
        %v2741 = vunpack.c.h.b16 %v1721
        %v2742 = vunpack.c.l.b16 %v1722
        %v2743 = vunpack.c.h.b16 %v1722
        %v2744 = vunpack.c.l.b16 %v1723
        %v2745 = vunpack.c.h.b16 %v1723
        %v2746 = vunpack.c.l.b16 %v1724
        %v2747 = vunpack.c.h.b16 %v1724
        %v2748 = vunpack.c.l.b16 %v1725
        %v2749 = vunpack.c.h.b16 %v1725
        %v2750 = vunpack.c.l.b16 %v1726
        %v2751 = vunpack.c.h.b16 %v1726
        %v2752 = vunpack.c.l.b16 %v1727
        %v2753 = vunpack.c.h.b16 %v1727
        %v2754 = vunpack.c.l.b16 %v1728
        %v2755 = vunpack.c.h.b16 %v1728
        %v2756 = vunpack.c.l.b16 %v1729
        %v2757 = vunpack.c.h.b16 %v1729
        %v2758 = vunpack.c.l.b16 %v1730
        %v2759 = vunpack.c.h.b16 %v1730
        %v2760 = vunpack.c.l.b16 %v1731
        %v2761 = vunpack.c.h.b16 %v1731
        %v2762 = vunpack.c.l.b16 %v1732
        %v2763 = vunpack.c.h.b16 %v1732
        %v2764 = vunpack.c.l.b16 %v1733
        %v2765 = vunpack.c.h.b16 %v1733
        %v2766 = vunpack.c.l.b16 %v1734
        %v2767 = vunpack.c.h.b16 %v1734
        %v2768 = vunpack.c.l.b16 %v1735
        %v2769 = vunpack.c.h.b16 %v1735
        %v2770 = vunpack.c.l.b16 %v1736
        %v2771 = vunpack.c.h.b16 %v1736
        %v2772 = vunpack.c.l.b16 %v1737
        %v2773 = vunpack.c.h.b16 %v1737
        %v2774 = vunpack.c.l.b16 %v1738
        %v2775 = vunpack.c.h.b16 %v1738
        %v2776 = vunpack.c.l.b16 %v1739
        %v2777 = vunpack.c.h.b16 %v1739
        %v2778 = vunpack.c.l.b16 %v1740
        %v2779 = vunpack.c.h.b16 %v1740
        %v2780 = vunpack.c.l.b16 %v1741
        %v2781 = vunpack.c.h.b16 %v1741
        %v2782 = vunpack.c.l.b16 %v1742
        %v2783 = vunpack.c.h.b16 %v1742
        %v2784 = vunpack.c.l.b16 %v1743
        %v2785 = vunpack.c.h.b16 %v1743
        %v2786 = vunpack.c.l.b16 %v1744
        %v2787 = vunpack.c.h.b16 %v1744
        %v2788 = vunpack.c.l.b16 %v1745
        %v2789 = vunpack.c.h.b16 %v1745
        %v2790 = vunpack.c.l.b16 %v1746
        %v2791 = vunpack.c.h.b16 %v1746
        %v2792 = vunpack.c.l.b16 %v1747
        %v2793 = vunpack.c.h.b16 %v1747
        %v2794 = vunpack.c.l.b16 %v1748
        %v2795 = vunpack.c.h.b16 %v1748
        %v2796 = vunpack.c.l.b16 %v1749
        %v2797 = vunpack.c.h.b16 %v1749
        %v2798 = vunpack.c.l.b16 %v1750
        %v2799 = vunpack.c.h.b16 %v1750
        %v2800 = vunpack.c.l.b16 %v1751
        %v2801 = vunpack.c.h.b16 %v1751
        %v2802 = vunpack.c.l.b16 %v1752
        %v2803 = vunpack.c.h.b16 %v1752
        %v2804 = vunpack.c.l.b16 %v1753
        %v2805 = vunpack.c.h.b16 %v1753
        %v2806 = vunpack.c.l.b16 %v1754
        %v2807 = vunpack.c.h.b16 %v1754
        %v2808 = vunpack.c.l.b16 %v1755
        %v2809 = vunpack.c.h.b16 %v1755
        %v2810 = vunpack.c.l.b16 %v1756
        %v2811 = vunpack.c.h.b16 %v1756
        %v2812 = vunpack.c.l.b16 %v1757
        %v2813 = vunpack.c.h.b16 %v1757
        %v2814 = vunpack.c.l.b16 %v1758
        %v2815 = vunpack.c.h.b16 %v1758
        %v2816 = vunpack.c.l.b16 %v1759
        %v2817 = vunpack.c.h.b16 %v1759
        %v2818 = vunpack.c.l.b16 %v1760
        %v2819 = vunpack.c.h.b16 %v1760
        %v2820 = vunpack.c.l.b16 %v1761
        %v2821 = vunpack.c.h.b16 %v1761
        %v2822 = vunpack.c.l.b16 %v1762
        %v2823 = vunpack.c.h.b16 %v1762
        %v2824 = vunpack.c.l.b16 %v1763
        %v2825 = vunpack.c.h.b16 %v1763
        %v2826 = vunpack.c.l.b16 %v1764
        %v2827 = vunpack.c.h.b16 %v1764
        %v2828 = vunpack.c.l.b16 %v1765
        %v2829 = vunpack.c.h.b16 %v1765
        %v2830 = vunpack.c.l.b16 %v1766
        %v2831 = vunpack.c.h.b16 %v1766
        %v2832 = vunpack.c.l.b16 %v1767
        %v2833 = vunpack.c.h.b16 %v1767
        %v2834 = vunpack.c.l.b16 %v1768
        %v2835 = vunpack.c.h.b16 %v1768
        %v2836 = vunpack.c.l.b16 %v1769
        %v2837 = vunpack.c.h.b16 %v1769
        %v2838 = vunpack.c.l.b16 %v1770
        %v2839 = vunpack.c.h.b16 %v1770
        %v2840 = vunpack.c.l.b16 %v1771
        %v2841 = vunpack.c.h.b16 %v1771
        %v2842 = vunpack.c.l.b16 %v1772
        %v2843 = vunpack.c.h.b16 %v1772
        %v2844 = vunpack.c.l.b16 %v1773
        %v2845 = vunpack.c.h.b16 %v1773
        %v2846 = vunpack.c.l.b16 %v1774
        %v2847 = vunpack.c.h.b16 %v1774
        %v2848 = vunpack.c.l.b16 %v1775
        %v2849 = vunpack.c.h.b16 %v1775
        %v2850 = vunpack.c.l.b16 %v1776
        %v2851 = vunpack.c.h.b16 %v1776
        %v2852 = vunpack.c.l.b16 %v1777
        %v2853 = vunpack.c.h.b16 %v1777
        %v2854 = vunpack.c.l.b16 %v1778
        %v2855 = vunpack.c.h.b16 %v1778
        %v2856 = vunpack.c.l.b16 %v1779
        %v2857 = vunpack.c.h.b16 %v1779
        %v2858 = vunpack.c.l.b16 %v1780
        %v2859 = vunpack.c.h.b16 %v1780
        %v2860 = vunpack.c.l.b16 %v1781
        %v2861 = vunpack.c.h.b16 %v1781
        %v2862 = vunpack.c.l.b16 %v1782
        %v2863 = vunpack.c.h.b16 %v1782
        %v2864 = vunpack.c.l.b16 %v1783
        %v2865 = vunpack.c.h.b16 %v1783
        %v2866 = vunpack.c.l.b16 %v1784
        %v2867 = vunpack.c.h.b16 %v1784
        %v2868 = vunpack.c.l.b16 %v1785
        %v2869 = vunpack.c.h.b16 %v1785
        %v2870 = vunpack.c.l.b16 %v1786
        %v2871 = vunpack.c.h.b16 %v1786
        %v2872 = vunpack.c.l.b16 %v1787
        %v2873 = vunpack.c.h.b16 %v1787
        %v2874 = vunpack.c.l.b16 %v1788
        %v2875 = vunpack.c.h.b16 %v1788
        %v2876 = vunpack.c.l.b16 %v1789
        %v2877 = vunpack.c.h.b16 %v1789
        %v2878 = vunpack.c.l.b16 %v1790
        %v2879 = vunpack.c.h.b16 %v1790
        %v2880 = vunpack.c.l.b16 %v1791
        %v2881 = vunpack.c.h.b16 %v1791
        %v2882 = vunpack.c.l.b16 %v1792
        %v2883 = vunpack.c.h.b16 %v1792
        %v2884 = vunpack.c.l.b16 %v1793
        %v2885 = vunpack.c.h.b16 %v1793
        %v2886 = vunpack.c.l.b16 %v1794
        %v2887 = vunpack.c.h.b16 %v1794
        %v2888 = vunpack.c.l.b16 %v1795
        %v2889 = vunpack.c.h.b16 %v1795
        %v2890 = vunpack.c.l.b16 %v1796
        %v2891 = vunpack.c.h.b16 %v1796
        %v2892 = vunpack.c.l.b16 %v1797
        %v2893 = vunpack.c.h.b16 %v1797
        %v2894 = vunpack.c.l.b16 %v1798
        %v2895 = vunpack.c.h.b16 %v1798
        %v2896 = vunpack.c.l.b16 %v1799
        %v2897 = vunpack.c.h.b16 %v1799
        %v2898 = vunpack.c.l.b16 %v1800
        %v2899 = vunpack.c.h.b16 %v1800
        %v2900 = vunpack.c.l.b16 %v1801
        %v2901 = vunpack.c.h.b16 %v1801
        %v2902 = vunpack.c.l.b16 %v1802
        %v2903 = vunpack.c.h.b16 %v1802
        %v2904 = vunpack.c.l.b16 %v1803
        %v2905 = vunpack.c.h.b16 %v1803
        %v2906 = vunpack.c.l.b16 %v1804
        %v2907 = vunpack.c.h.b16 %v1804
        %v2908 = vunpack.c.l.b16 %v1805
        %v2909 = vunpack.c.h.b16 %v1805
        %v2910 = vunpack.c.l.b16 %v1806
        %v2911 = vunpack.c.h.b16 %v1806
        %v2912 = vunpack.c.l.b16 %v1807
        %v2913 = vunpack.c.h.b16 %v1807
        %v2914 = vunpack.c.l.b16 %v1808
        %v2915 = vunpack.c.h.b16 %v1808
        %v2916 = vunpack.c.l.b16 %v1809
        %v2917 = vunpack.c.h.b16 %v1809
        %v2918 = vunpack.c.l.b16 %v1810
        %v2919 = vunpack.c.h.b16 %v1810
        %v2920 = vunpack.c.l.b16 %v1811
        %v2921 = vunpack.c.h.b16 %v1811
        %v2922 = vunpack.c.l.b16 %v1812
        %v2923 = vunpack.c.h.b16 %v1812
        %v2924 = vunpack.c.l.b16 %v1813
        %v2925 = vunpack.c.h.b16 %v1813
        %v2926 = vunpack.c.l.b16 %v1814
        %v2927 = vunpack.c.h.b16 %v1814
        %v2928 = vunpack.c.l.b16 %v1815
        %v2929 = vunpack.c.h.b16 %v1815
        %v2930 = vunpack.c.l.b16 %v1816
        %v2931 = vunpack.c.h.b16 %v1816
        %v2932 = vunpack.c.l.b16 %v1817
        %v2933 = vunpack.c.h.b16 %v1817
        %v2934 = vunpack.c.l.b16 %v1818
        %v2935 = vunpack.c.h.b16 %v1818
        %v2936 = vunpack.c.l.b16 %v1819
        %v2937 = vunpack.c.h.b16 %v1819
        %v2938 = vunpack.c.l.b16 %v1820
        %v2939 = vunpack.c.h.b16 %v1820
        %v2940 = vunpack.c.l.b16 %v1821
        %v2941 = vunpack.c.h.b16 %v1821
        %v2942 = vunpack.c.l.b16 %v1822
        %v2943 = vunpack.c.h.b16 %v1822
        %v2944 = vunpack.c.l.b16 %v1823
        %v2945 = vunpack.c.h.b16 %v1823
        %v2946 = vunpack.c.l.b16 %v1824
        %v2947 = vunpack.c.h.b16 %v1824
        %v2948 = vunpack.c.l.b16 %v1825
        %v2949 = vunpack.c.h.b16 %v1825
        %v2950 = vunpack.c.l.b16 %v1826
        %v2951 = vunpack.c.h.b16 %v1826
        %v2952 = vunpack.c.l.b16 %v1827
        %v2953 = vunpack.c.h.b16 %v1827
        %v2954 = vunpack.c.l.b16 %v1828
        %v2955 = vunpack.c.h.b16 %v1828
        %v2956 = vunpack.c.l.b16 %v1829
        %v2957 = vunpack.c.h.b16 %v1829
        %v2958 = vunpack.c.l.b16 %v1830
        %v2959 = vunpack.c.h.b16 %v1830
        %v2960 = vunpack.c.l.b16 %v1831
        %v2961 = vunpack.c.h.b16 %v1831
        %v2962 = vunpack.c.l.b16 %v1832
        %v2963 = vunpack.c.h.b16 %v1832
        %v2964 = vunpack.c.l.b16 %v1833
        %v2965 = vunpack.c.h.b16 %v1833
        %v2966 = vunpack.c.l.b16 %v1834
        %v2967 = vunpack.c.h.b16 %v1834
        %v2968 = vunpack.c.l.b16 %v1835
        %v2969 = vunpack.c.h.b16 %v1835
        %v2970 = vunpack.c.l.b16 %v1836
        %v2971 = vunpack.c.h.b16 %v1836
        %v2972 = vunpack.c.l.b16 %v1837
        %v2973 = vunpack.c.h.b16 %v1837
        %v2974 = vunpack.c.l.b16 %v1838
        %v2975 = vunpack.c.h.b16 %v1838
        %v2976 = vunpack.c.l.b16 %v1839
        %v2977 = vunpack.c.h.b16 %v1839
        %v2978 = vunpack.c.l.b16 %v1840
        %v2979 = vunpack.c.h.b16 %v1840
        %v2980 = vunpack.c.l.b16 %v1841
        %v2981 = vunpack.c.h.b16 %v1841
        %v2982 = vunpack.c.l.b16 %v1842
        %v2983 = vunpack.c.h.b16 %v1842
        %v2984 = vunpack.c.l.b16 %v1843
        %v2985 = vunpack.c.h.b16 %v1843
        %v2986 = vunpack.c.l.b16 %v1844
        %v2987 = vunpack.c.h.b16 %v1844
        %v2988 = vunpack.c.l.b16 %v1845
        %v2989 = vunpack.c.h.b16 %v1845
        %v2990 = vunpack.c.l.b16 %v1846
        %v2991 = vunpack.c.h.b16 %v1846
        %v2992 = vunpack.c.l.b16 %v1847
        %v2993 = vunpack.c.h.b16 %v1847
        %v2994 = vunpack.c.l.b16 %v1848
        %v2995 = vunpack.c.h.b16 %v1848
        %v2996 = vunpack.c.l.b16 %v1849
        %v2997 = vunpack.c.h.b16 %v1849
        %v2998 = vunpack.c.l.b16 %v1850
        %v2999 = vunpack.c.h.b16 %v1850
        %v3000 = vunpack.c.l.b16 %v1851
        %v3001 = vunpack.c.h.b16 %v1851
        %v3002 = vunpack.c.l.b16 %v1852
        %v3003 = vunpack.c.h.b16 %v1852
        %v3004 = vunpack.c.l.b16 %v1853
        %v3005 = vunpack.c.h.b16 %v1853
        %v3006 = vpack.c.b16 %v2240, %v2238
        %v3007 = vpack.c.b16 %v2241, %v2239
        %v3008 = vpack.c.b16 %v2244, %v2242
        %v3009 = vpack.c.b16 %v2245, %v2243
        %v3010 = vpack.c.b16 %v2248, %v2246
        %v3011 = vpack.c.b16 %v2249, %v2247
        %v3012 = vpack.c.b16 %v2252, %v2250
        %v3013 = vpack.c.b16 %v2253, %v2251
        %v3014 = vpack.c.b16 %v2256, %v2254
        %v3015 = vpack.c.b16 %v2257, %v2255
        %v3016 = vpack.c.b16 %v2260, %v2258
        %v3017 = vpack.c.b16 %v2261, %v2259
        %v3018 = vpack.c.b16 %v2264, %v2262
        %v3019 = vpack.c.b16 %v2265, %v2263
        %v3020 = vpack.c.b16 %v2268, %v2266
        %v3021 = vpack.c.b16 %v2269, %v2267
        %v3022 = vpack.c.b16 %v2272, %v2270
        %v3023 = vpack.c.b16 %v2273, %v2271
        %v3024 = vpack.c.b16 %v2276, %v2274
        %v3025 = vpack.c.b16 %v2277, %v2275
        %v3026 = vpack.c.b16 %v2280, %v2278
        %v3027 = vpack.c.b16 %v2281, %v2279
        %v3028 = vpack.c.b16 %v2284, %v2282
        %v3029 = vpack.c.b16 %v2285, %v2283
        %v3030 = vpack.c.b16 %v2288, %v2286
        %v3031 = vpack.c.b16 %v2289, %v2287
        %v3032 = vpack.c.b16 %v2292, %v2290
        %v3033 = vpack.c.b16 %v2293, %v2291
        %v3034 = vpack.c.b16 %v2296, %v2294
        %v3035 = vpack.c.b16 %v2297, %v2295
        %v3036 = vpack.c.b16 %v2300, %v2298
        %v3037 = vpack.c.b16 %v2301, %v2299
        %v3038 = vpack.c.b16 %v2304, %v2302
        %v3039 = vpack.c.b16 %v2305, %v2303
        %v3040 = vpack.c.b16 %v2308, %v2306
        %v3041 = vpack.c.b16 %v2309, %v2307
        %v3042 = vpack.c.b16 %v2312, %v2310
        %v3043 = vpack.c.b16 %v2313, %v2311
        %v3044 = vpack.c.b16 %v2316, %v2314
        %v3045 = vpack.c.b16 %v2317, %v2315
        %v3046 = vpack.c.b16 %v2320, %v2318
        %v3047 = vpack.c.b16 %v2321, %v2319
        %v3048 = vpack.c.b16 %v2324, %v2322
        %v3049 = vpack.c.b16 %v2325, %v2323
        %v3050 = vpack.c.b16 %v2328, %v2326
        %v3051 = vpack.c.b16 %v2329, %v2327
        %v3052 = vpack.c.b16 %v2332, %v2330
        %v3053 = vpack.c.b16 %v2333, %v2331
        %v3054 = vpack.c.b16 %v2336, %v2334
        %v3055 = vpack.c.b16 %v2337, %v2335
        %v3056 = vpack.c.b16 %v2340, %v2338
        %v3057 = vpack.c.b16 %v2341, %v2339
        %v3058 = vpack.c.b16 %v2344, %v2342
        %v3059 = vpack.c.b16 %v2345, %v2343
        %v3060 = vpack.c.b16 %v2348, %v2346
        %v3061 = vpack.c.b16 %v2349, %v2347
        %v3062 = vpack.c.b16 %v2352, %v2350
        %v3063 = vpack.c.b16 %v2353, %v2351
        %v3064 = vpack.c.b16 %v2356, %v2354
        %v3065 = vpack.c.b16 %v2357, %v2355
        %v3066 = vpack.c.b16 %v2360, %v2358
        %v3067 = vpack.c.b16 %v2361, %v2359
        %v3068 = vpack.c.b16 %v2364, %v2362
        %v3069 = vpack.c.b16 %v2365, %v2363
        %v3070 = vpack.c.b16 %v2368, %v2366
        %v3071 = vpack.c.b16 %v2369, %v2367
        %v3072 = vpack.c.b16 %v2372, %v2370
        %v3073 = vpack.c.b16 %v2373, %v2371
        %v3074 = vpack.c.b16 %v2376, %v2374
        %v3075 = vpack.c.b16 %v2377, %v2375
        %v3076 = vpack.c.b16 %v2380, %v2378
        %v3077 = vpack.c.b16 %v2381, %v2379
        %v3078 = vpack.c.b16 %v2384, %v2382
        %v3079 = vpack.c.b16 %v2385, %v2383
        %v3080 = vpack.c.b16 %v2388, %v2386
        %v3081 = vpack.c.b16 %v2389, %v2387
        %v3082 = vpack.c.b16 %v2392, %v2390
        %v3083 = vpack.c.b16 %v2393, %v2391
        %v3084 = vpack.c.b16 %v2396, %v2394
        %v3085 = vpack.c.b16 %v2397, %v2395
        %v3086 = vpack.c.b16 %v2400, %v2398
        %v3087 = vpack.c.b16 %v2401, %v2399
        %v3088 = vpack.c.b16 %v2404, %v2402
        %v3089 = vpack.c.b16 %v2405, %v2403
        %v3090 = vpack.c.b16 %v2408, %v2406
        %v3091 = vpack.c.b16 %v2409, %v2407
        %v3092 = vpack.c.b16 %v2412, %v2410
        %v3093 = vpack.c.b16 %v2413, %v2411
        %v3094 = vpack.c.b16 %v2416, %v2414
        %v3095 = vpack.c.b16 %v2417, %v2415
        %v3096 = vpack.c.b16 %v2420, %v2418
        %v3097 = vpack.c.b16 %v2421, %v2419
        %v3098 = vpack.c.b16 %v2424, %v2422
        %v3099 = vpack.c.b16 %v2425, %v2423
        %v3100 = vpack.c.b16 %v2428, %v2426
        %v3101 = vpack.c.b16 %v2429, %v2427
        %v3102 = vpack.c.b16 %v2432, %v2430
        %v3103 = vpack.c.b16 %v2433, %v2431
        %v3104 = vpack.c.b16 %v2436, %v2434
        %v3105 = vpack.c.b16 %v2437, %v2435
        %v3106 = vpack.c.b16 %v2440, %v2438
        %v3107 = vpack.c.b16 %v2441, %v2439
        %v3108 = vpack.c.b16 %v2444, %v2442
        %v3109 = vpack.c.b16 %v2445, %v2443
        %v3110 = vpack.c.b16 %v2448, %v2446
        %v3111 = vpack.c.b16 %v2449, %v2447
        %v3112 = vpack.c.b16 %v2452, %v2450
        %v3113 = vpack.c.b16 %v2453, %v2451
        %v3114 = vpack.c.b16 %v2456, %v2454
        %v3115 = vpack.c.b16 %v2457, %v2455
        %v3116 = vpack.c.b16 %v2460, %v2458
        %v3117 = vpack.c.b16 %v2461, %v2459
        %v3118 = vpack.c.b16 %v2464, %v2462
        %v3119 = vpack.c.b16 %v2465, %v2463
        %v3120 = vpack.c.b16 %v2468, %v2466
        %v3121 = vpack.c.b16 %v2469, %v2467
        %v3122 = vpack.c.b16 %v2472, %v2470
        %v3123 = vpack.c.b16 %v2473, %v2471
        %v3124 = vpack.c.b16 %v2476, %v2474
        %v3125 = vpack.c.b16 %v2477, %v2475
        %v3126 = vpack.c.b16 %v2480, %v2478
        %v3127 = vpack.c.b16 %v2481, %v2479
        %v3128 = vpack.c.b16 %v2484, %v2482
        %v3129 = vpack.c.b16 %v2485, %v2483
        %v3130 = vpack.c.b16 %v2488, %v2486
        %v3131 = vpack.c.b16 %v2489, %v2487
        %v3132 = vpack.c.b16 %v2492, %v2490
        %v3133 = vpack.c.b16 %v2493, %v2491
        %v3134 = vpack.c.b16 %v2496, %v2494
        %v3135 = vpack.c.b16 %v2497, %v2495
        %v3136 = vpack.c.b16 %v2500, %v2498
        %v3137 = vpack.c.b16 %v2501, %v2499
        %v3138 = vpack.c.b16 %v2504, %v2502
        %v3139 = vpack.c.b16 %v2505, %v2503
        %v3140 = vpack.c.b16 %v2508, %v2506
        %v3141 = vpack.c.b16 %v2509, %v2507
        %v3142 = vpack.c.b16 %v2512, %v2510
        %v3143 = vpack.c.b16 %v2513, %v2511
        %v3144 = vpack.c.b16 %v2516, %v2514
        %v3145 = vpack.c.b16 %v2517, %v2515
        %v3146 = vpack.c.b16 %v2520, %v2518
        %v3147 = vpack.c.b16 %v2521, %v2519
        %v3148 = vpack.c.b16 %v2524, %v2522
        %v3149 = vpack.c.b16 %v2525, %v2523
        %v3150 = vpack.c.b16 %v2528, %v2526
        %v3151 = vpack.c.b16 %v2529, %v2527
        %v3152 = vpack.c.b16 %v2532, %v2530
        %v3153 = vpack.c.b16 %v2533, %v2531
        %v3154 = vpack.c.b16 %v2536, %v2534
        %v3155 = vpack.c.b16 %v2537, %v2535
        %v3156 = vpack.c.b16 %v2540, %v2538
        %v3157 = vpack.c.b16 %v2541, %v2539
        %v3158 = vpack.c.b16 %v2544, %v2542
        %v3159 = vpack.c.b16 %v2545, %v2543
        %v3160 = vpack.c.b16 %v2548, %v2546
        %v3161 = vpack.c.b16 %v2549, %v2547
        %v3162 = vpack.c.b16 %v2552, %v2550
        %v3163 = vpack.c.b16 %v2553, %v2551
        %v3164 = vpack.c.b16 %v2556, %v2554
        %v3165 = vpack.c.b16 %v2557, %v2555
        %v3166 = vpack.c.b16 %v2560, %v2558
        %v3167 = vpack.c.b16 %v2561, %v2559
        %v3168 = vpack.c.b16 %v2564, %v2562
        %v3169 = vpack.c.b16 %v2565, %v2563
        %v3170 = vpack.c.b16 %v2568, %v2566
        %v3171 = vpack.c.b16 %v2569, %v2567
        %v3172 = vpack.c.b16 %v2572, %v2570
        %v3173 = vpack.c.b16 %v2573, %v2571
        %v3174 = vpack.c.b16 %v2576, %v2574
        %v3175 = vpack.c.b16 %v2577, %v2575
        %v3176 = vpack.c.b16 %v2580, %v2578
        %v3177 = vpack.c.b16 %v2581, %v2579
        %v3178 = vpack.c.b16 %v2584, %v2582
        %v3179 = vpack.c.b16 %v2585, %v2583
        %v3180 = vpack.c.b16 %v2588, %v2586
        %v3181 = vpack.c.b16 %v2589, %v2587
        %v3182 = vpack.c.b16 %v2592, %v2590
        %v3183 = vpack.c.b16 %v2593, %v2591
        %v3184 = vpack.c.b16 %v2596, %v2594
        %v3185 = vpack.c.b16 %v2597, %v2595
        %v3186 = vpack.c.b16 %v2600, %v2598
        %v3187 = vpack.c.b16 %v2601, %v2599
        %v3188 = vpack.c.b16 %v2604, %v2602
        %v3189 = vpack.c.b16 %v2605, %v2603
        %v3190 = vpack.c.b16 %v2608, %v2606
        %v3191 = vpack.c.b16 %v2609, %v2607
        %v3192 = vpack.c.b16 %v2612, %v2610
        %v3193 = vpack.c.b16 %v2613, %v2611
        %v3194 = vpack.c.b16 %v2616, %v2614
        %v3195 = vpack.c.b16 %v2617, %v2615
        %v3196 = vpack.c.b16 %v2620, %v2618
        %v3197 = vpack.c.b16 %v2621, %v2619
        %v3198 = vpack.c.b16 %v2624, %v2622
        %v3199 = vpack.c.b16 %v2625, %v2623
        %v3200 = vpack.c.b16 %v2628, %v2626
        %v3201 = vpack.c.b16 %v2629, %v2627
        %v3202 = vpack.c.b16 %v2632, %v2630
        %v3203 = vpack.c.b16 %v2633, %v2631
        %v3204 = vpack.c.b16 %v2636, %v2634
        %v3205 = vpack.c.b16 %v2637, %v2635
        %v3206 = vpack.c.b16 %v2640, %v2638
        %v3207 = vpack.c.b16 %v2641, %v2639
        %v3208 = vpack.c.b16 %v2644, %v2642
        %v3209 = vpack.c.b16 %v2645, %v2643
        %v3210 = vpack.c.b16 %v2648, %v2646
        %v3211 = vpack.c.b16 %v2649, %v2647
        %v3212 = vpack.c.b16 %v2652, %v2650
        %v3213 = vpack.c.b16 %v2653, %v2651
        %v3214 = vpack.c.b16 %v2656, %v2654
        %v3215 = vpack.c.b16 %v2657, %v2655
        %v3216 = vpack.c.b16 %v2660, %v2658
        %v3217 = vpack.c.b16 %v2661, %v2659
        %v3218 = vpack.c.b16 %v2664, %v2662
        %v3219 = vpack.c.b16 %v2665, %v2663
        %v3220 = vpack.c.b16 %v2668, %v2666
        %v3221 = vpack.c.b16 %v2669, %v2667
        %v3222 = vpack.c.b16 %v2672, %v2670
        %v3223 = vpack.c.b16 %v2673, %v2671
        %v3224 = vpack.c.b16 %v2676, %v2674
        %v3225 = vpack.c.b16 %v2677, %v2675
        %v3226 = vpack.c.b16 %v2680, %v2678
        %v3227 = vpack.c.b16 %v2681, %v2679
        %v3228 = vpack.c.b16 %v2684, %v2682
        %v3229 = vpack.c.b16 %v2685, %v2683
        %v3230 = vpack.c.b16 %v2688, %v2686
        %v3231 = vpack.c.b16 %v2689, %v2687
        %v3232 = vpack.c.b16 %v2692, %v2690
        %v3233 = vpack.c.b16 %v2693, %v2691
        %v3234 = vpack.c.b16 %v2696, %v2694
        %v3235 = vpack.c.b16 %v2697, %v2695
        %v3236 = vpack.c.b16 %v2700, %v2698
        %v3237 = vpack.c.b16 %v2701, %v2699
        %v3238 = vpack.c.b16 %v2704, %v2702
        %v3239 = vpack.c.b16 %v2705, %v2703
        %v3240 = vpack.c.b16 %v2708, %v2706
        %v3241 = vpack.c.b16 %v2709, %v2707
        %v3242 = vpack.c.b16 %v2712, %v2710
        %v3243 = vpack.c.b16 %v2713, %v2711
        %v3244 = vpack.c.b16 %v2716, %v2714
        %v3245 = vpack.c.b16 %v2717, %v2715
        %v3246 = vpack.c.b16 %v2720, %v2718
        %v3247 = vpack.c.b16 %v2721, %v2719
        %v3248 = vpack.c.b16 %v2724, %v2722
        %v3249 = vpack.c.b16 %v2725, %v2723
        %v3250 = vpack.c.b16 %v2728, %v2726
        %v3251 = vpack.c.b16 %v2729, %v2727
        %v3252 = vpack.c.b16 %v2732, %v2730
        %v3253 = vpack.c.b16 %v2733, %v2731
        %v3254 = vpack.c.b16 %v2736, %v2734
        %v3255 = vpack.c.b16 %v2737, %v2735
        %v3256 = vpack.c.b16 %v2740, %v2738
        %v3257 = vpack.c.b16 %v2741, %v2739
        %v3258 = vpack.c.b16 %v2744, %v2742
        %v3259 = vpack.c.b16 %v2745, %v2743
        %v3260 = vpack.c.b16 %v2748, %v2746
        %v3261 = vpack.c.b16 %v2749, %v2747
        %v3262 = vpack.c.b16 %v2752, %v2750
        %v3263 = vpack.c.b16 %v2753, %v2751
        %v3264 = vpack.c.b16 %v2756, %v2754
        %v3265 = vpack.c.b16 %v2757, %v2755
        %v3266 = vpack.c.b16 %v2760, %v2758
        %v3267 = vpack.c.b16 %v2761, %v2759
        %v3268 = vpack.c.b16 %v2764, %v2762
        %v3269 = vpack.c.b16 %v2765, %v2763
        %v3270 = vpack.c.b16 %v2768, %v2766
        %v3271 = vpack.c.b16 %v2769, %v2767
        %v3272 = vpack.c.b16 %v2772, %v2770
        %v3273 = vpack.c.b16 %v2773, %v2771
        %v3274 = vpack.c.b16 %v2776, %v2774
        %v3275 = vpack.c.b16 %v2777, %v2775
        %v3276 = vpack.c.b16 %v2780, %v2778
        %v3277 = vpack.c.b16 %v2781, %v2779
        %v3278 = vpack.c.b16 %v2784, %v2782
        %v3279 = vpack.c.b16 %v2785, %v2783
        %v3280 = vpack.c.b16 %v2788, %v2786
        %v3281 = vpack.c.b16 %v2789, %v2787
        %v3282 = vpack.c.b16 %v2792, %v2790
        %v3283 = vpack.c.b16 %v2793, %v2791
        %v3284 = vpack.c.b16 %v2796, %v2794
        %v3285 = vpack.c.b16 %v2797, %v2795
        %v3286 = vpack.c.b16 %v2800, %v2798
        %v3287 = vpack.c.b16 %v2801, %v2799
        %v3288 = vpack.c.b16 %v2804, %v2802
        %v3289 = vpack.c.b16 %v2805, %v2803
        %v3290 = vpack.c.b16 %v2808, %v2806
        %v3291 = vpack.c.b16 %v2809, %v2807
        %v3292 = vpack.c.b16 %v2812, %v2810
        %v3293 = vpack.c.b16 %v2813, %v2811
        %v3294 = vpack.c.b16 %v2816, %v2814
        %v3295 = vpack.c.b16 %v2817, %v2815
        %v3296 = vpack.c.b16 %v2820, %v2818
        %v3297 = vpack.c.b16 %v2821, %v2819
        %v3298 = vpack.c.b16 %v2824, %v2822
        %v3299 = vpack.c.b16 %v2825, %v2823
        %v3300 = vpack.c.b16 %v2828, %v2826
        %v3301 = vpack.c.b16 %v2829, %v2827
        %v3302 = vpack.c.b16 %v2832, %v2830
        %v3303 = vpack.c.b16 %v2833, %v2831
        %v3304 = vpack.c.b16 %v2836, %v2834
        %v3305 = vpack.c.b16 %v2837, %v2835
        %v3306 = vpack.c.b16 %v2840, %v2838
        %v3307 = vpack.c.b16 %v2841, %v2839
        %v3308 = vpack.c.b16 %v2844, %v2842
        %v3309 = vpack.c.b16 %v2845, %v2843
        %v3310 = vpack.c.b16 %v2848, %v2846
        %v3311 = vpack.c.b16 %v2849, %v2847
        %v3312 = vpack.c.b16 %v2852, %v2850
        %v3313 = vpack.c.b16 %v2853, %v2851
        %v3314 = vpack.c.b16 %v2856, %v2854
        %v3315 = vpack.c.b16 %v2857, %v2855
        %v3316 = vpack.c.b16 %v2860, %v2858
        %v3317 = vpack.c.b16 %v2861, %v2859
        %v3318 = vpack.c.b16 %v2864, %v2862
        %v3319 = vpack.c.b16 %v2865, %v2863
        %v3320 = vpack.c.b16 %v2868, %v2866
        %v3321 = vpack.c.b16 %v2869, %v2867
        %v3322 = vpack.c.b16 %v2872, %v2870
        %v3323 = vpack.c.b16 %v2873, %v2871
        %v3324 = vpack.c.b16 %v2876, %v2874
        %v3325 = vpack.c.b16 %v2877, %v2875
        %v3326 = vpack.c.b16 %v2880, %v2878
        %v3327 = vpack.c.b16 %v2881, %v2879
        %v3328 = vpack.c.b16 %v2884, %v2882
        %v3329 = vpack.c.b16 %v2885, %v2883
        %v3330 = vpack.c.b16 %v2888, %v2886
        %v3331 = vpack.c.b16 %v2889, %v2887
        %v3332 = vpack.c.b16 %v2892, %v2890
        %v3333 = vpack.c.b16 %v2893, %v2891
        %v3334 = vpack.c.b16 %v2896, %v2894
        %v3335 = vpack.c.b16 %v2897, %v2895
        %v3336 = vpack.c.b16 %v2900, %v2898
        %v3337 = vpack.c.b16 %v2901, %v2899
        %v3338 = vpack.c.b16 %v2904, %v2902
        %v3339 = vpack.c.b16 %v2905, %v2903
        %v3340 = vpack.c.b16 %v2908, %v2906
        %v3341 = vpack.c.b16 %v2909, %v2907
        %v3342 = vpack.c.b16 %v2912, %v2910
        %v3343 = vpack.c.b16 %v2913, %v2911
        %v3344 = vpack.c.b16 %v2916, %v2914
        %v3345 = vpack.c.b16 %v2917, %v2915
        %v3346 = vpack.c.b16 %v2920, %v2918
        %v3347 = vpack.c.b16 %v2921, %v2919
        %v3348 = vpack.c.b16 %v2924, %v2922
        %v3349 = vpack.c.b16 %v2925, %v2923
        %v3350 = vpack.c.b16 %v2928, %v2926
        %v3351 = vpack.c.b16 %v2929, %v2927
        %v3352 = vpack.c.b16 %v2932, %v2930
        %v3353 = vpack.c.b16 %v2933, %v2931
        %v3354 = vpack.c.b16 %v2936, %v2934
        %v3355 = vpack.c.b16 %v2937, %v2935
        %v3356 = vpack.c.b16 %v2940, %v2938
        %v3357 = vpack.c.b16 %v2941, %v2939
        %v3358 = vpack.c.b16 %v2944, %v2942
        %v3359 = vpack.c.b16 %v2945, %v2943
        %v3360 = vpack.c.b16 %v2948, %v2946
        %v3361 = vpack.c.b16 %v2949, %v2947
        %v3362 = vpack.c.b16 %v2952, %v2950
        %v3363 = vpack.c.b16 %v2953, %v2951
        %v3364 = vpack.c.b16 %v2956, %v2954
        %v3365 = vpack.c.b16 %v2957, %v2955
        %v3366 = vpack.c.b16 %v2960, %v2958
        %v3367 = vpack.c.b16 %v2961, %v2959
        %v3368 = vpack.c.b16 %v2964, %v2962
        %v3369 = vpack.c.b16 %v2965, %v2963
        %v3370 = vpack.c.b16 %v2968, %v2966
        %v3371 = vpack.c.b16 %v2969, %v2967
        %v3372 = vpack.c.b16 %v2972, %v2970
        %v3373 = vpack.c.b16 %v2973, %v2971
        %v3374 = vpack.c.b16 %v2976, %v2974
        %v3375 = vpack.c.b16 %v2977, %v2975
        %v3376 = vpack.c.b16 %v2980, %v2978
        %v3377 = vpack.c.b16 %v2981, %v2979
        %v3378 = vpack.c.b16 %v2984, %v2982
        %v3379 = vpack.c.b16 %v2985, %v2983
        %v3380 = vpack.c.b16 %v2988, %v2986
        %v3381 = vpack.c.b16 %v2989, %v2987
        %v3382 = vpack.c.b16 %v2992, %v2990
        %v3383 = vpack.c.b16 %v2993, %v2991
        %v3384 = vpack.c.b16 %v2996, %v2994
        %v3385 = vpack.c.b16 %v2997, %v2995
        %v3386 = vpack.c.b16 %v3000, %v2998
        %v3387 = vpack.c.b16 %v3001, %v2999
        %v3388 = vpack.c.b16 %v3004, %v3002
        %v3389 = vpack.c.b16 %v3005, %v3003
        %3774 = vmatprep.subr.bf16.mxu0 %v3007
        %3775 = vmatpush1.bf16.msra.mxu0 %v3006
        %3776 = vmatprep.subr.bf16.mxu0 %v3009
        %3777 = vmatpush1.bf16.msra.mxu0 %v3008
        %3778 = vmatprep.subr.bf16.mxu0 %v3011
        %3779 = vmatpush1.bf16.msra.mxu0 %v3010
        %3780 = vmatprep.subr.bf16.mxu0 %v3013
        %3781 = vmatpush1.bf16.msra.mxu0 %v3012
        %3782 = vmatprep.subr.bf16.mxu0 %v3015
        %3783 = vmatpush1.bf16.msra.mxu0 %v3014
        %3784 = vmatprep.subr.bf16.mxu0 %v3017
        %3785 = vmatpush1.bf16.msra.mxu0 %v3016
        %3786 = vmatprep.subr.bf16.mxu0 %v3019
        %3787 = vmatpush1.bf16.msra.mxu0 %v3018
        %3788 = vmatprep.subr.bf16.mxu0 %v3021
        %3789 = vmatpush1.bf16.msra.mxu0 %v3020
        %3790 = vmatprep.subr.bf16.mxu0 %v3023
        %3791 = vmatpush1.bf16.msra.mxu0 %v3022
        %3792 = vmatprep.subr.bf16.mxu0 %v3025
        %3793 = vmatpush1.bf16.msra.mxu0 %v3024
        %3794 = vmatprep.subr.bf16.mxu0 %v3027
        %3795 = vmatpush1.bf16.msra.mxu0 %v3026
        %3796 = vmatprep.subr.bf16.mxu0 %v3029
        %3797 = vmatpush1.bf16.msra.mxu0 %v3028
        %3798 = vmatprep.subr.bf16.mxu0 %v3031
        %3799 = vmatpush1.bf16.msra.mxu0 %v3030
        %3800 = vmatprep.subr.bf16.mxu0 %v3033
        %3801 = vmatpush1.bf16.msra.mxu0 %v3032
        %3802 = vmatprep.subr.bf16.mxu0 %v3035
        %3803 = vmatpush1.bf16.msra.mxu0 %v3034
        %3804 = vmatprep.subr.bf16.mxu0 %v3037
        %3805 = vmatpush1.bf16.msra.mxu0 %v3036
        %3806 = vmatprep.mubr.bf16.mxu0 %v1447
        %3807 = vmatmul.mubr.bf16.gmra.mrb[0].mxu0 %v1446
        %v3808 = vpop.f32.mrb[0].mxu0
        %v3809 = vadd.f32 0.0, %v3808
        %v3810 = vpop.f32.mrb[0].mxu0
        %v3811 = vadd.f32 0.0, %v3810
        %v3812 = vpop.f32.mrb[0].mxu0
        %v3813 = vpop.f32.mrb[0].mxu0
        %3814 = vdwg.mxu0
        %3815 = vmatprep.subr.bf16.mxu0 %v3039
        %3816 = vmatpush1.bf16.msra.mxu0 %v3038
        %3817 = vmatprep.subr.bf16.mxu0 %v3041
        %3818 = vmatpush1.bf16.msra.mxu0 %v3040
        %3819 = vmatprep.subr.bf16.mxu0 %v3043
        %3820 = vmatpush1.bf16.msra.mxu0 %v3042
        %3821 = vmatprep.subr.bf16.mxu0 %v3045
        %3822 = vmatpush1.bf16.msra.mxu0 %v3044
        %3823 = vmatprep.subr.bf16.mxu0 %v3047
        %3824 = vmatpush1.bf16.msra.mxu0 %v3046
        %3825 = vmatprep.subr.bf16.mxu0 %v3049
        %3826 = vmatpush1.bf16.msra.mxu0 %v3048
        %3827 = vmatprep.subr.bf16.mxu0 %v3051
        %3828 = vmatpush1.bf16.msra.mxu0 %v3050
        %3829 = vmatprep.subr.bf16.mxu0 %v3053
        %3830 = vmatpush1.bf16.msra.mxu0 %v3052
        %3831 = vmatprep.subr.bf16.mxu0 %v3055
        %3832 = vmatpush1.bf16.msra.mxu0 %v3054
        %3833 = vmatprep.subr.bf16.mxu0 %v3057
        %3834 = vmatpush1.bf16.msra.mxu0 %v3056
        %3835 = vmatprep.subr.bf16.mxu0 %v3059
        %3836 = vmatpush1.bf16.msra.mxu0 %v3058
        %3837 = vmatprep.subr.bf16.mxu0 %v3061
        %3838 = vmatpush1.bf16.msra.mxu0 %v3060
        %3839 = vmatprep.subr.bf16.mxu0 %v3063
        %3840 = vmatpush1.bf16.msra.mxu0 %v3062
        %3841 = vmatprep.subr.bf16.mxu0 %v3065
        %3842 = vmatpush1.bf16.msra.mxu0 %v3064
        %3843 = vmatprep.subr.bf16.mxu0 %v3067
        %3844 = vmatpush1.bf16.msra.mxu0 %v3066
        %3845 = vmatprep.subr.bf16.mxu0 %v3069
        %3846 = vmatpush1.bf16.msra.mxu0 %v3068
        %3847 = vmatprep.mubr.bf16.mxu0 %v1449
        %3848 = vmatmul.mubr.bf16.gmra.mrb[0].mxu0 %v1448
        %v3849 = vpop.f32.mrb[0].mxu0
        %v3850 = vadd.f32 %v3809, %v3849
        %v3851 = vpop.f32.mrb[0].mxu0
        %v3852 = vadd.f32 %v3811, %v3851
        %v3853 = vpop.f32.mrb[0].mxu0
        %v3854 = vpop.f32.mrb[0].mxu0
        %3855 = vdwg.mxu0
        %3856 = vmatprep.subr.bf16.mxu0 %v3071
        %3857 = vmatpush1.bf16.msra.mxu0 %v3070
        %3858 = vmatprep.subr.bf16.mxu0 %v3073
        %3859 = vmatpush1.bf16.msra.mxu0 %v3072
        %3860 = vmatprep.subr.bf16.mxu0 %v3075
        %3861 = vmatpush1.bf16.msra.mxu0 %v3074
        %3862 = vmatprep.subr.bf16.mxu0 %v3077
        %3863 = vmatpush1.bf16.msra.mxu0 %v3076
        %3864 = vmatprep.subr.bf16.mxu0 %v3079
        %3865 = vmatpush1.bf16.msra.mxu0 %v3078
        %3866 = vmatprep.subr.bf16.mxu0 %v3081
        %3867 = vmatpush1.bf16.msra.mxu0 %v3080
        %3868 = vmatprep.subr.bf16.mxu0 %v3083
        %3869 = vmatpush1.bf16.msra.mxu0 %v3082
        %3870 = vmatprep.subr.bf16.mxu0 %v3085
        %3871 = vmatpush1.bf16.msra.mxu0 %v3084
        %3872 = vmatprep.subr.bf16.mxu0 %v3087
        %3873 = vmatpush1.bf16.msra.mxu0 %v3086
        %3874 = vmatprep.subr.bf16.mxu0 %v3089
        %3875 = vmatpush1.bf16.msra.mxu0 %v3088
        %3876 = vmatprep.subr.bf16.mxu0 %v3091
        %3877 = vmatpush1.bf16.msra.mxu0 %v3090
        %3878 = vmatprep.subr.bf16.mxu0 %v3093
        %3879 = vmatpush1.bf16.msra.mxu0 %v3092
        %3880 = vmatprep.subr.bf16.mxu0 %v3095
        %3881 = vmatpush1.bf16.msra.mxu0 %v3094
        %3882 = vmatprep.subr.bf16.mxu0 %v3097
        %3883 = vmatpush1.bf16.msra.mxu0 %v3096
        %3884 = vmatprep.subr.bf16.mxu0 %v3099
        %3885 = vmatpush1.bf16.msra.mxu0 %v3098
        %3886 = vmatprep.subr.bf16.mxu0 %v3101
        %3887 = vmatpush1.bf16.msra.mxu0 %v3100
        %3888 = vmatprep.mubr.bf16.mxu0 %v1451
        %3889 = vmatmul.mubr.bf16.gmra.mrb[0].mxu0 %v1450
        %v3890 = vpop.f32.mrb[0].mxu0
        %v3891 = vadd.f32 %v3850, %v3890
        %v3892 = vpop.f32.mrb[0].mxu0
        %v3893 = vadd.f32 %v3852, %v3892
        %v3894 = vpop.f32.mrb[0].mxu0
        %v3895 = vpop.f32.mrb[0].mxu0
        %3896 = vdwg.mxu0
        %3897 = vmatprep.subr.bf16.mxu0 %v3103
        %3898 = vmatpush1.bf16.msra.mxu0 %v3102
        %3899 = vmatprep.subr.bf16.mxu0 %v3105
        %3900 = vmatpush1.bf16.msra.mxu0 %v3104
        %3901 = vmatprep.subr.bf16.mxu0 %v3107
        %3902 = vmatpush1.bf16.msra.mxu0 %v3106
        %3903 = vmatprep.subr.bf16.mxu0 %v3109
        %3904 = vmatpush1.bf16.msra.mxu0 %v3108
        %3905 = vmatprep.subr.bf16.mxu0 %v3111
        %3906 = vmatpush1.bf16.msra.mxu0 %v3110
        %3907 = vmatprep.subr.bf16.mxu0 %v3113
        %3908 = vmatpush1.bf16.msra.mxu0 %v3112
        %3909 = vmatprep.subr.bf16.mxu0 %v3115
        %3910 = vmatpush1.bf16.msra.mxu0 %v3114
        %3911 = vmatprep.subr.bf16.mxu0 %v3117
        %3912 = vmatpush1.bf16.msra.mxu0 %v3116
        %3913 = vmatprep.subr.bf16.mxu0 %v3119
        %3914 = vmatpush1.bf16.msra.mxu0 %v3118
        %3915 = vmatprep.subr.bf16.mxu0 %v3121
        %3916 = vmatpush1.bf16.msra.mxu0 %v3120
        %3917 = vmatprep.subr.bf16.mxu0 %v3123
        %3918 = vmatpush1.bf16.msra.mxu0 %v3122
        %3919 = vmatprep.subr.bf16.mxu0 %v3125
        %3920 = vmatpush1.bf16.msra.mxu0 %v3124
        %3921 = vmatprep.subr.bf16.mxu0 %v3127
        %3922 = vmatpush1.bf16.msra.mxu0 %v3126
        %3923 = vmatprep.subr.bf16.mxu0 %v3129
        %3924 = vmatpush1.bf16.msra.mxu0 %v3128
        %3925 = vmatprep.subr.bf16.mxu0 %v3131
        %3926 = vmatpush1.bf16.msra.mxu0 %v3130
        %3927 = vmatprep.subr.bf16.mxu0 %v3133
        %3928 = vmatpush1.bf16.msra.mxu0 %v3132
        %3929 = vmatprep.mubr.bf16.mxu0 %v1453
        %3930 = vmatmul.mubr.bf16.gmra.mrb[0].mxu0 %v1452
        %v3931 = vpop.f32.mrb[0].mxu0
        %v3932 = vadd.f32 %v3891, %v3931
        %v3933 = vpop.f32.mrb[0].mxu0
        %v3934 = vadd.f32 %v3893, %v3933
        %v3935 = vpop.f32.mrb[0].mxu0
        %v3936 = vpop.f32.mrb[0].mxu0
        %3937 = vdwg.mxu0
        %3938 = vmatprep.subr.bf16.mxu0 %v3135
        %3939 = vmatpush1.bf16.msra.mxu0 %v3134
        %3940 = vmatprep.subr.bf16.mxu0 %v3137
        %3941 = vmatpush1.bf16.msra.mxu0 %v3136
        %3942 = vmatprep.subr.bf16.mxu0 %v3139
        %3943 = vmatpush1.bf16.msra.mxu0 %v3138
        %3944 = vmatprep.subr.bf16.mxu0 %v3141
        %3945 = vmatpush1.bf16.msra.mxu0 %v3140
        %3946 = vmatprep.subr.bf16.mxu0 %v3143
        %3947 = vmatpush1.bf16.msra.mxu0 %v3142
        %3948 = vmatprep.subr.bf16.mxu0 %v3145
        %3949 = vmatpush1.bf16.msra.mxu0 %v3144
        %3950 = vmatprep.subr.bf16.mxu0 %v3147
        %3951 = vmatpush1.bf16.msra.mxu0 %v3146
        %3952 = vmatprep.subr.bf16.mxu0 %v3149
        %3953 = vmatpush1.bf16.msra.mxu0 %v3148
        %3954 = vmatprep.subr.bf16.mxu0 %v3151
        %3955 = vmatpush1.bf16.msra.mxu0 %v3150
        %3956 = vmatprep.subr.bf16.mxu0 %v3153
        %3957 = vmatpush1.bf16.msra.mxu0 %v3152
        %3958 = vmatprep.subr.bf16.mxu0 %v3155
        %3959 = vmatpush1.bf16.msra.mxu0 %v3154
        %3960 = vmatprep.subr.bf16.mxu0 %v3157
        %3961 = vmatpush1.bf16.msra.mxu0 %v3156
        %3962 = vmatprep.subr.bf16.mxu0 %v3159
        %3963 = vmatpush1.bf16.msra.mxu0 %v3158
        %3964 = vmatprep.subr.bf16.mxu0 %v3161
        %3965 = vmatpush1.bf16.msra.mxu0 %v3160
        %3966 = vmatprep.subr.bf16.mxu0 %v3163
        %3967 = vmatpush1.bf16.msra.mxu0 %v3162
        %3968 = vmatprep.subr.bf16.mxu0 %v3165
        %3969 = vmatpush1.bf16.msra.mxu0 %v3164
        %3970 = vmatprep.mubr.bf16.mxu0 %v1455
        %3971 = vmatmul.mubr.bf16.gmra.mrb[0].mxu0 %v1454
        %v3972 = vpop.f32.mrb[0].mxu0
        %v3973 = vadd.f32 %v3932, %v3972
        %v3974 = vpop.f32.mrb[0].mxu0
        %v3975 = vadd.f32 %v3934, %v3974
        %v3976 = vpop.f32.mrb[0].mxu0
        %v3977 = vpop.f32.mrb[0].mxu0
        %3978 = vdwg.mxu0
        %3979 = vmatprep.subr.bf16.mxu0 %v3167
        %3980 = vmatpush1.bf16.msra.mxu0 %v3166
        %3981 = vmatprep.subr.bf16.mxu0 %v3169
        %3982 = vmatpush1.bf16.msra.mxu0 %v3168
        %3983 = vmatprep.subr.bf16.mxu0 %v3171
        %3984 = vmatpush1.bf16.msra.mxu0 %v3170
        %3985 = vmatprep.subr.bf16.mxu0 %v3173
        %3986 = vmatpush1.bf16.msra.mxu0 %v3172
        %3987 = vmatprep.subr.bf16.mxu0 %v3175
        %3988 = vmatpush1.bf16.msra.mxu0 %v3174
        %3989 = vmatprep.subr.bf16.mxu0 %v3177
        %3990 = vmatpush1.bf16.msra.mxu0 %v3176
        %3991 = vmatprep.subr.bf16.mxu0 %v3179
        %3992 = vmatpush1.bf16.msra.mxu0 %v3178
        %3993 = vmatprep.subr.bf16.mxu0 %v3181
        %3994 = vmatpush1.bf16.msra.mxu0 %v3180
        %3995 = vmatprep.subr.bf16.mxu0 %v3183
        %3996 = vmatpush1.bf16.msra.mxu0 %v3182
        %3997 = vmatprep.subr.bf16.mxu0 %v3185
        %3998 = vmatpush1.bf16.msra.mxu0 %v3184
        %3999 = vmatprep.subr.bf16.mxu0 %v3187
        %4000 = vmatpush1.bf16.msra.mxu0 %v3186
        %4001 = vmatprep.subr.bf16.mxu0 %v3189
        %4002 = vmatpush1.bf16.msra.mxu0 %v3188
        %4003 = vmatprep.subr.bf16.mxu0 %v3191
        %4004 = vmatpush1.bf16.msra.mxu0 %v3190
        %4005 = vmatprep.subr.bf16.mxu0 %v3193
        %4006 = vmatpush1.bf16.msra.mxu0 %v3192
        %4007 = vmatprep.subr.bf16.mxu0 %v3195
        %4008 = vmatpush1.bf16.msra.mxu0 %v3194
        %4009 = vmatprep.subr.bf16.mxu0 %v3197
        %4010 = vmatpush1.bf16.msra.mxu0 %v3196
        %4011 = vmatprep.mubr.bf16.mxu0 %v1457
        %4012 = vmatmul.mubr.bf16.gmra.mrb[0].mxu0 %v1456
        %v4013 = vpop.f32.mrb[0].mxu0
        %v4014 = vadd.f32 %v3973, %v4013
        %v4015 = vpop.f32.mrb[0].mxu0
        %v4016 = vadd.f32 %v3975, %v4015
        %v4017 = vpop.f32.mrb[0].mxu0
        %v4018 = vpop.f32.mrb[0].mxu0
        %4019 = vdwg.mxu0
        %4020 = vmatprep.subr.bf16.mxu0 %v3199
        %4021 = vmatpush1.bf16.msra.mxu0 %v3198
        %4022 = vmatprep.subr.bf16.mxu0 %v3201
        %4023 = vmatpush1.bf16.msra.mxu0 %v3200
        %4024 = vmatprep.subr.bf16.mxu0 %v3203
        %4025 = vmatpush1.bf16.msra.mxu0 %v3202
        %4026 = vmatprep.subr.bf16.mxu0 %v3205
        %4027 = vmatpush1.bf16.msra.mxu0 %v3204
        %4028 = vmatprep.subr.bf16.mxu0 %v3207
        %4029 = vmatpush1.bf16.msra.mxu0 %v3206
        %4030 = vmatprep.subr.bf16.mxu0 %v3209
        %4031 = vmatpush1.bf16.msra.mxu0 %v3208
        %4032 = vmatprep.subr.bf16.mxu0 %v3211
        %4033 = vmatpush1.bf16.msra.mxu0 %v3210
        %4034 = vmatprep.subr.bf16.mxu0 %v3213
        %4035 = vmatpush1.bf16.msra.mxu0 %v3212
        %4036 = vmatprep.subr.bf16.mxu0 %v3215
        %4037 = vmatpush1.bf16.msra.mxu0 %v3214
        %4038 = vmatprep.subr.bf16.mxu0 %v3217
        %4039 = vmatpush1.bf16.msra.mxu0 %v3216
        %4040 = vmatprep.subr.bf16.mxu0 %v3219
        %4041 = vmatpush1.bf16.msra.mxu0 %v3218
        %4042 = vmatprep.subr.bf16.mxu0 %v3221
        %4043 = vmatpush1.bf16.msra.mxu0 %v3220
        %4044 = vmatprep.subr.bf16.mxu0 %v3223
        %4045 = vmatpush1.bf16.msra.mxu0 %v3222
        %4046 = vmatprep.subr.bf16.mxu0 %v3225
        %4047 = vmatpush1.bf16.msra.mxu0 %v3224
        %4048 = vmatprep.subr.bf16.mxu0 %v3227
        %4049 = vmatpush1.bf16.msra.mxu0 %v3226
        %4050 = vmatprep.subr.bf16.mxu0 %v3229
        %4051 = vmatpush1.bf16.msra.mxu0 %v3228
        %4052 = vmatprep.mubr.bf16.mxu0 %v1459
        %4053 = vmatmul.mubr.bf16.gmra.mrb[0].mxu0 %v1458
        %v4054 = vpop.f32.mrb[0].mxu0
        %v4055 = vadd.f32 %v4014, %v4054
        %v4056 = vpop.f32.mrb[0].mxu0
        %v4057 = vadd.f32 %v4016, %v4056
        %v4058 = vpop.f32.mrb[0].mxu0
        %v4059 = vpop.f32.mrb[0].mxu0
        %4060 = vdwg.mxu0
        %4061 = vmatprep.subr.bf16.mxu0 %v3231
        %4062 = vmatpush1.bf16.msra.mxu0 %v3230
        %4063 = vmatprep.subr.bf16.mxu0 %v3233
        %4064 = vmatpush1.bf16.msra.mxu0 %v3232
        %4065 = vmatprep.subr.bf16.mxu0 %v3235
        %4066 = vmatpush1.bf16.msra.mxu0 %v3234
        %4067 = vmatprep.subr.bf16.mxu0 %v3237
        %4068 = vmatpush1.bf16.msra.mxu0 %v3236
        %4069 = vmatprep.subr.bf16.mxu0 %v3239
        %4070 = vmatpush1.bf16.msra.mxu0 %v3238
        %4071 = vmatprep.subr.bf16.mxu0 %v3241
        %4072 = vmatpush1.bf16.msra.mxu0 %v3240
        %4073 = vmatprep.subr.bf16.mxu0 %v3243
        %4074 = vmatpush1.bf16.msra.mxu0 %v3242
        %4075 = vmatprep.subr.bf16.mxu0 %v3245
        %4076 = vmatpush1.bf16.msra.mxu0 %v3244
        %4077 = vmatprep.subr.bf16.mxu0 %v3247
        %4078 = vmatpush1.bf16.msra.mxu0 %v3246
        %4079 = vmatprep.subr.bf16.mxu0 %v3249
        %4080 = vmatpush1.bf16.msra.mxu0 %v3248
        %4081 = vmatprep.subr.bf16.mxu0 %v3251
        %4082 = vmatpush1.bf16.msra.mxu0 %v3250
        %4083 = vmatprep.subr.bf16.mxu0 %v3253
        %4084 = vmatpush1.bf16.msra.mxu0 %v3252
        %4085 = vmatprep.subr.bf16.mxu0 %v3255
        %4086 = vmatpush1.bf16.msra.mxu0 %v3254
        %4087 = vmatprep.subr.bf16.mxu0 %v3257
        %4088 = vmatpush1.bf16.msra.mxu0 %v3256
        %4089 = vmatprep.subr.bf16.mxu0 %v3259
        %4090 = vmatpush1.bf16.msra.mxu0 %v3258
        %4091 = vmatprep.subr.bf16.mxu0 %v3261
        %4092 = vmatpush1.bf16.msra.mxu0 %v3260
        %4093 = vmatprep.mubr.bf16.mxu0 %v1461
        %4094 = vmatmul.mubr.bf16.gmra.mrb[0].mxu0 %v1460
        %v4095 = vpop.f32.mrb[0].mxu0
        %v4096 = vadd.f32 %v4055, %v4095
        %v4097 = vpop.f32.mrb[0].mxu0
        %v4098 = vadd.f32 %v4057, %v4097
        %v4099 = vpop.f32.mrb[0].mxu0
        %v4100 = vpop.f32.mrb[0].mxu0
        %4101 = vdwg.mxu0
        %4102 = vmatprep.subr.bf16.mxu0 %v3263
        %4103 = vmatpush1.bf16.msra.mxu0 %v3262
        %4104 = vmatprep.subr.bf16.mxu0 %v3265
        %4105 = vmatpush1.bf16.msra.mxu0 %v3264
        %4106 = vmatprep.subr.bf16.mxu0 %v3267
        %4107 = vmatpush1.bf16.msra.mxu0 %v3266
        %4108 = vmatprep.subr.bf16.mxu0 %v3269
        %4109 = vmatpush1.bf16.msra.mxu0 %v3268
        %4110 = vmatprep.subr.bf16.mxu0 %v3271
        %4111 = vmatpush1.bf16.msra.mxu0 %v3270
        %4112 = vmatprep.subr.bf16.mxu0 %v3273
        %4113 = vmatpush1.bf16.msra.mxu0 %v3272
        %4114 = vmatprep.subr.bf16.mxu0 %v3275
        %4115 = vmatpush1.bf16.msra.mxu0 %v3274
        %4116 = vmatprep.subr.bf16.mxu0 %v3277
        %4117 = vmatpush1.bf16.msra.mxu0 %v3276
        %4118 = vmatprep.subr.bf16.mxu0 %v3279
        %4119 = vmatpush1.bf16.msra.mxu0 %v3278
        %4120 = vmatprep.subr.bf16.mxu0 %v3281
        %4121 = vmatpush1.bf16.msra.mxu0 %v3280
        %4122 = vmatprep.subr.bf16.mxu0 %v3283
        %4123 = vmatpush1.bf16.msra.mxu0 %v3282
        %4124 = vmatprep.subr.bf16.mxu0 %v3285
        %4125 = vmatpush1.bf16.msra.mxu0 %v3284
        %4126 = vmatprep.subr.bf16.mxu0 %v3287
        %4127 = vmatpush1.bf16.msra.mxu0 %v3286
        %4128 = vmatprep.subr.bf16.mxu0 %v3289
        %4129 = vmatpush1.bf16.msra.mxu0 %v3288
        %4130 = vmatprep.subr.bf16.mxu0 %v3291
        %4131 = vmatpush1.bf16.msra.mxu0 %v3290
        %4132 = vmatprep.subr.bf16.mxu0 %v3293
        %4133 = vmatpush1.bf16.msra.mxu0 %v3292
        %4134 = vmatprep.mubr.bf16.mxu0 %v1463
        %4135 = vmatmul.mubr.bf16.gmra.mrb[0].mxu0 %v1462
        %v4136 = vpop.f32.mrb[0].mxu0
        %v4137 = vadd.f32 %v4096, %v4136
        %v4138 = vpop.f32.mrb[0].mxu0
        %v4139 = vadd.f32 %v4098, %v4138
        %v4140 = vpop.f32.mrb[0].mxu0
        %v4141 = vpop.f32.mrb[0].mxu0
        %4142 = vdwg.mxu0
        %4143 = vmatprep.subr.bf16.mxu0 %v3295
        %4144 = vmatpush1.bf16.msra.mxu0 %v3294
        %4145 = vmatprep.subr.bf16.mxu0 %v3297
        %4146 = vmatpush1.bf16.msra.mxu0 %v3296
        %4147 = vmatprep.subr.bf16.mxu0 %v3299
        %4148 = vmatpush1.bf16.msra.mxu0 %v3298
        %4149 = vmatprep.subr.bf16.mxu0 %v3301
        %4150 = vmatpush1.bf16.msra.mxu0 %v3300
        %4151 = vmatprep.subr.bf16.mxu0 %v3303
        %4152 = vmatpush1.bf16.msra.mxu0 %v3302
        %4153 = vmatprep.subr.bf16.mxu0 %v3305
        %4154 = vmatpush1.bf16.msra.mxu0 %v3304
        %4155 = vmatprep.subr.bf16.mxu0 %v3307
        %4156 = vmatpush1.bf16.msra.mxu0 %v3306
        %4157 = vmatprep.subr.bf16.mxu0 %v3309
        %4158 = vmatpush1.bf16.msra.mxu0 %v3308
        %4159 = vmatprep.subr.bf16.mxu0 %v3311
        %4160 = vmatpush1.bf16.msra.mxu0 %v3310
        %4161 = vmatprep.subr.bf16.mxu0 %v3313
        %4162 = vmatpush1.bf16.msra.mxu0 %v3312
        %4163 = vmatprep.subr.bf16.mxu0 %v3315
        %4164 = vmatpush1.bf16.msra.mxu0 %v3314
        %4165 = vmatprep.subr.bf16.mxu0 %v3317
        %4166 = vmatpush1.bf16.msra.mxu0 %v3316
        %4167 = vmatprep.subr.bf16.mxu0 %v3319
        %4168 = vmatpush1.bf16.msra.mxu0 %v3318
        %4169 = vmatprep.subr.bf16.mxu0 %v3321
        %4170 = vmatpush1.bf16.msra.mxu0 %v3320
        %4171 = vmatprep.subr.bf16.mxu0 %v3323
        %4172 = vmatpush1.bf16.msra.mxu0 %v3322
        %4173 = vmatprep.subr.bf16.mxu0 %v3325
        %4174 = vmatpush1.bf16.msra.mxu0 %v3324
        %4175 = vmatprep.mubr.bf16.mxu0 %v1465
        %4176 = vmatmul.mubr.bf16.gmra.mrb[0].mxu0 %v1464
        %v4177 = vpop.f32.mrb[0].mxu0
        %v4178 = vadd.f32 %v4137, %v4177
        %v4179 = vpop.f32.mrb[0].mxu0
        %v4180 = vadd.f32 %v4139, %v4179
        %v4181 = vpop.f32.mrb[0].mxu0
        %v4182 = vpop.f32.mrb[0].mxu0
        %4183 = vdwg.mxu0
        %4184 = vmatprep.subr.bf16.mxu0 %v3327
        %4185 = vmatpush1.bf16.msra.mxu0 %v3326
        %4186 = vmatprep.subr.bf16.mxu0 %v3329
        %4187 = vmatpush1.bf16.msra.mxu0 %v3328
        %4188 = vmatprep.subr.bf16.mxu0 %v3331
        %4189 = vmatpush1.bf16.msra.mxu0 %v3330
        %4190 = vmatprep.subr.bf16.mxu0 %v3333
        %4191 = vmatpush1.bf16.msra.mxu0 %v3332
        %4192 = vmatprep.subr.bf16.mxu0 %v3335
        %4193 = vmatpush1.bf16.msra.mxu0 %v3334
        %4194 = vmatprep.subr.bf16.mxu0 %v3337
        %4195 = vmatpush1.bf16.msra.mxu0 %v3336
        %4196 = vmatprep.subr.bf16.mxu0 %v3339
        %4197 = vmatpush1.bf16.msra.mxu0 %v3338
        %4198 = vmatprep.subr.bf16.mxu0 %v3341
        %4199 = vmatpush1.bf16.msra.mxu0 %v3340
        %4200 = vmatprep.subr.bf16.mxu0 %v3343
        %4201 = vmatpush1.bf16.msra.mxu0 %v3342
        %4202 = vmatprep.subr.bf16.mxu0 %v3345
        %4203 = vmatpush1.bf16.msra.mxu0 %v3344
        %4204 = vmatprep.subr.bf16.mxu0 %v3347
        %4205 = vmatpush1.bf16.msra.mxu0 %v3346
        %4206 = vmatprep.subr.bf16.mxu0 %v3349
        %4207 = vmatpush1.bf16.msra.mxu0 %v3348
        %4208 = vmatprep.subr.bf16.mxu0 %v3351
        %4209 = vmatpush1.bf16.msra.mxu0 %v3350
        %4210 = vmatprep.subr.bf16.mxu0 %v3353
        %4211 = vmatpush1.bf16.msra.mxu0 %v3352
        %4212 = vmatprep.subr.bf16.mxu0 %v3355
        %4213 = vmatpush1.bf16.msra.mxu0 %v3354
        %4214 = vmatprep.subr.bf16.mxu0 %v3357
        %4215 = vmatpush1.bf16.msra.mxu0 %v3356
        %4216 = vmatprep.mubr.bf16.mxu0 %v1467
        %4217 = vmatmul.mubr.bf16.gmra.mrb[0].mxu0 %v1466
        %v4218 = vpop.f32.mrb[0].mxu0
        %v4219 = vadd.f32 %v4178, %v4218
        %v4220 = vpop.f32.mrb[0].mxu0
        %v4221 = vadd.f32 %v4180, %v4220
        %v4222 = vpop.f32.mrb[0].mxu0
        %v4223 = vpop.f32.mrb[0].mxu0
        %4224 = vdwg.mxu0
        %4225 = vmatprep.subr.bf16.mxu0 %v3359
        %4226 = vmatpush1.bf16.msra.mxu0 %v3358
        %4227 = vmatprep.subr.bf16.mxu0 %v3361
        %4228 = vmatpush1.bf16.msra.mxu0 %v3360
        %4229 = vmatprep.subr.bf16.mxu0 %v3363
        %4230 = vmatpush1.bf16.msra.mxu0 %v3362
        %4231 = vmatprep.subr.bf16.mxu0 %v3365
        %4232 = vmatpush1.bf16.msra.mxu0 %v3364
        %4233 = vmatprep.subr.bf16.mxu0 %v3367
        %4234 = vmatpush1.bf16.msra.mxu0 %v3366
        %4235 = vmatprep.subr.bf16.mxu0 %v3369
        %4236 = vmatpush1.bf16.msra.mxu0 %v3368
        %4237 = vmatprep.subr.bf16.mxu0 %v3371
        %4238 = vmatpush1.bf16.msra.mxu0 %v3370
        %4239 = vmatprep.subr.bf16.mxu0 %v3373
        %4240 = vmatpush1.bf16.msra.mxu0 %v3372
        %4241 = vmatprep.subr.bf16.mxu0 %v3375
        %4242 = vmatpush1.bf16.msra.mxu0 %v3374
        %4243 = vmatprep.subr.bf16.mxu0 %v3377
        %4244 = vmatpush1.bf16.msra.mxu0 %v3376
        %4245 = vmatprep.subr.bf16.mxu0 %v3379
        %4246 = vmatpush1.bf16.msra.mxu0 %v3378
        %4247 = vmatprep.subr.bf16.mxu0 %v3381
        %4248 = vmatpush1.bf16.msra.mxu0 %v3380
        %4249 = vmatprep.subr.bf16.mxu0 %v3383
        %4250 = vmatpush1.bf16.msra.mxu0 %v3382
        %4251 = vmatprep.subr.bf16.mxu0 %v3385
        %4252 = vmatpush1.bf16.msra.mxu0 %v3384
        %4253 = vmatprep.subr.bf16.mxu0 %v3387
        %4254 = vmatpush1.bf16.msra.mxu0 %v3386
        %4255 = vmatprep.subr.bf16.mxu0 %v3389
        %4256 = vmatpush1.bf16.msra.mxu0 %v3388
        %4257 = vmatprep.mubr.bf16.mxu0 %v1469
        %4258 = vmatmul.mubr.bf16.gmra.mrb[0].mxu0 %v1468
        %v4259 = vpop.f32.mrb[0].mxu0
        %v4260 = vadd.f32 %v4219, %v4259
        %v4261 = vpop.f32.mrb[0].mxu0
        %v4262 = vadd.f32 %v4221, %v4261
        %v4263 = vpop.f32.mrb[0].mxu0
        %v4264 = vpop.f32.mrb[0].mxu0
        %4265 = vdwg.mxu0
        %v4266 = vadd.f32 %v1420, %v4260
        %v4267 = vadd.f32 %v1421, %v4262
        %4268 = vst [vmem:[#allocation2] sm:$0xff] %v4266
        %vm4269 = vcmask 588800
        %4270 = vst.msk [vmem:[#allocation2 + $0x8] sm:$0xff] %vm4269, %v4267
        %p4271 = scmp.eq.s32.totalorder %s21, 3
        // Predicated region
        $region65: #{conve_forward.1} parent=51 // pred_check
          %p4272 = pneg %p4271
        $region66: #{conve_forward.1} parent=51 // pred_check_branch
          %4274 = sbr.rel (%p4272) target = $region68
        $region67: #{conve_forward.1} parent=51 // pred_region
          %v4275 = vld [vmem:[#allocation2] sm:$0xff]
          %v4276 = vld [vmem:[#allocation2 + $0x8] sm:$0xff]
          %v4277 = vld [vmem:[%s4] sm:$0x3]
          %v4279 = vlaneseq
          %v4280 = vshrl.u32 %v4279, 7
          %v4281 = vsub.s32 0, %v4280
          %v4282 = vrot.slane %v4277, %v4281
          %v4283 = vlaneseq
          %v4284 = vshrl.u32 %v4283, 7
          %v4285 = vsub.s32 1, %v4284
          %v4286 = vrot.slane %v4277, %v4285
          %v4289 = vadd.f32 %v4275, %v4282
          %v4290 = vadd.f32 %v4276, %v4286
          %v4291 = vmax.f32 %v4289, 0.0
          %v4292 = vmax.f32 %v4290, 0.0
          %v4293 = vrot.slane %v4291, 4
          %v4294 = vadd.f32 %v4291, %v4293
          %v4295 = vrot.slane %v4294, 2
          %v4296 = vadd.f32 %v4294, %v4295
          %v4297 = vrot.slane %v4296, 1
          %v4298 = vadd.f32 %v4296, %v4297
          %v4299 = vsel %vm4269, %v4292, 0.0
          %v4300 = vrot.slane %v4299, 4
          %v4301 = vadd.f32 %v4299, %v4300
          %v4302 = vrot.slane %v4301, 2
          %v4303 = vadd.f32 %v4301, %v4302
          %v4304 = vrot.slane %v4303, 1
          %v4305 = vadd.f32 %v4303, %v4304
          %v4306 = vrcp.pop 8.0
          %v4307 = vmul.f32 %v4298, %v4306
          %v4308 = vmul.f32 %v4305, %v4306
          %v4309 = vsub.f32 %v4291, %v4307
          %v4310 = vsub.f32 %v4292, %v4308
          %v4311 = vmul.f32 %v4309, %v4309
          %v4312 = vmul.f32 %v4310, %v4310
          %v4313 = vrot.slane %v4311, 4
          %v4314 = vadd.f32 %v4311, %v4313
          %v4315 = vrot.slane %v4314, 2
          %v4316 = vadd.f32 %v4314, %v4315
          %v4317 = vrot.slane %v4316, 1
          %v4318 = vadd.f32 %v4316, %v4317
          %v4319 = vsel %vm4269, %v4312, 0.0
          %v4320 = vrot.slane %v4319, 4
          %v4321 = vadd.f32 %v4319, %v4320
          %v4322 = vrot.slane %v4321, 2
          %v4323 = vadd.f32 %v4321, %v4322
          %v4324 = vrot.slane %v4323, 1
          %v4325 = vadd.f32 %v4323, %v4324
          %v4326 = vmul.f32 %v4318, %v4306
          %v4327 = vmul.f32 %v4325, %v4306
          %v4328 = vadd.f32 %v4326, 1e-05
          %v4329 = vadd.f32 %v4327, 1e-05
          %v4330 = vrsqrt.pop %v4328
          %v4331 = vrsqrt.pop %v4329
          %v4332 = vmul.f32 %v4309, %v4330
          %v4333 = vmul.f32 %v4310, %v4331
          %v4334 = vld [vmem:[%s5] sm:$0x3]
          %v4336 = vlaneseq
          %v4337 = vshrl.u32 %v4336, 7
          %v4338 = vsub.s32 0, %v4337
          %v4339 = vrot.slane %v4334, %v4338
          %v4340 = vlaneseq
          %v4341 = vshrl.u32 %v4340, 7
          %v4342 = vsub.s32 1, %v4341
          %v4343 = vrot.slane %v4334, %v4342
          %v4346 = vmul.f32 %v4332, %v4339
          %v4347 = vmul.f32 %v4333, %v4343
          %v4348 = vld [vmem:[%s6] sm:$0x3]
          %v4350 = vlaneseq
          %v4351 = vshrl.u32 %v4350, 7
          %v4352 = vsub.s32 0, %v4351
          %v4353 = vrot.slane %v4348, %v4352
          %v4354 = vlaneseq
          %v4355 = vshrl.u32 %v4354, 7
          %v4356 = vsub.s32 1, %v4355
          %v4357 = vrot.slane %v4348, %v4356
          %v4360 = vadd.f32 %v4346, %v4353
          %v4361 = vadd.f32 %v4347, %v4357
          %v4362 = vld [vmem:[%s7] sm:$0xff]
          %v4363 = vld [vmem:[%s7 + $0x8] sm:$0xff]
          %v4364 = vmul.f32 %v4360, %v4362
          %v4365 = vmul.f32 %v4361, %v4363
          %v4366 = vsel %vm4269, %v4365, 0.0
          %v4367 = vadd.f32 %v4364, %v4366
          %4368 = vadd.xlane.f32.xlu0 %v4367
          %v4369 = vpop.xlane.xlu0 %4368
          %v4370 = vsub.f32 0.0, %v4369
          %v4371 = vmul.f32 %v4370, 1.442695
          %v4372 = vpow.pop %v4371
          %v4373 = vadd.f32 %v4372, 1.0
          %v4374 = vrcp.pop %v4373
          %v4375 = vmul.f32 1.0, %v4374
          %vm4376 = vcmask 7168
          %4377 = vst.msk [vmem:[%s8] sm:$0xff] %vm4376, %v4375
        $region68: #{conve_forward.1} parent=51 // pred_fallthru
          _
        // Predicated region
        $region69: #{conve_forward.1} parent=51 // pred_check
          %p4378 = pneg %p207
        $region70: #{conve_forward.1} parent=51 // pred_check_branch
          %4380 = sbr.rel (%p4378) target = $region72
        $region71: #{conve_forward.1} parent=51 // pred_region
          _
        $region72: #{conve_forward.1} parent=51 // pred_fallthru
          _
        // Predicated region
        $region73: #{conve_forward.1} parent=51 // pred_check
          %p4381 = pneg %p207
        $region74: #{conve_forward.1} parent=51 // pred_check_branch
          %4383 = sbr.rel (%p4381) target = $region76
        $region75: #{conve_forward.1} parent=51 // pred_region
          _
        $region76: #{conve_forward.1} parent=51 // pred_fallthru
          _
      $region52: #{conve_forward.1} parent=5 // pred_fallthru
        _
      %p4384 = scmp.le.s32.totalorder 2, %s16
      // Predicated region
      $region77: #{conve_forward.1} parent=5 // pred_check
        %p4385 = pneg %p4384
      $region78: #{conve_forward.1} parent=5 // pred_check_branch
        %4387 = sbr.rel (%p4385) target = $region80
      $region79: #{conve_forward.1} parent=5 // pred_region
        %s4388 = ssub.s32 %s16, 2
      $region80: #{conve_forward.1} parent=5 // pred_fallthru
        _
    $region6: #{conve_forward.1} parent=1 // loop_footer
      %s20 = sadd.s32 1, %s16
    $region7: #{conve_forward.1} parent=1 // loop_footer_branch
      %15 = sbr.rel target = $region3
    $region8: #{conve_forward.1} parent=1 // loop_exit
      _
    %4389 = vsyncpa [#allocation5], 1
    %s4390 = scalar_lea.sflag [#allocation5], 1
    %4391 = vsyncpa %s4390, 1
    %4392 = vsyncpa [#allocation7], 1

</llo_original>
